<compile_context>
chip_gen: v6e
topology: v6e:2x2x1
jax: 0.10.0
libtpu: 0.0.40
codegen_flags: <defaults>
</compile_context>

<pallas_src>
import functools

import numpy as np
import jax
import jax.numpy as jnp
from jax.experimental import pallas as pl
from jax.experimental.pallas import tpu as pltpu


# ---------------------------------------------------------------------------
# Fused kernel: one grid step == one image of the batch.
# ---------------------------------------------------------------------------
def _bgm_kernel(x_ref, y_ref, w5_ref, w3_ref, b_ref, o_ref, pad_a, pad_b,
                *, H, W, C):
    """Fused BGModel forward.

    x_ref, y_ref : (1, H, W*C)  f32  lane-dense NHWC slabs
    w5_ref       : (3, 5, W*C, W*C) bf16 banded weights [conv1, conv0, gamma]
    w3_ref       : (5, 3, W*C, W*C) bf16 banded weights
                                    [conv2, conv3_x, conv3_y, conv4_e, conv4_f]
    b_ref        : (6, W*C)     f32  lane-tiled biases [b1, b0, bg, b2, b3, b4]
    o_ref        : (1, H, W*C)  f32  conv4 output
    pad_a        : (H+4, W*C)   f32  scratch (zero 2-row top/bottom border, 5x5 convs)
    pad_b        : (H+2, W*C)   f32  scratch (zero 1-row top/bottom border, 3x3 convs)
    """
    WC = W * C
    f32 = jnp.float32

    # Zero the height-padding borders once per grid step (interiors are always
    # fully overwritten before they are read, so no stale state is carried).
    pad_a[...] = jnp.zeros_like(pad_a)
    pad_b[...] = jnp.zeros_like(pad_b)

    def band_conv(pad_ref, w_ref, idx, K):
        # stride-1 'same' conv of the padded slab with banded weights -> (H, W*C) f32
        acc = jnp.zeros((H, WC), f32)
        for kh in range(K):  # K sublane-shifted row slices, no lane relayout
            lhs = pad_ref[kh:kh + H, :].astype(jnp.bfloat16)
            acc = acc + jnp.dot(lhs, w_ref[idx, kh],
                                preferred_element_type=f32)
        return acc

    def conv5(val, idx, bias_row, relu):
        pad_a[2:2 + H, :] = val                       # fill interior rows
        acc = band_conv(pad_a, w5_ref, idx, 5) + b_ref[bias_row:bias_row + 1, :]
        return jnp.maximum(acc, 0.0) if relu else acc

    def conv3_half(val, idx):
        pad_b[1:1 + H, :] = val
        return band_conv(pad_b, w3_ref, idx, 3)

    silu = lambda v: v * jax.nn.sigmoid(v)            # elementwise stays f32

    x_in = x_ref[0]
    y_in = y_ref[0]

    # x = conv1(x * sigmoid(x))
    x1 = conv5(silu(x_in), 0, 0, relu=False)
    # y = relu(conv0(y * sigmoid(y))) ; y = relu(gamma(y))
    y1 = conv5(silu(y_in), 1, 1, relu=True)
    y2 = conv5(y1, 2, 2, relu=True)
    # edge = relu(conv2(x * y))
    edge = jnp.maximum(conv3_half(x1 * y2, 0) + b_ref[3:4, :], 0.0)
    # fea = relu(conv3(cat(x, y)))  ==  relu(conv3_x(x) + conv3_y(y) + b3)
    fea = jnp.maximum(conv3_half(x1, 1) + conv3_half(y2, 2) + b_ref[4:5, :], 0.0)
    # out = conv4(cat(edge, fea))   ==  conv4_e(edge) + conv4_f(fea) + b4
    out = conv3_half(edge, 3) + conv3_half(fea, 4) + b_ref[5:6, :]

    o_ref[0] = out.astype(o_ref.dtype)


# ---------------------------------------------------------------------------
# Host-side weight preprocessing (one-time): conv weights -> banded matrices.
# ---------------------------------------------------------------------------
def _band_weights(w, W_out):
    """(K, K, Cin, Cout) HWIO conv weights -> (K, W_out*Cin, W_out*Cout) band.

    Realizes the stride-1 'same' conv along the width axis as a matmul:
        out[oh, ow*Cout + cout] = sum_kh  row[oh + kh, :] @ band[kh][:, ow*Cout + cout]
    with the zero width-padding folded into the (Toeplitz) band structure.
    """
    w = np.asarray(w, np.float32)
    K, _, Cin, Cout = w.shape
    P = (K - 1) // 2
    band = np.zeros((K, W_out * Cin, W_out * Cout), np.float32)
    for ow in range(W_out):
        for kw in range(K):
            wi = ow + kw - P
            if 0 <= wi < W_out:
                band[:, wi * Cin:(wi + 1) * Cin,
                     ow * Cout:(ow + 1) * Cout] = w[:, kw]
    return band


def prepare_bgm_params(params, W, C):
    """Pack all conv weights/biases into the MXU-friendly layout (bf16 bands)."""
    w5 = np.stack([_band_weights(params['conv1_w'], W),
                   _band_weights(params['conv0_w'], W),
                   _band_weights(params['gamma_w'], W)])
    w3_full = np.asarray(params['conv3_w'], np.float32)
    w4_full = np.asarray(params['conv4_w'], np.float32)
    w3 = np.stack([_band_weights(params['conv2_w'], W),
                   _band_weights(w3_full[:, :, :C, :], W),   # conv3 on x-channels
                   _band_weights(w3_full[:, :, C:, :], W),   # conv3 on y-channels
                   _band_weights(w4_full[:, :, :C, :], W),   # conv4 on edge
                   _band_weights(w4_full[:, :, C:, :], W)])  # conv4 on fea
    biases = np.stack([np.tile(np.asarray(params[k], np.float32), W)
                       for k in ('conv1_b', 'conv0_b', 'gamma_b',
                                 'conv2_b', 'conv3_b', 'conv4_b')])
    return {'w5': jnp.asarray(w5, jnp.bfloat16),
            'w3': jnp.asarray(w3, jnp.bfloat16),
            'b': jnp.asarray(biases, jnp.float32)}


def bg_model_forward(prepped, y, x, e1_stride=1, e2_stride=1):
    """Fused BGModel forward on NHWC inputs; returns the conv4 output (NHWC)."""
    # TODO(synk): strided conv0/gamma (e1_stride/e2_stride > 1) not implemented
    # in the fused kernel; they would also require a larger-resolution y input
    # for the x * y product to be shape-consistent.
    assert e1_stride == 1 and e2_stride == 1
    N, H, W, C = x.shape
    assert y.shape == x.shape
    WC = W * C

    x_slab = x.reshape(N, H, WC)     # lane-dense (w, c)-interleaved slabs
    y_slab = y.reshape(N, H, WC)
    w5, w3, b = prepped['w5'], prepped['w3'], prepped['b']

    kernel = functools.partial(_bgm_kernel, H=H, W=W, C=C)
    out = pl.pallas_call(
        kernel,
        out_shape=jax.ShapeDtypeStruct((N, H, WC), jnp.float32),
        grid_spec=pltpu.PrefetchScalarGridSpec(
            num_scalar_prefetch=0,
            grid=(N,),
            in_specs=[
                pl.BlockSpec((1, H, WC), lambda n: (n, 0, 0)),
                pl.BlockSpec((1, H, WC), lambda n: (n, 0, 0)),
                pl.BlockSpec(w5.shape, lambda n: (0, 0, 0, 0)),
                pl.BlockSpec(w3.shape, lambda n: (0, 0, 0, 0)),
                pl.BlockSpec(b.shape, lambda n: (0, 0)),
            ],
            out_specs=pl.BlockSpec((1, H, WC), lambda n: (n, 0, 0)),
            scratch_shapes=[
                pltpu.VMEM((H + 4, WC), jnp.float32),   # padded slab, 5x5 convs
                pltpu.VMEM((H + 2, WC), jnp.float32),   # padded slab, 3x3 convs
            ],
        ),
        compiler_params=pltpu.CompilerParams(
            dimension_semantics=("parallel",),
            vmem_limit_bytes=32 * 1024 * 1024),
    )(x_slab, y_slab, w5, w3, b)

    return out.reshape(N, H, W, C)


# ---------------------------------------------------------------------------
# Pure-JAX reference (same bf16-operand / f32-accumulate precision) used only
# to validate the fused Pallas kernel.
# ---------------------------------------------------------------------------
def _ref_conv(x, w, b, pad):
    out = jax.lax.conv_general_dilated(
        x.astype(jnp.bfloat16), jnp.asarray(w, jnp.bfloat16),
        window_strides=(1, 1), padding=[(pad, pad), (pad, pad)],
        dimension_numbers=('NHWC', 'HWIO', 'NHWC'),
        preferred_element_type=jnp.float32)
    return out + jnp.asarray(b, jnp.float32).reshape(1, 1, 1, -1)


def bg_model_reference(params, y, x):
    x1 = _ref_conv(x * jax.nn.sigmoid(x), params['conv1_w'], params['conv1_b'], 2)
    y1 = jax.nn.relu(_ref_conv(y * jax.nn.sigmoid(y),
                               params['conv0_w'], params['conv0_b'], 2))
    y2 = jax.nn.relu(_ref_conv(y1, params['gamma_w'], params['gamma_b'], 2))
    edge = jax.nn.relu(_ref_conv(x1 * y2, params['conv2_w'], params['conv2_b'], 1))
    fea = jax.nn.relu(_ref_conv(jnp.concatenate([x1, y2], axis=-1),
                                params['conv3_w'], params['conv3_b'], 1))
    return _ref_conv(jnp.concatenate([edge, fea], axis=-1),
                     params['conv4_w'], params['conv4_b'], 1)


if __name__ == "__main__":
    N, C, H, W = 2, 4, 16, 16
    e1_stride, e2_stride = 1, 1   # strides > 1 not supported by the fused path

    key = jax.random.PRNGKey(0)
    keys = jax.random.split(key, 16)

    def w_init(k, shape):   # Conv2d weights ~ N(0, 0.01) as in the module
        return (0.01 * jax.random.normal(k, shape)).astype(jnp.float32)

    def b_init(k, c):       # small non-zero biases to actually exercise the bias path
        return (0.01 * jax.random.normal(k, (c,))).astype(jnp.float32)

    params = {
        'conv0_w': w_init(keys[0], (5, 5, C, C)),     'conv0_b': b_init(keys[6], C),
        'gamma_w': w_init(keys[1], (5, 5, C, C)),     'gamma_b': b_init(keys[7], C),
        'conv1_w': w_init(keys[2], (5, 5, C, C)),     'conv1_b': b_init(keys[8], C),
        'conv2_w': w_init(keys[3], (3, 3, C, C)),     'conv2_b': b_init(keys[9], C),
        'conv3_w': w_init(keys[4], (3, 3, 2 * C, C)), 'conv3_b': b_init(keys[10], C),
        'conv4_w': w_init(keys[5], (3, 3, 2 * C, C)), 'conv4_b': b_init(keys[11], C),
        # edge_pre / fea_pre exist in the module but their outputs are never
        # returned from forward(); the fused kernel drops them as dead code.
    }

    # Inputs as in PyTorch (NCHW), transposed to the kernel's NHWC layout.
    x_nchw = jax.random.normal(keys[12], (N, C, H, W), jnp.float32)
    y_nchw = jax.random.normal(keys[13], (N, C, H, W), jnp.float32)
    x_nhwc = jnp.transpose(x_nchw, (0, 2, 3, 1))
    y_nhwc = jnp.transpose(y_nchw, (0, 2, 3, 1))

    prepped = prepare_bgm_params(params, W, C)
    out = bg_model_forward(prepped, y_nhwc, x_nhwc, e1_stride, e2_stride)
    out = jax.block_until_ready(out)

    ref = bg_model_reference(params, y_nhwc, x_nhwc)
    assert out.shape == (N, H, W, C)
    assert jnp.allclose(out, ref, atol=5e-5, rtol=5e-3), (
        "mismatch vs reference: max abs diff = %e"
        % float(jnp.max(jnp.abs(out - ref))))

    # Back to PyTorch's NCHW convention for the final result.
    out_nchw = jnp.transpose(out, (0, 3, 1, 2))
    jax.block_until_ready(out_nchw)
    print("KERNEL_OK")
</pallas_src>

<mosaic_0001>
module attributes {stable_mosaic.version = 11 : i64} {
  func.func @_bgm_kernel(%arg0: i32, %arg1: memref<1x16x64xf32, #tpu.memory_space<vmem>>, %arg2: memref<1x16x64xf32, #tpu.memory_space<vmem>>, %arg3: memref<3x5x64x64xbf16, #tpu.memory_space<vmem>>, %arg4: memref<5x3x64x64xbf16, #tpu.memory_space<vmem>>, %arg5: memref<6x64xf32, #tpu.memory_space<vmem>>, %arg6: memref<1x16x64xf32, #tpu.memory_space<vmem>>, %arg7: memref<20x64xf32, #tpu.memory_space<vmem>>, %arg8: memref<18x64xf32, #tpu.memory_space<vmem>>) attributes {dimension_semantics = [#tpu.dimension_semantics<parallel>], iteration_bounds = array<i64: 2>, scalar_prefetch = 0 : i64, scratch_operands = 2 : i64, tpu.core_type = #tpu.core_type<tc>, window_params = [{transform_indices = @transform_0, window_bounds = array<i64: 1, 16, 64>}, {transform_indices = @transform_1, window_bounds = array<i64: 1, 16, 64>}, {pipeline_mode = #tpu.pipeline_mode<synchronous>, transform_indices = @transform_2, window_bounds = array<i64: 3, 5, 64, 64>}, {pipeline_mode = #tpu.pipeline_mode<synchronous>, transform_indices = @transform_3, window_bounds = array<i64: 5, 3, 64, 64>}, {pipeline_mode = #tpu.pipeline_mode<synchronous>, transform_indices = @transform_4, window_bounds = array<i64: 6, 64>}, {transform_indices = @transform_5, window_bounds = array<i64: 1, 16, 64>}]} {
    %cst = arith.constant 0.000000e+00 : f32
    %0 = vector.broadcast %cst : f32 to vector<20x64xf32>
    %c0 = arith.constant 0 : index
    %c0_0 = arith.constant 0 : index
    %1 = vector.load %arg7[%c0, %c0_0] : memref<20x64xf32, #tpu.memory_space<vmem>>, vector<20x64xf32>
    tpu.vector_store %arg7[%c0, %c0_0], %0 {strides = array<i32>} : memref<20x64xf32, #tpu.memory_space<vmem>>, vector<20x64xf32>,
    %cst_1 = arith.constant 0.000000e+00 : f32
    %2 = vector.broadcast %cst_1 : f32 to vector<18x64xf32>
    %c0_2 = arith.constant 0 : index
    %c0_3 = arith.constant 0 : index
    %3 = vector.load %arg8[%c0_2, %c0_3] : memref<18x64xf32, #tpu.memory_space<vmem>>, vector<18x64xf32>
    tpu.vector_store %arg8[%c0_2, %c0_3], %2 {strides = array<i32>} : memref<18x64xf32, #tpu.memory_space<vmem>>, vector<18x64xf32>,
    %c0_4 = arith.constant 0 : index
    %c0_5 = arith.constant 0 : index
    %c0_6 = arith.constant 0 : index
    %4 = vector.load %arg1[%c0_4, %c0_5, %c0_6] : memref<1x16x64xf32, #tpu.memory_space<vmem>>, vector<1x16x64xf32>
    %5 = vector.shape_cast %4 : vector<1x16x64xf32> to vector<16x64xf32>
    %c0_7 = arith.constant 0 : index
    %c0_8 = arith.constant 0 : index
    %c0_9 = arith.constant 0 : index
    %6 = vector.load %arg2[%c0_7, %c0_8, %c0_9] : memref<1x16x64xf32, #tpu.memory_space<vmem>>, vector<1x16x64xf32>
    %7 = vector.shape_cast %6 : vector<1x16x64xf32> to vector<16x64xf32>
    %8 = arith.negf %5 : vector<16x64xf32>
    %9 = math.exp %8 : vector<16x64xf32>
    %cst_10 = arith.constant 1.000000e+00 : f32
    %10 = vector.broadcast %cst_10 : f32 to vector<16x64xf32>
    %11 = arith.addf %10, %9 : vector<16x64xf32>
    %12 = arith.divf %10, %11 : vector<16x64xf32>
    %13 = arith.mulf %5, %12 : vector<16x64xf32>
    %c2 = arith.constant 2 : index
    %c0_11 = arith.constant 0 : index
    %14 = vector.load %arg7[%c2, %c0_11] : memref<20x64xf32, #tpu.memory_space<vmem>>, vector<16x64xf32>
    tpu.vector_store %arg7[%c2, %c0_11], %13 {strides = array<i32>} : memref<20x64xf32, #tpu.memory_space<vmem>>, vector<16x64xf32>,
    %cst_12 = arith.constant 0.000000e+00 : f32
    %15 = vector.broadcast %cst_12 : f32 to vector<16x64xf32>
    %c0_13 = arith.constant 0 : index
    %c0_14 = arith.constant 0 : index
    %16 = vector.load %arg7[%c0_13, %c0_14] : memref<20x64xf32, #tpu.memory_space<vmem>>, vector<16x64xf32>
    %17 = arith.truncf %16 : vector<16x64xf32> to vector<16x64xbf16>
    %c0_15 = arith.constant 0 : index
    %c0_16 = arith.constant 0 : index
    %c0_17 = arith.constant 0 : index
    %c0_18 = arith.constant 0 : index
    %18 = vector.load %arg3[%c0_15, %c0_16, %c0_17, %c0_18] : memref<3x5x64x64xbf16, #tpu.memory_space<vmem>>, vector<1x1x64x64xbf16>
    %19 = vector.shape_cast %18 : vector<1x1x64x64xbf16> to vector<64x64xbf16>
    %cst_19 = arith.constant dense<0.000000e+00> : vector<16x64xf32>
    %20 = tpu.matmul %17, %19, %cst_19 {dimension_numbers = #tpu.dot_dimension_numbers<[1], [0], [0], [1], [0, 0, 1, 1], [], []>} : vector<16x64xbf16>, vector<64x64xbf16>, vector<16x64xf32> -> vector<16x64xf32>
    %21 = arith.addf %15, %20 : vector<16x64xf32>
    %c1 = arith.constant 1 : index
    %c0_20 = arith.constant 0 : index
    %22 = vector.load %arg7[%c1, %c0_20] : memref<20x64xf32, #tpu.memory_space<vmem>>, vector<16x64xf32>
    %23 = arith.truncf %22 : vector<16x64xf32> to vector<16x64xbf16>
    %c0_21 = arith.constant 0 : index
    %c1_22 = arith.constant 1 : index
    %c0_23 = arith.constant 0 : index
    %c0_24 = arith.constant 0 : index
    %24 = vector.load %arg3[%c0_21, %c1_22, %c0_23, %c0_24] : memref<3x5x64x64xbf16, #tpu.memory_space<vmem>>, vector<1x1x64x64xbf16>
    %25 = vector.shape_cast %24 : vector<1x1x64x64xbf16> to vector<64x64xbf16>
    %cst_25 = arith.constant dense<0.000000e+00> : vector<16x64xf32>
    %26 = tpu.matmul %23, %25, %cst_25 {dimension_numbers = #tpu.dot_dimension_numbers<[1], [0], [0], [1], [0, 0, 1, 1], [], []>} : vector<16x64xbf16>, vector<64x64xbf16>, vector<16x64xf32> -> vector<16x64xf32>
    %27 = arith.addf %21, %26 : vector<16x64xf32>
    %c2_26 = arith.constant 2 : index
    %c0_27 = arith.constant 0 : index
    %28 = vector.load %arg7[%c2_26, %c0_27] : memref<20x64xf32, #tpu.memory_space<vmem>>, vector<16x64xf32>
    %29 = arith.truncf %28 : vector<16x64xf32> to vector<16x64xbf16>
    %c0_28 = arith.constant 0 : index
    %c2_29 = arith.constant 2 : index
    %c0_30 = arith.constant 0 : index
    %c0_31 = arith.constant 0 : index
    %30 = vector.load %arg3[%c0_28, %c2_29, %c0_30, %c0_31] : memref<3x5x64x64xbf16, #tpu.memory_space<vmem>>, vector<1x1x64x64xbf16>
    %31 = vector.shape_cast %30 : vector<1x1x64x64xbf16> to vector<64x64xbf16>
    %cst_32 = arith.constant dense<0.000000e+00> : vector<16x64xf32>
    %32 = tpu.matmul %29, %31, %cst_32 {dimension_numbers = #tpu.dot_dimension_numbers<[1], [0], [0], [1], [0, 0, 1, 1], [], []>} : vector<16x64xbf16>, vector<64x64xbf16>, vector<16x64xf32> -> vector<16x64xf32>
    %33 = arith.addf %27, %32 : vector<16x64xf32>
    %c3 = arith.constant 3 : index
    %c0_33 = arith.constant 0 : index
    %34 = vector.load %arg7[%c3, %c0_33] : memref<20x64xf32, #tpu.memory_space<vmem>>, vector<16x64xf32>
    %35 = arith.truncf %34 : vector<16x64xf32> to vector<16x64xbf16>
    %c0_34 = arith.constant 0 : index
    %c3_35 = arith.constant 3 : index
    %c0_36 = arith.constant 0 : index
    %c0_37 = arith.constant 0 : index
    %36 = vector.load %arg3[%c0_34, %c3_35, %c0_36, %c0_37] : memref<3x5x64x64xbf16, #tpu.memory_space<vmem>>, vector<1x1x64x64xbf16>
    %37 = vector.shape_cast %36 : vector<1x1x64x64xbf16> to vector<64x64xbf16>
    %cst_38 = arith.constant dense<0.000000e+00> : vector<16x64xf32>
    %38 = tpu.matmul %35, %37, %cst_38 {dimension_numbers = #tpu.dot_dimension_numbers<[1], [0], [0], [1], [0, 0, 1, 1], [], []>} : vector<16x64xbf16>, vector<64x64xbf16>, vector<16x64xf32> -> vector<16x64xf32>
    %39 = arith.addf %33, %38 : vector<16x64xf32>
    %c4 = arith.constant 4 : index
    %c0_39 = arith.constant 0 : index
    %40 = vector.load %arg7[%c4, %c0_39] : memref<20x64xf32, #tpu.memory_space<vmem>>, vector<16x64xf32>
    %41 = arith.truncf %40 : vector<16x64xf32> to vector<16x64xbf16>
    %c0_40 = arith.constant 0 : index
    %c4_41 = arith.constant 4 : index
    %c0_42 = arith.constant 0 : index
    %c0_43 = arith.constant 0 : index
    %42 = vector.load %arg3[%c0_40, %c4_41, %c0_42, %c0_43] : memref<3x5x64x64xbf16, #tpu.memory_space<vmem>>, vector<1x1x64x64xbf16>
    %43 = vector.shape_cast %42 : vector<1x1x64x64xbf16> to vector<64x64xbf16>
    %cst_44 = arith.constant dense<0.000000e+00> : vector<16x64xf32>
    %44 = tpu.matmul %41, %43, %cst_44 {dimension_numbers = #tpu.dot_dimension_numbers<[1], [0], [0], [1], [0, 0, 1, 1], [], []>} : vector<16x64xbf16>, vector<64x64xbf16>, vector<16x64xf32> -> vector<16x64xf32>
    %45 = arith.addf %39, %44 : vector<16x64xf32>
    %c0_45 = arith.constant 0 : index
    %c0_46 = arith.constant 0 : index
    %46 = vector.load %arg5[%c0_45, %c0_46] : memref<6x64xf32, #tpu.memory_space<vmem>>, vector<1x64xf32>
    %47 = vector.broadcast %46 : vector<1x64xf32> to vector<16x64xf32>
    %48 = arith.addf %45, %47 : vector<16x64xf32>
    %49 = arith.negf %7 : vector<16x64xf32>
    %50 = math.exp %49 : vector<16x64xf32>
    %cst_47 = arith.constant 1.000000e+00 : f32
    %51 = vector.broadcast %cst_47 : f32 to vector<16x64xf32>
    %52 = arith.addf %51, %50 : vector<16x64xf32>
    %53 = arith.divf %51, %52 : vector<16x64xf32>
    %54 = arith.mulf %7, %53 : vector<16x64xf32>
    %c2_48 = arith.constant 2 : index
    %c0_49 = arith.constant 0 : index
    %55 = vector.load %arg7[%c2_48, %c0_49] : memref<20x64xf32, #tpu.memory_space<vmem>>, vector<16x64xf32>
    tpu.vector_store %arg7[%c2_48, %c0_49], %54 {strides = array<i32>} : memref<20x64xf32, #tpu.memory_space<vmem>>, vector<16x64xf32>,
    %cst_50 = arith.constant 0.000000e+00 : f32
    %56 = vector.broadcast %cst_50 : f32 to vector<16x64xf32>
    %c0_51 = arith.constant 0 : index
    %c0_52 = arith.constant 0 : index
    %57 = vector.load %arg7[%c0_51, %c0_52] : memref<20x64xf32, #tpu.memory_space<vmem>>, vector<16x64xf32>
    %58 = arith.truncf %57 : vector<16x64xf32> to vector<16x64xbf16>
    %c1_53 = arith.constant 1 : index
    %c0_54 = arith.constant 0 : index
    %c0_55 = arith.constant 0 : index
    %c0_56 = arith.constant 0 : index
    %59 = vector.load %arg3[%c1_53, %c0_54, %c0_55, %c0_56] : memref<3x5x64x64xbf16, #tpu.memory_space<vmem>>, vector<1x1x64x64xbf16>
    %60 = vector.shape_cast %59 : vector<1x1x64x64xbf16> to vector<64x64xbf16>
    %cst_57 = arith.constant dense<0.000000e+00> : vector<16x64xf32>
    %61 = tpu.matmul %58, %60, %cst_57 {dimension_numbers = #tpu.dot_dimension_numbers<[1], [0], [0], [1], [0, 0, 1, 1], [], []>} : vector<16x64xbf16>, vector<64x64xbf16>, vector<16x64xf32> -> vector<16x64xf32>
    %62 = arith.addf %56, %61 : vector<16x64xf32>
    %c1_58 = arith.constant 1 : index
    %c0_59 = arith.constant 0 : index
    %63 = vector.load %arg7[%c1_58, %c0_59] : memref<20x64xf32, #tpu.memory_space<vmem>>, vector<16x64xf32>
    %64 = arith.truncf %63 : vector<16x64xf32> to vector<16x64xbf16>
    %c1_60 = arith.constant 1 : index
    %c1_61 = arith.constant 1 : index
    %c0_62 = arith.constant 0 : index
    %c0_63 = arith.constant 0 : index
    %65 = vector.load %arg3[%c1_60, %c1_61, %c0_62, %c0_63] : memref<3x5x64x64xbf16, #tpu.memory_space<vmem>>, vector<1x1x64x64xbf16>
    %66 = vector.shape_cast %65 : vector<1x1x64x64xbf16> to vector<64x64xbf16>
    %cst_64 = arith.constant dense<0.000000e+00> : vector<16x64xf32>
    %67 = tpu.matmul %64, %66, %cst_64 {dimension_numbers = #tpu.dot_dimension_numbers<[1], [0], [0], [1], [0, 0, 1, 1], [], []>} : vector<16x64xbf16>, vector<64x64xbf16>, vector<16x64xf32> -> vector<16x64xf32>
    %68 = arith.addf %62, %67 : vector<16x64xf32>
    %c2_65 = arith.constant 2 : index
    %c0_66 = arith.constant 0 : index
    %69 = vector.load %arg7[%c2_65, %c0_66] : memref<20x64xf32, #tpu.memory_space<vmem>>, vector<16x64xf32>
    %70 = arith.truncf %69 : vector<16x64xf32> to vector<16x64xbf16>
    %c1_67 = arith.constant 1 : index
    %c2_68 = arith.constant 2 : index
    %c0_69 = arith.constant 0 : index
    %c0_70 = arith.constant 0 : index
    %71 = vector.load %arg3[%c1_67, %c2_68, %c0_69, %c0_70] : memref<3x5x64x64xbf16, #tpu.memory_space<vmem>>, vector<1x1x64x64xbf16>
    %72 = vector.shape_cast %71 : vector<1x1x64x64xbf16> to vector<64x64xbf16>
    %cst_71 = arith.constant dense<0.000000e+00> : vector<16x64xf32>
    %73 = tpu.matmul %70, %72, %cst_71 {dimension_numbers = #tpu.dot_dimension_numbers<[1], [0], [0], [1], [0, 0, 1, 1], [], []>} : vector<16x64xbf16>, vector<64x64xbf16>, vector<16x64xf32> -> vector<16x64xf32>
    %74 = arith.addf %68, %73 : vector<16x64xf32>
    %c3_72 = arith.constant 3 : index
    %c0_73 = arith.constant 0 : index
    %75 = vector.load %arg7[%c3_72, %c0_73] : memref<20x64xf32, #tpu.memory_space<vmem>>, vector<16x64xf32>
    %76 = arith.truncf %75 : vector<16x64xf32> to vector<16x64xbf16>
    %c1_74 = arith.constant 1 : index
    %c3_75 = arith.constant 3 : index
    %c0_76 = arith.constant 0 : index
    %c0_77 = arith.constant 0 : index
    %77 = vector.load %arg3[%c1_74, %c3_75, %c0_76, %c0_77] : memref<3x5x64x64xbf16, #tpu.memory_space<vmem>>, vector<1x1x64x64xbf16>
    %78 = vector.shape_cast %77 : vector<1x1x64x64xbf16> to vector<64x64xbf16>
    %cst_78 = arith.constant dense<0.000000e+00> : vector<16x64xf32>
    %79 = tpu.matmul %76, %78, %cst_78 {dimension_numbers = #tpu.dot_dimension_numbers<[1], [0], [0], [1], [0, 0, 1, 1], [], []>} : vector<16x64xbf16>, vector<64x64xbf16>, vector<16x64xf32> -> vector<16x64xf32>
    %80 = arith.addf %74, %79 : vector<16x64xf32>
    %c4_79 = arith.constant 4 : index
    %c0_80 = arith.constant 0 : index
    %81 = vector.load %arg7[%c4_79, %c0_80] : memref<20x64xf32, #tpu.memory_space<vmem>>, vector<16x64xf32>
    %82 = arith.truncf %81 : vector<16x64xf32> to vector<16x64xbf16>
    %c1_81 = arith.constant 1 : index
    %c4_82 = arith.constant 4 : index
    %c0_83 = arith.constant 0 : index
    %c0_84 = arith.constant 0 : index
    %83 = vector.load %arg3[%c1_81, %c4_82, %c0_83, %c0_84] : memref<3x5x64x64xbf16, #tpu.memory_space<vmem>>, vector<1x1x64x64xbf16>
    %84 = vector.shape_cast %83 : vector<1x1x64x64xbf16> to vector<64x64xbf16>
    %cst_85 = arith.constant dense<0.000000e+00> : vector<16x64xf32>
    %85 = tpu.matmul %82, %84, %cst_85 {dimension_numbers = #tpu.dot_dimension_numbers<[1], [0], [0], [1], [0, 0, 1, 1], [], []>} : vector<16x64xbf16>, vector<64x64xbf16>, vector<16x64xf32> -> vector<16x64xf32>
    %86 = arith.addf %80, %85 : vector<16x64xf32>
    %c1_86 = arith.constant 1 : index
    %c0_87 = arith.constant 0 : index
    %87 = vector.load %arg5[%c1_86, %c0_87] : memref<6x64xf32, #tpu.memory_space<vmem>>, vector<1x64xf32>
    %88 = vector.broadcast %87 : vector<1x64xf32> to vector<16x64xf32>
    %89 = arith.addf %86, %88 : vector<16x64xf32>
    %cst_88 = arith.constant 0.000000e+00 : f32
    %90 = vector.broadcast %cst_88 : f32 to vector<16x64xf32>
    %91 = arith.maximumf %89, %90 : vector<16x64xf32>
    %c2_89 = arith.constant 2 : index
    %c0_90 = arith.constant 0 : index
    %92 = vector.load %arg7[%c2_89, %c0_90] : memref<20x64xf32, #tpu.memory_space<vmem>>, vector<16x64xf32>
    tpu.vector_store %arg7[%c2_89, %c0_90], %91 {strides = array<i32>} : memref<20x64xf32, #tpu.memory_space<vmem>>, vector<16x64xf32>,
    %cst_91 = arith.constant 0.000000e+00 : f32
    %93 = vector.broadcast %cst_91 : f32 to vector<16x64xf32>
    %c0_92 = arith.constant 0 : index
    %c0_93 = arith.constant 0 : index
    %94 = vector.load %arg7[%c0_92, %c0_93] : memref<20x64xf32, #tpu.memory_space<vmem>>, vector<16x64xf32>
    %95 = arith.truncf %94 : vector<16x64xf32> to vector<16x64xbf16>
    %c2_94 = arith.constant 2 : index
    %c0_95 = arith.constant 0 : index
    %c0_96 = arith.constant 0 : index
    %c0_97 = arith.constant 0 : index
    %96 = vector.load %arg3[%c2_94, %c0_95, %c0_96, %c0_97] : memref<3x5x64x64xbf16, #tpu.memory_space<vmem>>, vector<1x1x64x64xbf16>
    %97 = vector.shape_cast %96 : vector<1x1x64x64xbf16> to vector<64x64xbf16>
    %cst_98 = arith.constant dense<0.000000e+00> : vector<16x64xf32>
    %98 = tpu.matmul %95, %97, %cst_98 {dimension_numbers = #tpu.dot_dimension_numbers<[1], [0], [0], [1], [0, 0, 1, 1], [], []>} : vector<16x64xbf16>, vector<64x64xbf16>, vector<16x64xf32> -> vector<16x64xf32>
    %99 = arith.addf %93, %98 : vector<16x64xf32>
    %c1_99 = arith.constant 1 : index
    %c0_100 = arith.constant 0 : index
    %100 = vector.load %arg7[%c1_99, %c0_100] : memref<20x64xf32, #tpu.memory_space<vmem>>, vector<16x64xf32>
    %101 = arith.truncf %100 : vector<16x64xf32> to vector<16x64xbf16>
    %c2_101 = arith.constant 2 : index
    %c1_102 = arith.constant 1 : index
    %c0_103 = arith.constant 0 : index
    %c0_104 = arith.constant 0 : index
    %102 = vector.load %arg3[%c2_101, %c1_102, %c0_103, %c0_104] : memref<3x5x64x64xbf16, #tpu.memory_space<vmem>>, vector<1x1x64x64xbf16>
    %103 = vector.shape_cast %102 : vector<1x1x64x64xbf16> to vector<64x64xbf16>
    %cst_105 = arith.constant dense<0.000000e+00> : vector<16x64xf32>
    %104 = tpu.matmul %101, %103, %cst_105 {dimension_numbers = #tpu.dot_dimension_numbers<[1], [0], [0], [1], [0, 0, 1, 1], [], []>} : vector<16x64xbf16>, vector<64x64xbf16>, vector<16x64xf32> -> vector<16x64xf32>
    %105 = arith.addf %99, %104 : vector<16x64xf32>
    %c2_106 = arith.constant 2 : index
    %c0_107 = arith.constant 0 : index
    %106 = vector.load %arg7[%c2_106, %c0_107] : memref<20x64xf32, #tpu.memory_space<vmem>>, vector<16x64xf32>
    %107 = arith.truncf %106 : vector<16x64xf32> to vector<16x64xbf16>
    %c2_108 = arith.constant 2 : index
    %c2_109 = arith.constant 2 : index
    %c0_110 = arith.constant 0 : index
    %c0_111 = arith.constant 0 : index
    %108 = vector.load %arg3[%c2_108, %c2_109, %c0_110, %c0_111] : memref<3x5x64x64xbf16, #tpu.memory_space<vmem>>, vector<1x1x64x64xbf16>
    %109 = vector.shape_cast %108 : vector<1x1x64x64xbf16> to vector<64x64xbf16>
    %cst_112 = arith.constant dense<0.000000e+00> : vector<16x64xf32>
    %110 = tpu.matmul %107, %109, %cst_112 {dimension_numbers = #tpu.dot_dimension_numbers<[1], [0], [0], [1], [0, 0, 1, 1], [], []>} : vector<16x64xbf16>, vector<64x64xbf16>, vector<16x64xf32> -> vector<16x64xf32>
    %111 = arith.addf %105, %110 : vector<16x64xf32>
    %c3_113 = arith.constant 3 : index
    %c0_114 = arith.constant 0 : index
    %112 = vector.load %arg7[%c3_113, %c0_114] : memref<20x64xf32, #tpu.memory_space<vmem>>, vector<16x64xf32>
    %113 = arith.truncf %112 : vector<16x64xf32> to vector<16x64xbf16>
    %c2_115 = arith.constant 2 : index
    %c3_116 = arith.constant 3 : index
    %c0_117 = arith.constant 0 : index
    %c0_118 = arith.constant 0 : index
    %114 = vector.load %arg3[%c2_115, %c3_116, %c0_117, %c0_118] : memref<3x5x64x64xbf16, #tpu.memory_space<vmem>>, vector<1x1x64x64xbf16>
    %115 = vector.shape_cast %114 : vector<1x1x64x64xbf16> to vector<64x64xbf16>
    %cst_119 = arith.constant dense<0.000000e+00> : vector<16x64xf32>
    %116 = tpu.matmul %113, %115, %cst_119 {dimension_numbers = #tpu.dot_dimension_numbers<[1], [0], [0], [1], [0, 0, 1, 1], [], []>} : vector<16x64xbf16>, vector<64x64xbf16>, vector<16x64xf32> -> vector<16x64xf32>
    %117 = arith.addf %111, %116 : vector<16x64xf32>
    %c4_120 = arith.constant 4 : index
    %c0_121 = arith.constant 0 : index
    %118 = vector.load %arg7[%c4_120, %c0_121] : memref<20x64xf32, #tpu.memory_space<vmem>>, vector<16x64xf32>
    %119 = arith.truncf %118 : vector<16x64xf32> to vector<16x64xbf16>
    %c2_122 = arith.constant 2 : index
    %c4_123 = arith.constant 4 : index
    %c0_124 = arith.constant 0 : index
    %c0_125 = arith.constant 0 : index
    %120 = vector.load %arg3[%c2_122, %c4_123, %c0_124, %c0_125] : memref<3x5x64x64xbf16, #tpu.memory_space<vmem>>, vector<1x1x64x64xbf16>
    %121 = vector.shape_cast %120 : vector<1x1x64x64xbf16> to vector<64x64xbf16>
    %cst_126 = arith.constant dense<0.000000e+00> : vector<16x64xf32>
    %122 = tpu.matmul %119, %121, %cst_126 {dimension_numbers = #tpu.dot_dimension_numbers<[1], [0], [0], [1], [0, 0, 1, 1], [], []>} : vector<16x64xbf16>, vector<64x64xbf16>, vector<16x64xf32> -> vector<16x64xf32>
    %123 = arith.addf %117, %122 : vector<16x64xf32>
    %c2_127 = arith.constant 2 : index
    %c0_128 = arith.constant 0 : index
    %124 = vector.load %arg5[%c2_127, %c0_128] : memref<6x64xf32, #tpu.memory_space<vmem>>, vector<1x64xf32>
    %125 = vector.broadcast %124 : vector<1x64xf32> to vector<16x64xf32>
    %126 = arith.addf %123, %125 : vector<16x64xf32>
    %cst_129 = arith.constant 0.000000e+00 : f32
    %127 = vector.broadcast %cst_129 : f32 to vector<16x64xf32>
    %128 = arith.maximumf %126, %127 : vector<16x64xf32>
    %129 = arith.mulf %48, %128 : vector<16x64xf32>
    %c1_130 = arith.constant 1 : index
    %c0_131 = arith.constant 0 : index
    %130 = vector.load %arg8[%c1_130, %c0_131] : memref<18x64xf32, #tpu.memory_space<vmem>>, vector<16x64xf32>
    tpu.vector_store %arg8[%c1_130, %c0_131], %129 {strides = array<i32>} : memref<18x64xf32, #tpu.memory_space<vmem>>, vector<16x64xf32>,
    %cst_132 = arith.constant 0.000000e+00 : f32
    %131 = vector.broadcast %cst_132 : f32 to vector<16x64xf32>
    %c0_133 = arith.constant 0 : index
    %c0_134 = arith.constant 0 : index
    %132 = vector.load %arg8[%c0_133, %c0_134] : memref<18x64xf32, #tpu.memory_space<vmem>>, vector<16x64xf32>
    %133 = arith.truncf %132 : vector<16x64xf32> to vector<16x64xbf16>
    %c0_135 = arith.constant 0 : index
    %c0_136 = arith.constant 0 : index
    %c0_137 = arith.constant 0 : index
    %c0_138 = arith.constant 0 : index
    %134 = vector.load %arg4[%c0_135, %c0_136, %c0_137, %c0_138] : memref<5x3x64x64xbf16, #tpu.memory_space<vmem>>, vector<1x1x64x64xbf16>
    %135 = vector.shape_cast %134 : vector<1x1x64x64xbf16> to vector<64x64xbf16>
    %cst_139 = arith.constant dense<0.000000e+00> : vector<16x64xf32>
    %136 = tpu.matmul %133, %135, %cst_139 {dimension_numbers = #tpu.dot_dimension_numbers<[1], [0], [0], [1], [0, 0, 1, 1], [], []>} : vector<16x64xbf16>, vector<64x64xbf16>, vector<16x64xf32> -> vector<16x64xf32>
    %137 = arith.addf %131, %136 : vector<16x64xf32>
    %c1_140 = arith.constant 1 : index
    %c0_141 = arith.constant 0 : index
    %138 = vector.load %arg8[%c1_140, %c0_141] : memref<18x64xf32, #tpu.memory_space<vmem>>, vector<16x64xf32>
    %139 = arith.truncf %138 : vector<16x64xf32> to vector<16x64xbf16>
    %c0_142 = arith.constant 0 : index
    %c1_143 = arith.constant 1 : index
    %c0_144 = arith.constant 0 : index
    %c0_145 = arith.constant 0 : index
    %140 = vector.load %arg4[%c0_142, %c1_143, %c0_144, %c0_145] : memref<5x3x64x64xbf16, #tpu.memory_space<vmem>>, vector<1x1x64x64xbf16>
    %141 = vector.shape_cast %140 : vector<1x1x64x64xbf16> to vector<64x64xbf16>
    %cst_146 = arith.constant dense<0.000000e+00> : vector<16x64xf32>
    %142 = tpu.matmul %139, %141, %cst_146 {dimension_numbers = #tpu.dot_dimension_numbers<[1], [0], [0], [1], [0, 0, 1, 1], [], []>} : vector<16x64xbf16>, vector<64x64xbf16>, vector<16x64xf32> -> vector<16x64xf32>
    %143 = arith.addf %137, %142 : vector<16x64xf32>
    %c2_147 = arith.constant 2 : index
    %c0_148 = arith.constant 0 : index
    %144 = vector.load %arg8[%c2_147, %c0_148] : memref<18x64xf32, #tpu.memory_space<vmem>>, vector<16x64xf32>
    %145 = arith.truncf %144 : vector<16x64xf32> to vector<16x64xbf16>
    %c0_149 = arith.constant 0 : index
    %c2_150 = arith.constant 2 : index
    %c0_151 = arith.constant 0 : index
    %c0_152 = arith.constant 0 : index
    %146 = vector.load %arg4[%c0_149, %c2_150, %c0_151, %c0_152] : memref<5x3x64x64xbf16, #tpu.memory_space<vmem>>, vector<1x1x64x64xbf16>
    %147 = vector.shape_cast %146 : vector<1x1x64x64xbf16> to vector<64x64xbf16>
    %cst_153 = arith.constant dense<0.000000e+00> : vector<16x64xf32>
    %148 = tpu.matmul %145, %147, %cst_153 {dimension_numbers = #tpu.dot_dimension_numbers<[1], [0], [0], [1], [0, 0, 1, 1], [], []>} : vector<16x64xbf16>, vector<64x64xbf16>, vector<16x64xf32> -> vector<16x64xf32>
    %149 = arith.addf %143, %148 : vector<16x64xf32>
    %c3_154 = arith.constant 3 : index
    %c0_155 = arith.constant 0 : index
    %150 = vector.load %arg5[%c3_154, %c0_155] : memref<6x64xf32, #tpu.memory_space<vmem>>, vector<1x64xf32>
    %151 = vector.broadcast %150 : vector<1x64xf32> to vector<16x64xf32>
    %152 = arith.addf %149, %151 : vector<16x64xf32>
    %cst_156 = arith.constant 0.000000e+00 : f32
    %153 = vector.broadcast %cst_156 : f32 to vector<16x64xf32>
    %154 = arith.maximumf %152, %153 : vector<16x64xf32>
    %c1_157 = arith.constant 1 : index
    %c0_158 = arith.constant 0 : index
    %155 = vector.load %arg8[%c1_157, %c0_158] : memref<18x64xf32, #tpu.memory_space<vmem>>, vector<16x64xf32>
    tpu.vector_store %arg8[%c1_157, %c0_158], %48 {strides = array<i32>} : memref<18x64xf32, #tpu.memory_space<vmem>>, vector<16x64xf32>,
    %cst_159 = arith.constant 0.000000e+00 : f32
    %156 = vector.broadcast %cst_159 : f32 to vector<16x64xf32>
    %c0_160 = arith.constant 0 : index
    %c0_161 = arith.constant 0 : index
    %157 = vector.load %arg8[%c0_160, %c0_161] : memref<18x64xf32, #tpu.memory_space<vmem>>, vector<16x64xf32>
    %158 = arith.truncf %157 : vector<16x64xf32> to vector<16x64xbf16>
    %c1_162 = arith.constant 1 : index
    %c0_163 = arith.constant 0 : index
    %c0_164 = arith.constant 0 : index
    %c0_165 = arith.constant 0 : index
    %159 = vector.load %arg4[%c1_162, %c0_163, %c0_164, %c0_165] : memref<5x3x64x64xbf16, #tpu.memory_space<vmem>>, vector<1x1x64x64xbf16>
    %160 = vector.shape_cast %159 : vector<1x1x64x64xbf16> to vector<64x64xbf16>
    %cst_166 = arith.constant dense<0.000000e+00> : vector<16x64xf32>
    %161 = tpu.matmul %158, %160, %cst_166 {dimension_numbers = #tpu.dot_dimension_numbers<[1], [0], [0], [1], [0, 0, 1, 1], [], []>} : vector<16x64xbf16>, vector<64x64xbf16>, vector<16x64xf32> -> vector<16x64xf32>
    %162 = arith.addf %156, %161 : vector<16x64xf32>
    %c1_167 = arith.constant 1 : index
    %c0_168 = arith.constant 0 : index
    %163 = vector.load %arg8[%c1_167, %c0_168] : memref<18x64xf32, #tpu.memory_space<vmem>>, vector<16x64xf32>
    %164 = arith.truncf %163 : vector<16x64xf32> to vector<16x64xbf16>
    %c1_169 = arith.constant 1 : index
    %c1_170 = arith.constant 1 : index
    %c0_171 = arith.constant 0 : index
    %c0_172 = arith.constant 0 : index
    %165 = vector.load %arg4[%c1_169, %c1_170, %c0_171, %c0_172] : memref<5x3x64x64xbf16, #tpu.memory_space<vmem>>, vector<1x1x64x64xbf16>
    %166 = vector.shape_cast %165 : vector<1x1x64x64xbf16> to vector<64x64xbf16>
    %cst_173 = arith.constant dense<0.000000e+00> : vector<16x64xf32>
    %167 = tpu.matmul %164, %166, %cst_173 {dimension_numbers = #tpu.dot_dimension_numbers<[1], [0], [0], [1], [0, 0, 1, 1], [], []>} : vector<16x64xbf16>, vector<64x64xbf16>, vector<16x64xf32> -> vector<16x64xf32>
    %168 = arith.addf %162, %167 : vector<16x64xf32>
    %c2_174 = arith.constant 2 : index
    %c0_175 = arith.constant 0 : index
    %169 = vector.load %arg8[%c2_174, %c0_175] : memref<18x64xf32, #tpu.memory_space<vmem>>, vector<16x64xf32>
    %170 = arith.truncf %169 : vector<16x64xf32> to vector<16x64xbf16>
    %c1_176 = arith.constant 1 : index
    %c2_177 = arith.constant 2 : index
    %c0_178 = arith.constant 0 : index
    %c0_179 = arith.constant 0 : index
    %171 = vector.load %arg4[%c1_176, %c2_177, %c0_178, %c0_179] : memref<5x3x64x64xbf16, #tpu.memory_space<vmem>>, vector<1x1x64x64xbf16>
    %172 = vector.shape_cast %171 : vector<1x1x64x64xbf16> to vector<64x64xbf16>
    %cst_180 = arith.constant dense<0.000000e+00> : vector<16x64xf32>
    %173 = tpu.matmul %170, %172, %cst_180 {dimension_numbers = #tpu.dot_dimension_numbers<[1], [0], [0], [1], [0, 0, 1, 1], [], []>} : vector<16x64xbf16>, vector<64x64xbf16>, vector<16x64xf32> -> vector<16x64xf32>
    %174 = arith.addf %168, %173 : vector<16x64xf32>
    %c1_181 = arith.constant 1 : index
    %c0_182 = arith.constant 0 : index
    %175 = vector.load %arg8[%c1_181, %c0_182] : memref<18x64xf32, #tpu.memory_space<vmem>>, vector<16x64xf32>
    tpu.vector_store %arg8[%c1_181, %c0_182], %128 {strides = array<i32>} : memref<18x64xf32, #tpu.memory_space<vmem>>, vector<16x64xf32>,
    %cst_183 = arith.constant 0.000000e+00 : f32
    %176 = vector.broadcast %cst_183 : f32 to vector<16x64xf32>
    %c0_184 = arith.constant 0 : index
    %c0_185 = arith.constant 0 : index
    %177 = vector.load %arg8[%c0_184, %c0_185] : memref<18x64xf32, #tpu.memory_space<vmem>>, vector<16x64xf32>
    %178 = arith.truncf %177 : vector<16x64xf32> to vector<16x64xbf16>
    %c2_186 = arith.constant 2 : index
    %c0_187 = arith.constant 0 : index
    %c0_188 = arith.constant 0 : index
    %c0_189 = arith.constant 0 : index
    %179 = vector.load %arg4[%c2_186, %c0_187, %c0_188, %c0_189] : memref<5x3x64x64xbf16, #tpu.memory_space<vmem>>, vector<1x1x64x64xbf16>
    %180 = vector.shape_cast %179 : vector<1x1x64x64xbf16> to vector<64x64xbf16>
    %cst_190 = arith.constant dense<0.000000e+00> : vector<16x64xf32>
    %181 = tpu.matmul %178, %180, %cst_190 {dimension_numbers = #tpu.dot_dimension_numbers<[1], [0], [0], [1], [0, 0, 1, 1], [], []>} : vector<16x64xbf16>, vector<64x64xbf16>, vector<16x64xf32> -> vector<16x64xf32>
    %182 = arith.addf %176, %181 : vector<16x64xf32>
    %c1_191 = arith.constant 1 : index
    %c0_192 = arith.constant 0 : index
    %183 = vector.load %arg8[%c1_191, %c0_192] : memref<18x64xf32, #tpu.memory_space<vmem>>, vector<16x64xf32>
    %184 = arith.truncf %183 : vector<16x64xf32> to vector<16x64xbf16>
    %c2_193 = arith.constant 2 : index
    %c1_194 = arith.constant 1 : index
    %c0_195 = arith.constant 0 : index
    %c0_196 = arith.constant 0 : index
    %185 = vector.load %arg4[%c2_193, %c1_194, %c0_195, %c0_196] : memref<5x3x64x64xbf16, #tpu.memory_space<vmem>>, vector<1x1x64x64xbf16>
    %186 = vector.shape_cast %185 : vector<1x1x64x64xbf16> to vector<64x64xbf16>
    %cst_197 = arith.constant dense<0.000000e+00> : vector<16x64xf32>
    %187 = tpu.matmul %184, %186, %cst_197 {dimension_numbers = #tpu.dot_dimension_numbers<[1], [0], [0], [1], [0, 0, 1, 1], [], []>} : vector<16x64xbf16>, vector<64x64xbf16>, vector<16x64xf32> -> vector<16x64xf32>
    %188 = arith.addf %182, %187 : vector<16x64xf32>
    %c2_198 = arith.constant 2 : index
    %c0_199 = arith.constant 0 : index
    %189 = vector.load %arg8[%c2_198, %c0_199] : memref<18x64xf32, #tpu.memory_space<vmem>>, vector<16x64xf32>
    %190 = arith.truncf %189 : vector<16x64xf32> to vector<16x64xbf16>
    %c2_200 = arith.constant 2 : index
    %c2_201 = arith.constant 2 : index
    %c0_202 = arith.constant 0 : index
    %c0_203 = arith.constant 0 : index
    %191 = vector.load %arg4[%c2_200, %c2_201, %c0_202, %c0_203] : memref<5x3x64x64xbf16, #tpu.memory_space<vmem>>, vector<1x1x64x64xbf16>
    %192 = vector.shape_cast %191 : vector<1x1x64x64xbf16> to vector<64x64xbf16>
    %cst_204 = arith.constant dense<0.000000e+00> : vector<16x64xf32>
    %193 = tpu.matmul %190, %192, %cst_204 {dimension_numbers = #tpu.dot_dimension_numbers<[1], [0], [0], [1], [0, 0, 1, 1], [], []>} : vector<16x64xbf16>, vector<64x64xbf16>, vector<16x64xf32> -> vector<16x64xf32>
    %194 = arith.addf %188, %193 : vector<16x64xf32>
    %195 = arith.addf %174, %194 : vector<16x64xf32>
    %c4_205 = arith.constant 4 : index
    %c0_206 = arith.constant 0 : index
    %196 = vector.load %arg5[%c4_205, %c0_206] : memref<6x64xf32, #tpu.memory_space<vmem>>, vector<1x64xf32>
    %197 = vector.broadcast %196 : vector<1x64xf32> to vector<16x64xf32>
    %198 = arith.addf %195, %197 : vector<16x64xf32>
    %cst_207 = arith.constant 0.000000e+00 : f32
    %199 = vector.broadcast %cst_207 : f32 to vector<16x64xf32>
    %200 = arith.maximumf %198, %199 : vector<16x64xf32>
    %c1_208 = arith.constant 1 : index
    %c0_209 = arith.constant 0 : index
    %201 = vector.load %arg8[%c1_208, %c0_209] : memref<18x64xf32, #tpu.memory_space<vmem>>, vector<16x64xf32>
    tpu.vector_store %arg8[%c1_208, %c0_209], %154 {strides = array<i32>} : memref<18x64xf32, #tpu.memory_space<vmem>>, vector<16x64xf32>,
    %cst_210 = arith.constant 0.000000e+00 : f32
    %202 = vector.broadcast %cst_210 : f32 to vector<16x64xf32>
    %c0_211 = arith.constant 0 : index
    %c0_212 = arith.constant 0 : index
    %203 = vector.load %arg8[%c0_211, %c0_212] : memref<18x64xf32, #tpu.memory_space<vmem>>, vector<16x64xf32>
    %204 = arith.truncf %203 : vector<16x64xf32> to vector<16x64xbf16>
    %c3_213 = arith.constant 3 : index
    %c0_214 = arith.constant 0 : index
    %c0_215 = arith.constant 0 : index
    %c0_216 = arith.constant 0 : index
    %205 = vector.load %arg4[%c3_213, %c0_214, %c0_215, %c0_216] : memref<5x3x64x64xbf16, #tpu.memory_space<vmem>>, vector<1x1x64x64xbf16>
    %206 = vector.shape_cast %205 : vector<1x1x64x64xbf16> to vector<64x64xbf16>
    %cst_217 = arith.constant dense<0.000000e+00> : vector<16x64xf32>
    %207 = tpu.matmul %204, %206, %cst_217 {dimension_numbers = #tpu.dot_dimension_numbers<[1], [0], [0], [1], [0, 0, 1, 1], [], []>} : vector<16x64xbf16>, vector<64x64xbf16>, vector<16x64xf32> -> vector<16x64xf32>
    %208 = arith.addf %202, %207 : vector<16x64xf32>
    %c1_218 = arith.constant 1 : index
    %c0_219 = arith.constant 0 : index
    %209 = vector.load %arg8[%c1_218, %c0_219] : memref<18x64xf32, #tpu.memory_space<vmem>>, vector<16x64xf32>
    %210 = arith.truncf %209 : vector<16x64xf32> to vector<16x64xbf16>
    %c3_220 = arith.constant 3 : index
    %c1_221 = arith.constant 1 : index
    %c0_222 = arith.constant 0 : index
    %c0_223 = arith.constant 0 : index
    %211 = vector.load %arg4[%c3_220, %c1_221, %c0_222, %c0_223] : memref<5x3x64x64xbf16, #tpu.memory_space<vmem>>, vector<1x1x64x64xbf16>
    %212 = vector.shape_cast %211 : vector<1x1x64x64xbf16> to vector<64x64xbf16>
    %cst_224 = arith.constant dense<0.000000e+00> : vector<16x64xf32>
    %213 = tpu.matmul %210, %212, %cst_224 {dimension_numbers = #tpu.dot_dimension_numbers<[1], [0], [0], [1], [0, 0, 1, 1], [], []>} : vector<16x64xbf16>, vector<64x64xbf16>, vector<16x64xf32> -> vector<16x64xf32>
    %214 = arith.addf %208, %213 : vector<16x64xf32>
    %c2_225 = arith.constant 2 : index
    %c0_226 = arith.constant 0 : index
    %215 = vector.load %arg8[%c2_225, %c0_226] : memref<18x64xf32, #tpu.memory_space<vmem>>, vector<16x64xf32>
    %216 = arith.truncf %215 : vector<16x64xf32> to vector<16x64xbf16>
    %c3_227 = arith.constant 3 : index
    %c2_228 = arith.constant 2 : index
    %c0_229 = arith.constant 0 : index
    %c0_230 = arith.constant 0 : index
    %217 = vector.load %arg4[%c3_227, %c2_228, %c0_229, %c0_230] : memref<5x3x64x64xbf16, #tpu.memory_space<vmem>>, vector<1x1x64x64xbf16>
    %218 = vector.shape_cast %217 : vector<1x1x64x64xbf16> to vector<64x64xbf16>
    %cst_231 = arith.constant dense<0.000000e+00> : vector<16x64xf32>
    %219 = tpu.matmul %216, %218, %cst_231 {dimension_numbers = #tpu.dot_dimension_numbers<[1], [0], [0], [1], [0, 0, 1, 1], [], []>} : vector<16x64xbf16>, vector<64x64xbf16>, vector<16x64xf32> -> vector<16x64xf32>
    %220 = arith.addf %214, %219 : vector<16x64xf32>
    %c1_232 = arith.constant 1 : index
    %c0_233 = arith.constant 0 : index
    %221 = vector.load %arg8[%c1_232, %c0_233] : memref<18x64xf32, #tpu.memory_space<vmem>>, vector<16x64xf32>
    tpu.vector_store %arg8[%c1_232, %c0_233], %200 {strides = array<i32>} : memref<18x64xf32, #tpu.memory_space<vmem>>, vector<16x64xf32>,
    %cst_234 = arith.constant 0.000000e+00 : f32
    %222 = vector.broadcast %cst_234 : f32 to vector<16x64xf32>
    %c0_235 = arith.constant 0 : index
    %c0_236 = arith.constant 0 : index
    %223 = vector.load %arg8[%c0_235, %c0_236] : memref<18x64xf32, #tpu.memory_space<vmem>>, vector<16x64xf32>
    %224 = arith.truncf %223 : vector<16x64xf32> to vector<16x64xbf16>
    %c4_237 = arith.constant 4 : index
    %c0_238 = arith.constant 0 : index
    %c0_239 = arith.constant 0 : index
    %c0_240 = arith.constant 0 : index
    %225 = vector.load %arg4[%c4_237, %c0_238, %c0_239, %c0_240] : memref<5x3x64x64xbf16, #tpu.memory_space<vmem>>, vector<1x1x64x64xbf16>
    %226 = vector.shape_cast %225 : vector<1x1x64x64xbf16> to vector<64x64xbf16>
    %cst_241 = arith.constant dense<0.000000e+00> : vector<16x64xf32>
    %227 = tpu.matmul %224, %226, %cst_241 {dimension_numbers = #tpu.dot_dimension_numbers<[1], [0], [0], [1], [0, 0, 1, 1], [], []>} : vector<16x64xbf16>, vector<64x64xbf16>, vector<16x64xf32> -> vector<16x64xf32>
    %228 = arith.addf %222, %227 : vector<16x64xf32>
    %c1_242 = arith.constant 1 : index
    %c0_243 = arith.constant 0 : index
    %229 = vector.load %arg8[%c1_242, %c0_243] : memref<18x64xf32, #tpu.memory_space<vmem>>, vector<16x64xf32>
    %230 = arith.truncf %229 : vector<16x64xf32> to vector<16x64xbf16>
    %c4_244 = arith.constant 4 : index
    %c1_245 = arith.constant 1 : index
    %c0_246 = arith.constant 0 : index
    %c0_247 = arith.constant 0 : index
    %231 = vector.load %arg4[%c4_244, %c1_245, %c0_246, %c0_247] : memref<5x3x64x64xbf16, #tpu.memory_space<vmem>>, vector<1x1x64x64xbf16>
    %232 = vector.shape_cast %231 : vector<1x1x64x64xbf16> to vector<64x64xbf16>
    %cst_248 = arith.constant dense<0.000000e+00> : vector<16x64xf32>
    %233 = tpu.matmul %230, %232, %cst_248 {dimension_numbers = #tpu.dot_dimension_numbers<[1], [0], [0], [1], [0, 0, 1, 1], [], []>} : vector<16x64xbf16>, vector<64x64xbf16>, vector<16x64xf32> -> vector<16x64xf32>
    %234 = arith.addf %228, %233 : vector<16x64xf32>
    %c2_249 = arith.constant 2 : index
    %c0_250 = arith.constant 0 : index
    %235 = vector.load %arg8[%c2_249, %c0_250] : memref<18x64xf32, #tpu.memory_space<vmem>>, vector<16x64xf32>
    %236 = arith.truncf %235 : vector<16x64xf32> to vector<16x64xbf16>
    %c4_251 = arith.constant 4 : index
    %c2_252 = arith.constant 2 : index
    %c0_253 = arith.constant 0 : index
    %c0_254 = arith.constant 0 : index
    %237 = vector.load %arg4[%c4_251, %c2_252, %c0_253, %c0_254] : memref<5x3x64x64xbf16, #tpu.memory_space<vmem>>, vector<1x1x64x64xbf16>
    %238 = vector.shape_cast %237 : vector<1x1x64x64xbf16> to vector<64x64xbf16>
    %cst_255 = arith.constant dense<0.000000e+00> : vector<16x64xf32>
    %239 = tpu.matmul %236, %238, %cst_255 {dimension_numbers = #tpu.dot_dimension_numbers<[1], [0], [0], [1], [0, 0, 1, 1], [], []>} : vector<16x64xbf16>, vector<64x64xbf16>, vector<16x64xf32> -> vector<16x64xf32>
    %240 = arith.addf %234, %239 : vector<16x64xf32>
    %241 = arith.addf %220, %240 : vector<16x64xf32>
    %c5 = arith.constant 5 : index
    %c0_256 = arith.constant 0 : index
    %242 = vector.load %arg5[%c5, %c0_256] : memref<6x64xf32, #tpu.memory_space<vmem>>, vector<1x64xf32>
    %243 = vector.broadcast %242 : vector<1x64xf32> to vector<16x64xf32>
    %244 = arith.addf %241, %243 : vector<16x64xf32>
    %c0_257 = arith.constant 0 : index
    %c0_258 = arith.constant 0 : index
    %c0_259 = arith.constant 0 : index
    %245 = vector.load %arg6[%c0_257, %c0_258, %c0_259] : memref<1x16x64xf32, #tpu.memory_space<vmem>>, vector<1x16x64xf32>
    %246 = vector.shape_cast %245 : vector<1x16x64xf32> to vector<16x64xf32>
    %247 = vector.shape_cast %244 : vector<16x64xf32> to vector<1x16x64xf32>
    tpu.vector_store %arg6[%c0_257, %c0_258, %c0_259], %247 {strides = array<i32>} : memref<1x16x64xf32, #tpu.memory_space<vmem>>, vector<1x16x64xf32>,
    return
  }
  func.func @transform_0(%arg0: i32) -> (i32, i32, i32) {
    %c0_i32 = arith.constant 0 : i32
    %c0_i32_0 = arith.constant 0 : i32
    %c0_i32_1 = arith.constant 0 : i32
    return %arg0, %c0_i32, %c0_i32_0 : i32, i32, i32
  }
  func.func @transform_1(%arg0: i32) -> (i32, i32, i32) {
    %c0_i32 = arith.constant 0 : i32
    %c0_i32_0 = arith.constant 0 : i32
    %c0_i32_1 = arith.constant 0 : i32
    return %arg0, %c0_i32, %c0_i32_0 : i32, i32, i32
  }
  func.func @transform_2(%arg0: i32) -> (i32, i32, i32, i32) {
    %c0_i32 = arith.constant 0 : i32
    %c0_i32_0 = arith.constant 0 : i32
    %c0_i32_1 = arith.constant 0 : i32
    %c0_i32_2 = arith.constant 0 : i32
    %c0_i32_3 = arith.constant 0 : i32
    return %c0_i32, %c0_i32_0, %c0_i32_1, %c0_i32_2 : i32, i32, i32, i32
  }
  func.func @transform_3(%arg0: i32) -> (i32, i32, i32, i32) {
    %c0_i32 = arith.constant 0 : i32
    %c0_i32_0 = arith.constant 0 : i32
    %c0_i32_1 = arith.constant 0 : i32
    %c0_i32_2 = arith.constant 0 : i32
    %c0_i32_3 = arith.constant 0 : i32
    return %c0_i32, %c0_i32_0, %c0_i32_1, %c0_i32_2 : i32, i32, i32, i32
  }
  func.func @transform_4(%arg0: i32) -> (i32, i32) {
    %c0_i32 = arith.constant 0 : i32
    %c0_i32_0 = arith.constant 0 : i32
    %c0_i32_1 = arith.constant 0 : i32
    return %c0_i32, %c0_i32_0 : i32, i32
  }
  func.func @transform_5(%arg0: i32) -> (i32, i32, i32) {
    %c0_i32 = arith.constant 0 : i32
    %c0_i32_0 = arith.constant 0 : i32
    %c0_i32_1 = arith.constant 0 : i32
    return %arg0, %c0_i32, %c0_i32_0 : i32, i32, i32
  }
}

</mosaic_0001>

<llo_original>
// kernel: tpu_custom_call.1
$region0: #{tpu_custom_call.1}
  #allocation0 [shape = 'u32[]', space=smem, size = 0x4, offset = 0x4, fixed_abs, tag = 'smem constant byte address 0x4 - core index']
  #allocation1 [shape = 'u32[144,128]{1,0:T(1,128)}', space=vmem, size = 0x12000, scoped, tag = 'internal scratch']
  #allocation2 [shape = 'f32[20,64]{1,0:T(8,128)}', space=vmem, size = 0x3000, scoped, tag = 'scratch operand']
  #allocation3 [shape = 'f32[18,64]{1,0:T(8,128)}', space=vmem, size = 0x3000, scoped, tag = 'scratch operand']
  %s0 = inlined_call_operand.hbm [shape: f32[2,16,64], index: 0, kind: input, shape index: {}]
  %s1 = inlined_call_operand.hbm [shape: f32[2,16,64], index: 1, kind: input, shape index: {}]
  %s2 = inlined_call_operand.hbm [shape: bf16[3,5,64,64], index: 2, kind: input, shape index: {}]
  %s3 = inlined_call_operand.hbm [shape: bf16[5,3,64,64], index: 3, kind: input, shape index: {}]
  %s4 = inlined_call_operand.hbm [shape: f32[6,64], index: 4, kind: input, shape index: {}]
  %s5 = inlined_call_operand.hbm [shape: f32[2,16,64], index: 5, kind: output, shape index: {}]
  %s6 = sld [smem:[#allocation0]]
  $region73: #{tpu_custom_call.1} parent=0
    _
  %s8 = ssub.s32 1, %s6
  %s9 = scalar_select 0, %s8, %s6
  $region1: #{tpu_custom_call.1} parent=0
    #allocation4 [shape = 'u8[16384]{0}', space=vmem, size = 0x4000, scoped, tag = 'input window, operand 0']
    #allocation5 [shape = 's32[2]{0}', space=sflag, size = 0x8, scoped, tag = 'scoped memory for tpu_custom_call.1']
    #allocation6 [shape = 's32[2]{0}', space=sflag, size = 0x8, scoped, tag = 'scoped memory for tpu_custom_call.1']
    #allocation7 [shape = 'u8[16384]{0}', space=vmem, size = 0x4000, scoped, tag = 'input window, operand 1']
    #allocation8 [shape = 's32[2]{0}', space=sflag, size = 0x8, scoped, tag = 'scoped memory for tpu_custom_call.1']
    #allocation9 [shape = 'u8[245760]{0}', space=vmem, size = 0x3c000, scoped, tag = 'input window, operand 2, single buffered']
    #allocation10 [shape = 'u8[245760]{0}', space=vmem, size = 0x3c000, scoped, tag = 'input window, operand 3, single buffered']
    #allocation11 [shape = 's32[1]{0}', space=sflag, size = 0x4, scoped, tag = 'scoped memory for tpu_custom_call.1']
    #allocation12 [shape = 'u8[4096]{0}', space=vmem, size = 0x1000, scoped, tag = 'input window, operand 4, single buffered']
    #allocation13 [shape = 'u8[16384]{0}', space=vmem, size = 0x4000, scoped, tag = 'output window, operand 0']
    %10 = vsyncpa [#allocation5], 0
    %s11 = scalar_lea.sflag [#allocation5], 1
    %12 = vsyncpa %s11, 0
    %13 = vsyncpa [#allocation8], 0
    %s14 = scalar_lea.sflag [#allocation8], 1
    %15 = vsyncpa %s14, 0
    %16 = vsyncpa [#allocation11], 0
    %17 = vsyncpa [#allocation6], 0
    %s18 = scalar_lea.sflag [#allocation6], 1
    %19 = vsyncpa %s18, 0
    loop: start=0, step=1, limit=4
    $region2: #{tpu_custom_call.1} parent=1 // loop_pre_header
      _
    $region3: #{tpu_custom_call.1} parent=1 // loop_header
      %s21 = sphi 0, %s25
      %p22 = scmp.ge.s32.totalorder %s21, 4
      %s31 = sphi 0, %s33
      %s34 = sphi 0, %s31
      %s35 = sphi 0, %s34
      %s51 = sphi 0, %s35
      %s57 = sphi 0, %s59
      %s60 = sphi 0, %s57
      %s61 = sphi 0, %s60
      %s77 = sphi 0, %s61
      %s81 = sphi 0, %s81
      %s83 = sphi 0, %s81
      %s84 = sphi 0, %s83
      %s98 = sphi 0, %s84
      %s102 = sphi 0, %s102
      %s104 = sphi 0, %s102
      %s105 = sphi 0, %s104
      %s119 = sphi 0, %s105
      %s123 = sphi 0, %s123
      %s125 = sphi 0, %s123
      %s126 = sphi 0, %s125
      %s140 = sphi 0, %s126
      %s146 = sphi 0, %s148
      %s149 = sphi 0, %s146
      %s150 = sphi 0, %s149
      %s166 = sphi 0, %s150
    $region4: #{tpu_custom_call.1} parent=1 // loop_header_branch
      %24 = sbr.rel (%p22) target = $region8
    $region5: #{tpu_custom_call.1} parent=1 // loop_body
      %s26 = ssub.s32 %s21, 1
      %s27 = ssub.s32 %s21, 2
      %s28 = sadd.s32 %s21, 1
      %s29 = ssub.s32 %s21, %s28
      %p30 = scmp.eq.s32.totalorder %s29, 0
      %s32 = sadd.s32 %s31, 1
      %s33 = scalar_select %p30, %s31, %s32
      %p36 = pneg %p30
      %p37 = scmp.eq.s32.totalorder %s21, 1
      %p38 = por %p36, %p37
      %p39 = scmp.ne.s32.totalorder %s31, %s34
      %p40 = scmp.eq.s32.totalorder %s21, 0
      %p41 = por %p39, %p40
      %p42 = scmp.ne.s32.totalorder %s31, %s34
      %p43 = scmp.eq.s32.totalorder %s26, 1
      %p44 = por %p42, %p43
      %p45 = scmp.ne.s32.totalorder %s34, %s35
      %p46 = scmp.eq.s32.totalorder %s26, 0
      %p47 = por %p45, %p46
      %p48 = scmp.ne.s32.totalorder %s34, %s35
      %p49 = scmp.eq.s32.totalorder %s27, 1
      %p50 = por %p48, %p49
      %p52 = scmp.ne.s32.totalorder %s35, %s51
      %p53 = scmp.eq.s32.totalorder %s27, 0
      %p54 = por %p52, %p53
      %s55 = ssub.s32 %s21, %s28
      %p56 = scmp.eq.s32.totalorder %s55, 0
      %s58 = sadd.s32 %s57, 1
      %s59 = scalar_select %p56, %s57, %s58
      %p62 = pneg %p56
      %p63 = scmp.eq.s32.totalorder %s21, 1
      %p64 = por %p62, %p63
      %p65 = scmp.ne.s32.totalorder %s57, %s60
      %p66 = scmp.eq.s32.totalorder %s21, 0
      %p67 = por %p65, %p66
      %p68 = scmp.ne.s32.totalorder %s57, %s60
      %p69 = scmp.eq.s32.totalorder %s26, 1
      %p70 = por %p68, %p69
      %p71 = scmp.ne.s32.totalorder %s60, %s61
      %p72 = scmp.eq.s32.totalorder %s26, 0
      %p73 = por %p71, %p72
      %p74 = scmp.ne.s32.totalorder %s60, %s61
      %p75 = scmp.eq.s32.totalorder %s27, 1
      %p76 = por %p74, %p75
      %p78 = scmp.ne.s32.totalorder %s61, %s77
      %p79 = scmp.eq.s32.totalorder %s27, 0
      %p80 = por %p78, %p79
      %s82 = sadd.s32 %s81, 1
      %p85 = scmp.eq.s32.totalorder %s21, 1
      %p86 = scmp.ne.s32.totalorder %s81, %s83
      %p87 = scmp.eq.s32.totalorder %s21, 0
      %p88 = por %p86, %p87
      %p89 = scmp.ne.s32.totalorder %s81, %s83
      %p90 = scmp.eq.s32.totalorder %s26, 1
      %p91 = por %p89, %p90
      %p92 = scmp.ne.s32.totalorder %s83, %s84
      %p93 = scmp.eq.s32.totalorder %s26, 0
      %p94 = por %p92, %p93
      %p95 = scmp.ne.s32.totalorder %s83, %s84
      %p96 = scmp.eq.s32.totalorder %s27, 1
      %p97 = por %p95, %p96
      %p99 = scmp.ne.s32.totalorder %s84, %s98
      %p100 = scmp.eq.s32.totalorder %s27, 0
      %p101 = por %p99, %p100
      %s103 = sadd.s32 %s102, 1
      %p106 = scmp.eq.s32.totalorder %s21, 1
      %p107 = scmp.ne.s32.totalorder %s102, %s104
      %p108 = scmp.eq.s32.totalorder %s21, 0
      %p109 = por %p107, %p108
      %p110 = scmp.ne.s32.totalorder %s102, %s104
      %p111 = scmp.eq.s32.totalorder %s26, 1
      %p112 = por %p110, %p111
      %p113 = scmp.ne.s32.totalorder %s104, %s105
      %p114 = scmp.eq.s32.totalorder %s26, 0
      %p115 = por %p113, %p114
      %p116 = scmp.ne.s32.totalorder %s104, %s105
      %p117 = scmp.eq.s32.totalorder %s27, 1
      %p118 = por %p116, %p117
      %p120 = scmp.ne.s32.totalorder %s105, %s119
      %p121 = scmp.eq.s32.totalorder %s27, 0
      %p122 = por %p120, %p121
      %s124 = sadd.s32 %s123, 1
      %p127 = scmp.eq.s32.totalorder %s21, 1
      %p128 = scmp.ne.s32.totalorder %s123, %s125
      %p129 = scmp.eq.s32.totalorder %s21, 0
      %p130 = por %p128, %p129
      %p131 = scmp.ne.s32.totalorder %s123, %s125
      %p132 = scmp.eq.s32.totalorder %s26, 1
      %p133 = por %p131, %p132
      %p134 = scmp.ne.s32.totalorder %s125, %s126
      %p135 = scmp.eq.s32.totalorder %s26, 0
      %p136 = por %p134, %p135
      %p137 = scmp.ne.s32.totalorder %s125, %s126
      %p138 = scmp.eq.s32.totalorder %s27, 1
      %p139 = por %p137, %p138
      %p141 = scmp.ne.s32.totalorder %s126, %s140
      %p142 = scmp.eq.s32.totalorder %s27, 0
      %p143 = por %p141, %p142
      %s144 = ssub.s32 %s21, %s28
      %p145 = scmp.eq.s32.totalorder %s144, 0
      %s147 = sadd.s32 %s146, 1
      %s148 = scalar_select %p145, %s146, %s147
      %p151 = pneg %p145
      %p152 = scmp.eq.s32.totalorder %s21, 1
      %p153 = por %p151, %p152
      %p154 = scmp.ne.s32.totalorder %s146, %s149
      %p155 = scmp.eq.s32.totalorder %s21, 0
      %p156 = por %p154, %p155
      %p157 = scmp.ne.s32.totalorder %s146, %s149
      %p158 = scmp.eq.s32.totalorder %s26, 1
      %p159 = por %p157, %p158
      %p160 = scmp.ne.s32.totalorder %s149, %s150
      %p161 = scmp.eq.s32.totalorder %s26, 0
      %p162 = por %p160, %p161
      %p163 = scmp.ne.s32.totalorder %s149, %s150
      %p164 = scmp.eq.s32.totalorder %s27, 1
      %p165 = por %p163, %p164
      %p167 = scmp.ne.s32.totalorder %s150, %s166
      %p168 = scmp.eq.s32.totalorder %s27, 0
      %p169 = por %p167, %p168
      %p170 = scmp.le.s32.totalorder 1, %s21
      %p171 = scmp.lt.s32.totalorder %s21, 3
      %p172 = pnand %p170, %p171
      %p173 = pneg %p172
      // Predicated region
      $region9: #{tpu_custom_call.1} parent=5 // pred_check
        _
      $region10: #{tpu_custom_call.1} parent=5 // pred_check_branch
        %175 = sbr.rel (%p172) target = $region12
      $region11: #{tpu_custom_call.1} parent=5 // pred_region
        %s176 = ssub.s32 %s21, 1
        // Predicated region
        $region13: #{tpu_custom_call.1} parent=11 // pred_check
          %p177 = pneg %p94
        $region14: #{tpu_custom_call.1} parent=11 // pred_check_branch
          %179 = sbr.rel (%p177) target = $region16
        $region15: #{tpu_custom_call.1} parent=11 // pred_region
          %s181 = ssub.s32 7680, 7680
          %182 = vsyncadd [#allocation8], %s181
          %s183 = sshll.u32 [#allocation9], 4
          %s184 = int_to_ptr.vmem [resolvable:$true] %s183
          %189 = dma.hbm_to_vmem [thread:$0]  %s2, 7680, %s184, [#allocation8], 64, 64, 4
        $region16: #{tpu_custom_call.1} parent=11 // pred_fallthru
          _
        // Predicated region
        $region17: #{tpu_custom_call.1} parent=11 // pred_check
          %p190 = pneg %p115
        $region18: #{tpu_custom_call.1} parent=11 // pred_check_branch
          %192 = sbr.rel (%p190) target = $region20
        $region19: #{tpu_custom_call.1} parent=11 // pred_region
          %s194 = ssub.s32 7680, 7680
          %195 = vsyncadd [#allocation11], %s194
          %s196 = sshll.u32 [#allocation10], 4
          %s197 = int_to_ptr.vmem [resolvable:$true] %s196
          %202 = dma.hbm_to_vmem [thread:$0]  %s3, 7680, %s197, [#allocation11], 64, 64, 4
        $region20: #{tpu_custom_call.1} parent=11 // pred_fallthru
          _
        // Predicated region
        $region21: #{tpu_custom_call.1} parent=11 // pred_check
          %p203 = pneg %p136
        $region22: #{tpu_custom_call.1} parent=11 // pred_check_branch
          %205 = sbr.rel (%p203) target = $region24
        $region23: #{tpu_custom_call.1} parent=11 // pred_region
          %s207 = ssub.s32 128, 128
          %208 = vsyncadd [#allocation11], %s207
          %s210 = sshll.u32 [#allocation12], 4
          %s211 = int_to_ptr.vmem [resolvable:$true] %s210
          %213 = dma.hbm_to_vmem [thread:$0]  %s4, 128, %s211, [#allocation11]
        $region24: #{tpu_custom_call.1} parent=11 // pred_fallthru
          _
      $region12: #{tpu_custom_call.1} parent=5 // pred_fallthru
        _
      %p214 = scmp.lt.s32.totalorder %s21, 2
      // Predicated region
      $region25: #{tpu_custom_call.1} parent=5 // pred_check
        %p215 = pneg %p214
      $region26: #{tpu_custom_call.1} parent=5 // pred_check_branch
        %217 = sbr.rel (%p215) target = $region28
      $region27: #{tpu_custom_call.1} parent=5 // pred_region
        // Predicated region
        $region29: #{tpu_custom_call.1} parent=27 // pred_check
          %p218 = pneg %p41
        $region30: #{tpu_custom_call.1} parent=27 // pred_check_branch
          %220 = sbr.rel (%p218) target = $region32
        $region31: #{tpu_custom_call.1} parent=27 // pred_region
          %s221 = sand.u32 %s31, 1
          %s222 = scalar_lea.sflag [#allocation5], %s221
          %s223 = sand.u32 %s31, 1
          %s224 = smul.addr %s223, 16
          %s225 = scalar_lea.vmem [#allocation4], %s224
          %s227 = ssub.s32 256, 256
          %228 = vsyncadd %s222, %s227
          %s229 = smul.addr %s21, 2
          %s230 = smul.addr %s229, 128
          %s231 = scalar_lea.hbm %s0, %s230
          %s232 = sshll.u32 %s225, 4
          %s233 = int_to_ptr.vmem [resolvable:$true] %s232
          %238 = dma.hbm_to_vmem [thread:$0]  %s231, 256, %s233, %s222, 128, 128, 8
        $region32: #{tpu_custom_call.1} parent=27 // pred_fallthru
          _
        // Predicated region
        $region33: #{tpu_custom_call.1} parent=27 // pred_check
          %p239 = pneg %p67
        $region34: #{tpu_custom_call.1} parent=27 // pred_check_branch
          %241 = sbr.rel (%p239) target = $region36
        $region35: #{tpu_custom_call.1} parent=27 // pred_region
          %s242 = sand.u32 %s21, 1
          %s243 = scalar_lea.sflag [#allocation8], %s242
          %s244 = sand.u32 %s57, 1
          %s245 = smul.addr %s244, 16
          %s246 = scalar_lea.vmem [#allocation7], %s245
          %s248 = ssub.s32 256, 256
          %249 = vsyncadd %s243, %s248
          %s250 = smul.addr %s21, 2
          %s251 = smul.addr %s250, 128
          %s252 = scalar_lea.hbm %s1, %s251
          %s253 = sshll.u32 %s246, 4
          %s254 = int_to_ptr.vmem [resolvable:$true] %s253
          %259 = dma.hbm_to_vmem [thread:$0]  %s252, 256, %s254, %s243, 128, 128, 8
        $region36: #{tpu_custom_call.1} parent=27 // pred_fallthru
          _
      $region28: #{tpu_custom_call.1} parent=5 // pred_fallthru
        _
      %p260 = scmp.le.s32.totalorder 1, %s21
      %p261 = scmp.lt.s32.totalorder %s21, 3
      %p262 = pnand %p260, %p261
      %p263 = pneg %p262
      // Predicated region
      $region37: #{tpu_custom_call.1} parent=5 // pred_check
        _
      $region38: #{tpu_custom_call.1} parent=5 // pred_check_branch
        %265 = sbr.rel (%p262) target = $region40
      $region39: #{tpu_custom_call.1} parent=5 // pred_region
        %s266 = ssub.s32 %s21, 1
        %s267 = sand.u32 %s34, 1
        %s268 = scalar_lea.sflag [#allocation5], %s267
        %s269 = sand.u32 %s34, 1
        %s270 = smul.addr %s269, 16
        %s271 = scalar_lea.vmem [#allocation4], %s270
        // Predicated region
        $region41: #{tpu_custom_call.1} parent=39 // pred_check
          %p272 = pneg %p47
        $region42: #{tpu_custom_call.1} parent=39 // pred_check_branch
          %274 = sbr.rel (%p272) target = $region44
        $region43: #{tpu_custom_call.1} parent=39 // pred_region
          %275 = dma.done %s268, 256
        $region44: #{tpu_custom_call.1} parent=39 // pred_fallthru
          _
        %s276 = sand.u32 %s26, 1
        %s277 = scalar_lea.sflag [#allocation8], %s276
        %s278 = sand.u32 %s60, 1
        %s279 = smul.addr %s278, 16
        %s280 = scalar_lea.vmem [#allocation7], %s279
        // Predicated region
        $region45: #{tpu_custom_call.1} parent=39 // pred_check
          %p281 = pneg %p73
        $region46: #{tpu_custom_call.1} parent=39 // pred_check_branch
          %283 = sbr.rel (%p281) target = $region48
        $region47: #{tpu_custom_call.1} parent=39 // pred_region
          %284 = dma.done %s277, 256
        $region48: #{tpu_custom_call.1} parent=39 // pred_fallthru
          _
        // Predicated region
        $region49: #{tpu_custom_call.1} parent=39 // pred_check
          %p285 = pneg %p94
        $region50: #{tpu_custom_call.1} parent=39 // pred_check_branch
          %287 = sbr.rel (%p285) target = $region52
        $region51: #{tpu_custom_call.1} parent=39 // pred_region
          %288 = dma.done [#allocation8], 7680
        $region52: #{tpu_custom_call.1} parent=39 // pred_fallthru
          _
        // Predicated region
        $region53: #{tpu_custom_call.1} parent=39 // pred_check
          %p289 = pneg %p115
        $region54: #{tpu_custom_call.1} parent=39 // pred_check_branch
          %291 = sbr.rel (%p289) target = $region56
        $region55: #{tpu_custom_call.1} parent=39 // pred_region
          %292 = dma.done [#allocation11], 7680
        $region56: #{tpu_custom_call.1} parent=39 // pred_fallthru
          _
        // Predicated region
        $region57: #{tpu_custom_call.1} parent=39 // pred_check
          %p293 = pneg %p136
        $region58: #{tpu_custom_call.1} parent=39 // pred_check_branch
          %295 = sbr.rel (%p293) target = $region60
        $region59: #{tpu_custom_call.1} parent=39 // pred_region
          %296 = dma.done [#allocation11], 128
        $region60: #{tpu_custom_call.1} parent=39 // pred_fallthru
          _
        %s297 = sand.u32 %s34, 1
        %s298 = scalar_lea.sflag [#allocation5], %s297
        %s299 = sand.u32 %s34, 1
        %s300 = smul.addr %s299, 16
        %s301 = scalar_lea.vmem [#allocation4], %s300
        %p302 = pneg %p47
        %p303 = pneg %p44
        %s304 = sand.u32 %s26, 1
        %s305 = scalar_lea.sflag [#allocation8], %s304
        %s306 = sand.u32 %s60, 1
        %s307 = smul.addr %s306, 16
        %s308 = scalar_lea.vmem [#allocation7], %s307
        %p309 = pneg %p73
        %p310 = pneg %p70
        %p311 = pneg %p94
        %p312 = pneg %p91
        %p313 = pneg %p115
        %p314 = pneg %p112
        %p315 = pneg %p136
        %p316 = pneg %p133
        %p317 = pneg %p162
        %p318 = pneg %p159
        %s319 = sand.u32 %s149, 1
        %s320 = scalar_lea.sflag [#allocation6], %s319
        %s321 = sand.u32 %s149, 1
        %s322 = smul.addr %s321, 16
        %s323 = scalar_lea.vmem [#allocation13], %s322
        %vm325 = vcmask 523264
        %326 = vst.msk [vmem:[#allocation2] sm:$0xff] %vm325, 0.0
        %327 = vst.msk [vmem:[#allocation2 + $0x8] sm:$0xff] %vm325, 0.0
        %vm328 = vcmask 519168
        %329 = vst.msk [vmem:[#allocation2 + $0x10] sm:$0xf] %vm328, 0.0
        %330 = vst.msk [vmem:[#allocation3] sm:$0xff] %vm325, 0.0
        %331 = vst.msk [vmem:[#allocation3 + $0x8] sm:$0xff] %vm325, 0.0
        %vm332 = vcmask 517120
        %333 = vst.msk [vmem:[#allocation3 + $0x10] sm:$0x3] %vm332, 0.0
        %v334 = vld [vmem:[%s271] sm:$0xff]
        %v335 = vld [vmem:[%s271 + $0x8] sm:$0xff]
        %v336 = vld [vmem:[%s280] sm:$0xff]
        %v337 = vld [vmem:[%s280 + $0x8] sm:$0xff]
        %v338 = vxor.u32 %v334, 2147483648
        %v339 = vxor.u32 %v335, 2147483648
        %v340 = vmul.f32 %v338, 1.442695
        %v341 = vpow.pop %v340
        %v342 = vmul.f32 %v339, 1.442695
        %v343 = vpow.pop %v342
        %v344 = vadd.f32 %v341, 1.0
        %v345 = vadd.f32 %v343, 1.0
        %v346 = vrcp.pop %v344
        %v347 = vmul.f32 1.0, %v346
        %v348 = vrcp.pop %v345
        %v349 = vmul.f32 1.0, %v348
        %v350 = vmul.f32 %v334, %v347
        %v351 = vmul.f32 %v335, %v349
        %352 = vst.msk [vmem:[#allocation2 + $0x2] sm:$0xff] %vm325, %v350
        %353 = vst.msk [vmem:[#allocation2 + $0xa] sm:$0xff] %vm325, %v351
        %v354 = vld [vmem:[#allocation2] sm:$0xff]
        %v355 = vld [vmem:[#allocation2 + $0x8] sm:$0xff]
        %v356 = vpack.c.bf16 %v355, %v354
        %v357 = vld [vmem:[#allocation9] sm:$0xf]
        %v358 = vld [vmem:[#allocation9 + $0x4] sm:$0xf]
        %v359 = vld [vmem:[#allocation9 + $0x8] sm:$0xf]
        %v360 = vld [vmem:[#allocation9 + $0xc] sm:$0xf]
        %v361 = vld [vmem:[#allocation9 + $0x10] sm:$0xf]
        %v362 = vld [vmem:[#allocation9 + $0x14] sm:$0xf]
        %v363 = vld [vmem:[#allocation9 + $0x18] sm:$0xf]
        %v364 = vld [vmem:[#allocation9 + $0x1c] sm:$0xf]
        %v365 = vld [vmem:[#allocation2 + $0x1] sm:$0xff]
        %v366 = vld [vmem:[#allocation2 + $0x9] sm:$0xff]
        %v367 = vpack.c.bf16 %v366, %v365
        %s368 = scalar_lea.vmem [#allocation9], 32
        %v369 = vld [vmem:[%s368] sm:$0xf]
        %v370 = vld [vmem:[%s368 + $0x4] sm:$0xf]
        %v371 = vld [vmem:[%s368 + $0x8] sm:$0xf]
        %v372 = vld [vmem:[%s368 + $0xc] sm:$0xf]
        %v373 = vld [vmem:[%s368 + $0x10] sm:$0xf]
        %v374 = vld [vmem:[%s368 + $0x14] sm:$0xf]
        %v375 = vld [vmem:[%s368 + $0x18] sm:$0xf]
        %v376 = vld [vmem:[%s368 + $0x1c] sm:$0xf]
        %v385 = vunpack.c.l.b16 %v369
        %v386 = vunpack.c.l.b16 %v370
        %v387 = vunpack.c.l.b16 %v371
        %v388 = vunpack.c.l.b16 %v372
        %v389 = vunpack.c.l.b16 %v373
        %v390 = vunpack.c.l.b16 %v374
        %v391 = vunpack.c.l.b16 %v375
        %v392 = vunpack.c.l.b16 %v376
        %v393 = vpack.c.b16 %v386, %v385
        %v394 = vpack.c.b16 %v388, %v387
        %v395 = vpack.c.b16 %v390, %v389
        %v396 = vpack.c.b16 %v392, %v391
        %v402 = vsel %vm325, %v367, 0
        %404 = vmatprep.subr.bf16.mxu0 0
        %405 = vmatpush1.bf16.msra.mxu0 0
        %406 = vmatprep.subr.bf16.mxu0 0
        %407 = vmatpush1.bf16.msra.mxu0 0
        %408 = vmatprep.subr.bf16.mxu0 0
        %409 = vmatpush1.bf16.msra.mxu0 0
        %410 = vmatprep.subr.bf16.mxu0 0
        %411 = vmatpush1.bf16.msra.mxu0 0
        %412 = vmatprep.subr.bf16.mxu0 0
        %413 = vmatpush1.bf16.msra.mxu0 %v396
        %414 = vmatprep.subr.bf16.mxu0 0
        %415 = vmatpush1.bf16.msra.mxu0 %v395
        %416 = vmatprep.subr.bf16.mxu0 0
        %417 = vmatpush1.bf16.msra.mxu0 %v394
        %418 = vmatprep.subr.bf16.mxu0 0
        %419 = vmatpush1.bf16.msra.mxu0 %v393
        %420 = vmatprep.subr.bf16.mxu0 0
        %421 = vmatpush2.bf16.msra.mxu0 0
        %422 = vmatprep.subr.bf16.mxu0 0
        %423 = vmatpush2.bf16.msra.mxu0 0
        %424 = vmatprep.subr.bf16.mxu0 0
        %425 = vmatpush2.bf16.msra.mxu0 0
        %426 = vmatprep.subr.bf16.mxu0 0
        %427 = vmatpush2.bf16.msra.mxu0 0
        %428 = vmatprep.subr.bf16.mxu0 0
        %429 = vmatpush2.bf16.msra.mxu0 0
        %430 = vmatprep.subr.bf16.mxu0 0
        %431 = vmatpush2.bf16.msra.mxu0 0
        %432 = vmatprep.subr.bf16.mxu0 0
        %433 = vmatpush2.bf16.msra.mxu0 0
        %434 = vmatprep.subr.bf16.mxu0 0
        %435 = vmatpush2.bf16.msra.mxu0 0
        %436 = vmatprep.mubr.bf16.mxu0 0
        %437 = vmatmul.mubr.bf16.gmra.mxu0 %v402
        %v438 = vpop.f32.mrf.mxu0
        %v439 = vadd.f32 0.0, %v438
        %v440 = vpop.f32.mrf.mxu0
        %v441 = vpop.f32.mrf.mxu0
        %v442 = vadd.f32 0.0, %v441
        %v443 = vpop.f32.mrf.mxu0
        %444 = vdwg.mxu0
        %v453 = vunpack.c.l.b16 %v357
        %v454 = vunpack.c.l.b16 %v358
        %v455 = vunpack.c.l.b16 %v359
        %v456 = vunpack.c.l.b16 %v360
        %v457 = vunpack.c.l.b16 %v361
        %v458 = vunpack.c.l.b16 %v362
        %v459 = vunpack.c.l.b16 %v363
        %v460 = vunpack.c.l.b16 %v364
        %v461 = vpack.c.b16 %v454, %v453
        %v462 = vpack.c.b16 %v456, %v455
        %v463 = vpack.c.b16 %v458, %v457
        %v464 = vpack.c.b16 %v460, %v459
        %v470 = vsel %vm325, %v356, 0
        %472 = vmatprep.subr.bf16.mxu0 0
        %473 = vmatpush1.bf16.msra.mxu0 0
        %474 = vmatprep.subr.bf16.mxu0 0
        %475 = vmatpush1.bf16.msra.mxu0 0
        %476 = vmatprep.subr.bf16.mxu0 0
        %477 = vmatpush1.bf16.msra.mxu0 0
        %478 = vmatprep.subr.bf16.mxu0 0
        %479 = vmatpush1.bf16.msra.mxu0 0
        %480 = vmatprep.subr.bf16.mxu0 0
        %481 = vmatpush1.bf16.msra.mxu0 %v464
        %482 = vmatprep.subr.bf16.mxu0 0
        %483 = vmatpush1.bf16.msra.mxu0 %v463
        %484 = vmatprep.subr.bf16.mxu0 0
        %485 = vmatpush1.bf16.msra.mxu0 %v462
        %486 = vmatprep.subr.bf16.mxu0 0
        %487 = vmatpush1.bf16.msra.mxu0 %v461
        %488 = vmatprep.subr.bf16.mxu0 0
        %489 = vmatpush2.bf16.msra.mxu0 0
        %490 = vmatprep.subr.bf16.mxu0 0
        %491 = vmatpush2.bf16.msra.mxu0 0
        %492 = vmatprep.subr.bf16.mxu0 0
        %493 = vmatpush2.bf16.msra.mxu0 0
        %494 = vmatprep.subr.bf16.mxu0 0
        %495 = vmatpush2.bf16.msra.mxu0 0
        %496 = vmatprep.subr.bf16.mxu0 0
        %497 = vmatpush2.bf16.msra.mxu0 0
        %498 = vmatprep.subr.bf16.mxu0 0
        %499 = vmatpush2.bf16.msra.mxu0 0
        %500 = vmatprep.subr.bf16.mxu0 0
        %501 = vmatpush2.bf16.msra.mxu0 0
        %502 = vmatprep.subr.bf16.mxu0 0
        %503 = vmatpush2.bf16.msra.mxu0 0
        %504 = vmatprep.mubr.bf16.mxu0 0
        %505 = vmatmul.mubr.bf16.gmra.mxu0 %v470
        %v506 = vpop.f32.mrf.mxu0
        %v507 = vadd.f32 %v439, %v506
        %v508 = vpop.f32.mrf.mxu0
        %v509 = vpop.f32.mrf.mxu0
        %v510 = vadd.f32 %v442, %v509
        %v511 = vpop.f32.mrf.mxu0
        %512 = vdwg.mxu0
        %v513 = vld [vmem:[#allocation2 + $0x2] sm:$0xff]
        %v514 = vld [vmem:[#allocation2 + $0xa] sm:$0xff]
        %v515 = vpack.c.bf16 %v514, %v513
        %s516 = scalar_lea.vmem [#allocation9], 64
        %v517 = vld [vmem:[%s516] sm:$0xf]
        %v518 = vld [vmem:[%s516 + $0x4] sm:$0xf]
        %v519 = vld [vmem:[%s516 + $0x8] sm:$0xf]
        %v520 = vld [vmem:[%s516 + $0xc] sm:$0xf]
        %v521 = vld [vmem:[%s516 + $0x10] sm:$0xf]
        %v522 = vld [vmem:[%s516 + $0x14] sm:$0xf]
        %v523 = vld [vmem:[%s516 + $0x18] sm:$0xf]
        %v524 = vld [vmem:[%s516 + $0x1c] sm:$0xf]
        %v533 = vunpack.c.l.b16 %v517
        %v534 = vunpack.c.l.b16 %v518
        %v535 = vunpack.c.l.b16 %v519
        %v536 = vunpack.c.l.b16 %v520
        %v537 = vunpack.c.l.b16 %v521
        %v538 = vunpack.c.l.b16 %v522
        %v539 = vunpack.c.l.b16 %v523
        %v540 = vunpack.c.l.b16 %v524
        %v541 = vpack.c.b16 %v534, %v533
        %v542 = vpack.c.b16 %v536, %v535
        %v543 = vpack.c.b16 %v538, %v537
        %v544 = vpack.c.b16 %v540, %v539
        %v550 = vsel %vm325, %v515, 0
        %552 = vmatprep.subr.bf16.mxu0 0
        %553 = vmatpush1.bf16.msra.mxu0 0
        %554 = vmatprep.subr.bf16.mxu0 0
        %555 = vmatpush1.bf16.msra.mxu0 0
        %556 = vmatprep.subr.bf16.mxu0 0
        %557 = vmatpush1.bf16.msra.mxu0 0
        %558 = vmatprep.subr.bf16.mxu0 0
        %559 = vmatpush1.bf16.msra.mxu0 0
        %560 = vmatprep.subr.bf16.mxu0 0
        %561 = vmatpush1.bf16.msra.mxu0 %v544
        %562 = vmatprep.subr.bf16.mxu0 0
        %563 = vmatpush1.bf16.msra.mxu0 %v543
        %564 = vmatprep.subr.bf16.mxu0 0
        %565 = vmatpush1.bf16.msra.mxu0 %v542
        %566 = vmatprep.subr.bf16.mxu0 0
        %567 = vmatpush1.bf16.msra.mxu0 %v541
        %568 = vmatprep.subr.bf16.mxu0 0
        %569 = vmatpush2.bf16.msra.mxu0 0
        %570 = vmatprep.subr.bf16.mxu0 0
        %571 = vmatpush2.bf16.msra.mxu0 0
        %572 = vmatprep.subr.bf16.mxu0 0
        %573 = vmatpush2.bf16.msra.mxu0 0
        %574 = vmatprep.subr.bf16.mxu0 0
        %575 = vmatpush2.bf16.msra.mxu0 0
        %576 = vmatprep.subr.bf16.mxu0 0
        %577 = vmatpush2.bf16.msra.mxu0 0
        %578 = vmatprep.subr.bf16.mxu0 0
        %579 = vmatpush2.bf16.msra.mxu0 0
        %580 = vmatprep.subr.bf16.mxu0 0
        %581 = vmatpush2.bf16.msra.mxu0 0
        %582 = vmatprep.subr.bf16.mxu0 0
        %583 = vmatpush2.bf16.msra.mxu0 0
        %584 = vmatprep.mubr.bf16.mxu0 0
        %585 = vmatmul.mubr.bf16.gmra.mxu0 %v550
        %v586 = vpop.f32.mrf.mxu0
        %v587 = vadd.f32 0.0, %v586
        %v588 = vpop.f32.mrf.mxu0
        %v589 = vpop.f32.mrf.mxu0
        %v590 = vadd.f32 0.0, %v589
        %v591 = vpop.f32.mrf.mxu0
        %592 = vdwg.mxu0
        %v593 = vadd.f32 %v507, %v587
        %v594 = vadd.f32 %v510, %v590
        %v595 = vld [vmem:[#allocation2 + $0x3] sm:$0xff]
        %v596 = vld [vmem:[#allocation2 + $0xb] sm:$0xff]
        %v597 = vpack.c.bf16 %v596, %v595
        %s598 = scalar_lea.vmem [#allocation9], 96
        %v599 = vld [vmem:[%s598] sm:$0xf]
        %v600 = vld [vmem:[%s598 + $0x4] sm:$0xf]
        %v601 = vld [vmem:[%s598 + $0x8] sm:$0xf]
        %v602 = vld [vmem:[%s598 + $0xc] sm:$0xf]
        %v603 = vld [vmem:[%s598 + $0x10] sm:$0xf]
        %v604 = vld [vmem:[%s598 + $0x14] sm:$0xf]
        %v605 = vld [vmem:[%s598 + $0x18] sm:$0xf]
        %v606 = vld [vmem:[%s598 + $0x1c] sm:$0xf]
        %v615 = vunpack.c.l.b16 %v599
        %v616 = vunpack.c.l.b16 %v600
        %v617 = vunpack.c.l.b16 %v601
        %v618 = vunpack.c.l.b16 %v602
        %v619 = vunpack.c.l.b16 %v603
        %v620 = vunpack.c.l.b16 %v604
        %v621 = vunpack.c.l.b16 %v605
        %v622 = vunpack.c.l.b16 %v606
        %v623 = vpack.c.b16 %v616, %v615
        %v624 = vpack.c.b16 %v618, %v617
        %v625 = vpack.c.b16 %v620, %v619
        %v626 = vpack.c.b16 %v622, %v621
        %v632 = vsel %vm325, %v597, 0
        %634 = vmatprep.subr.bf16.mxu0 0
        %635 = vmatpush1.bf16.msra.mxu0 0
        %636 = vmatprep.subr.bf16.mxu0 0
        %637 = vmatpush1.bf16.msra.mxu0 0
        %638 = vmatprep.subr.bf16.mxu0 0
        %639 = vmatpush1.bf16.msra.mxu0 0
        %640 = vmatprep.subr.bf16.mxu0 0
        %641 = vmatpush1.bf16.msra.mxu0 0
        %642 = vmatprep.subr.bf16.mxu0 0
        %643 = vmatpush1.bf16.msra.mxu0 %v626
        %644 = vmatprep.subr.bf16.mxu0 0
        %645 = vmatpush1.bf16.msra.mxu0 %v625
        %646 = vmatprep.subr.bf16.mxu0 0
        %647 = vmatpush1.bf16.msra.mxu0 %v624
        %648 = vmatprep.subr.bf16.mxu0 0
        %649 = vmatpush1.bf16.msra.mxu0 %v623
        %650 = vmatprep.subr.bf16.mxu0 0
        %651 = vmatpush2.bf16.msra.mxu0 0
        %652 = vmatprep.subr.bf16.mxu0 0
        %653 = vmatpush2.bf16.msra.mxu0 0
        %654 = vmatprep.subr.bf16.mxu0 0
        %655 = vmatpush2.bf16.msra.mxu0 0
        %656 = vmatprep.subr.bf16.mxu0 0
        %657 = vmatpush2.bf16.msra.mxu0 0
        %658 = vmatprep.subr.bf16.mxu0 0
        %659 = vmatpush2.bf16.msra.mxu0 0
        %660 = vmatprep.subr.bf16.mxu0 0
        %661 = vmatpush2.bf16.msra.mxu0 0
        %662 = vmatprep.subr.bf16.mxu0 0
        %663 = vmatpush2.bf16.msra.mxu0 0
        %664 = vmatprep.subr.bf16.mxu0 0
        %665 = vmatpush2.bf16.msra.mxu0 0
        %666 = vmatprep.mubr.bf16.mxu0 0
        %667 = vmatmul.mubr.bf16.gmra.mxu0 %v632
        %v668 = vpop.f32.mrf.mxu0
        %v669 = vadd.f32 0.0, %v668
        %v670 = vpop.f32.mrf.mxu0
        %v671 = vpop.f32.mrf.mxu0
        %v672 = vadd.f32 0.0, %v671
        %v673 = vpop.f32.mrf.mxu0
        %674 = vdwg.mxu0
        %v675 = vadd.f32 %v593, %v669
        %v676 = vadd.f32 %v594, %v672
        %v677 = vld [vmem:[#allocation2 + $0x4] sm:$0xff]
        %v678 = vld [vmem:[#allocation2 + $0xc] sm:$0xff]
        %v679 = vpack.c.bf16 %v678, %v677
        %s680 = scalar_lea.vmem [#allocation9], 128
        %v681 = vld [vmem:[%s680] sm:$0xf]
        %v682 = vld [vmem:[%s680 + $0x4] sm:$0xf]
        %v683 = vld [vmem:[%s680 + $0x8] sm:$0xf]
        %v684 = vld [vmem:[%s680 + $0xc] sm:$0xf]
        %v685 = vld [vmem:[%s680 + $0x10] sm:$0xf]
        %v686 = vld [vmem:[%s680 + $0x14] sm:$0xf]
        %v687 = vld [vmem:[%s680 + $0x18] sm:$0xf]
        %v688 = vld [vmem:[%s680 + $0x1c] sm:$0xf]
        %v697 = vunpack.c.l.b16 %v681
        %v698 = vunpack.c.l.b16 %v682
        %v699 = vunpack.c.l.b16 %v683
        %v700 = vunpack.c.l.b16 %v684
        %v701 = vunpack.c.l.b16 %v685
        %v702 = vunpack.c.l.b16 %v686
        %v703 = vunpack.c.l.b16 %v687
        %v704 = vunpack.c.l.b16 %v688
        %v705 = vpack.c.b16 %v698, %v697
        %v706 = vpack.c.b16 %v700, %v699
        %v707 = vpack.c.b16 %v702, %v701
        %v708 = vpack.c.b16 %v704, %v703
        %v714 = vsel %vm325, %v679, 0
        %716 = vmatprep.subr.bf16.mxu0 0
        %717 = vmatpush1.bf16.msra.mxu0 0
        %718 = vmatprep.subr.bf16.mxu0 0
        %719 = vmatpush1.bf16.msra.mxu0 0
        %720 = vmatprep.subr.bf16.mxu0 0
        %721 = vmatpush1.bf16.msra.mxu0 0
        %722 = vmatprep.subr.bf16.mxu0 0
        %723 = vmatpush1.bf16.msra.mxu0 0
        %724 = vmatprep.subr.bf16.mxu0 0
        %725 = vmatpush1.bf16.msra.mxu0 %v708
        %726 = vmatprep.subr.bf16.mxu0 0
        %727 = vmatpush1.bf16.msra.mxu0 %v707
        %728 = vmatprep.subr.bf16.mxu0 0
        %729 = vmatpush1.bf16.msra.mxu0 %v706
        %730 = vmatprep.subr.bf16.mxu0 0
        %731 = vmatpush1.bf16.msra.mxu0 %v705
        %732 = vmatprep.subr.bf16.mxu0 0
        %733 = vmatpush2.bf16.msra.mxu0 0
        %734 = vmatprep.subr.bf16.mxu0 0
        %735 = vmatpush2.bf16.msra.mxu0 0
        %736 = vmatprep.subr.bf16.mxu0 0
        %737 = vmatpush2.bf16.msra.mxu0 0
        %738 = vmatprep.subr.bf16.mxu0 0
        %739 = vmatpush2.bf16.msra.mxu0 0
        %740 = vmatprep.subr.bf16.mxu0 0
        %741 = vmatpush2.bf16.msra.mxu0 0
        %742 = vmatprep.subr.bf16.mxu0 0
        %743 = vmatpush2.bf16.msra.mxu0 0
        %744 = vmatprep.subr.bf16.mxu0 0
        %745 = vmatpush2.bf16.msra.mxu0 0
        %746 = vmatprep.subr.bf16.mxu0 0
        %747 = vmatpush2.bf16.msra.mxu0 0
        %748 = vmatprep.mubr.bf16.mxu0 0
        %749 = vmatmul.mubr.bf16.gmra.mxu0 %v714
        %v750 = vpop.f32.mrf.mxu0
        %v751 = vadd.f32 0.0, %v750
        %v752 = vpop.f32.mrf.mxu0
        %v753 = vpop.f32.mrf.mxu0
        %v754 = vadd.f32 0.0, %v753
        %v755 = vpop.f32.mrf.mxu0
        %756 = vdwg.mxu0
        %v757 = vadd.f32 %v675, %v751
        %v758 = vadd.f32 %v676, %v754
        %v759 = vld [vmem:[#allocation12] sm:$0x1]
        %v760 = vlaneseq
        %v761 = vshrl.u32 %v760, 7
        %v762 = vsub.s32 0, %v761
        %v763 = vrot.slane %v759, %v762
        %v764 = vadd.f32 %v757, %v763
        %v765 = vadd.f32 %v758, %v763
        %v766 = vxor.u32 %v336, 2147483648
        %v767 = vxor.u32 %v337, 2147483648
        %v768 = vmul.f32 %v766, 1.442695
        %v769 = vpow.pop %v768
        %v770 = vmul.f32 %v767, 1.442695
        %v771 = vpow.pop %v770
        %v772 = vadd.f32 %v769, 1.0
        %v773 = vadd.f32 %v771, 1.0
        %v774 = vrcp.pop %v772
        %v775 = vmul.f32 1.0, %v774
        %v776 = vrcp.pop %v773
        %v777 = vmul.f32 1.0, %v776
        %v778 = vmul.f32 %v336, %v775
        %v779 = vmul.f32 %v337, %v777
        %780 = vst.msk [vmem:[#allocation2 + $0x2] sm:$0xff] %vm325, %v778
        %781 = vst.msk [vmem:[#allocation2 + $0xa] sm:$0xff] %vm325, %v779
        %v782 = vld [vmem:[#allocation2] sm:$0xff]
        %v783 = vld [vmem:[#allocation2 + $0x8] sm:$0xff]
        %v784 = vpack.c.bf16 %v783, %v782
        %s785 = scalar_lea.vmem [#allocation9], 160
        %v786 = vld [vmem:[%s785] sm:$0xf]
        %v787 = vld [vmem:[%s785 + $0x4] sm:$0xf]
        %v788 = vld [vmem:[%s785 + $0x8] sm:$0xf]
        %v789 = vld [vmem:[%s785 + $0xc] sm:$0xf]
        %v790 = vld [vmem:[%s785 + $0x10] sm:$0xf]
        %v791 = vld [vmem:[%s785 + $0x14] sm:$0xf]
        %v792 = vld [vmem:[%s785 + $0x18] sm:$0xf]
        %v793 = vld [vmem:[%s785 + $0x1c] sm:$0xf]
        %v794 = vld [vmem:[#allocation2 + $0x1] sm:$0xff]
        %v795 = vld [vmem:[#allocation2 + $0x9] sm:$0xff]
        %v796 = vpack.c.bf16 %v795, %v794
        %s797 = scalar_lea.vmem [#allocation9], 192
        %v798 = vld [vmem:[%s797] sm:$0xf]
        %v799 = vld [vmem:[%s797 + $0x4] sm:$0xf]
        %v800 = vld [vmem:[%s797 + $0x8] sm:$0xf]
        %v801 = vld [vmem:[%s797 + $0xc] sm:$0xf]
        %v802 = vld [vmem:[%s797 + $0x10] sm:$0xf]
        %v803 = vld [vmem:[%s797 + $0x14] sm:$0xf]
        %v804 = vld [vmem:[%s797 + $0x18] sm:$0xf]
        %v805 = vld [vmem:[%s797 + $0x1c] sm:$0xf]
        %v814 = vunpack.c.l.b16 %v798
        %v815 = vunpack.c.l.b16 %v799
        %v816 = vunpack.c.l.b16 %v800
        %v817 = vunpack.c.l.b16 %v801
        %v818 = vunpack.c.l.b16 %v802
        %v819 = vunpack.c.l.b16 %v803
        %v820 = vunpack.c.l.b16 %v804
        %v821 = vunpack.c.l.b16 %v805
        %v822 = vpack.c.b16 %v815, %v814
        %v823 = vpack.c.b16 %v817, %v816
        %v824 = vpack.c.b16 %v819, %v818
        %v825 = vpack.c.b16 %v821, %v820
        %v831 = vsel %vm325, %v796, 0
        %833 = vmatprep.subr.bf16.mxu0 0
        %834 = vmatpush1.bf16.msra.mxu0 0
        %835 = vmatprep.subr.bf16.mxu0 0
        %836 = vmatpush1.bf16.msra.mxu0 0
        %837 = vmatprep.subr.bf16.mxu0 0
        %838 = vmatpush1.bf16.msra.mxu0 0
        %839 = vmatprep.subr.bf16.mxu0 0
        %840 = vmatpush1.bf16.msra.mxu0 0
        %841 = vmatprep.subr.bf16.mxu0 0
        %842 = vmatpush1.bf16.msra.mxu0 %v825
        %843 = vmatprep.subr.bf16.mxu0 0
        %844 = vmatpush1.bf16.msra.mxu0 %v824
        %845 = vmatprep.subr.bf16.mxu0 0
        %846 = vmatpush1.bf16.msra.mxu0 %v823
        %847 = vmatprep.subr.bf16.mxu0 0
        %848 = vmatpush1.bf16.msra.mxu0 %v822
        %849 = vmatprep.subr.bf16.mxu0 0
        %850 = vmatpush2.bf16.msra.mxu0 0
        %851 = vmatprep.subr.bf16.mxu0 0
        %852 = vmatpush2.bf16.msra.mxu0 0
        %853 = vmatprep.subr.bf16.mxu0 0
        %854 = vmatpush2.bf16.msra.mxu0 0
        %855 = vmatprep.subr.bf16.mxu0 0
        %856 = vmatpush2.bf16.msra.mxu0 0
        %857 = vmatprep.subr.bf16.mxu0 0
        %858 = vmatpush2.bf16.msra.mxu0 0
        %859 = vmatprep.subr.bf16.mxu0 0
        %860 = vmatpush2.bf16.msra.mxu0 0
        %861 = vmatprep.subr.bf16.mxu0 0
        %862 = vmatpush2.bf16.msra.mxu0 0
        %863 = vmatprep.subr.bf16.mxu0 0
        %864 = vmatpush2.bf16.msra.mxu0 0
        %865 = vmatprep.mubr.bf16.mxu0 0
        %866 = vmatmul.mubr.bf16.gmra.mxu0 %v831
        %v867 = vpop.f32.mrf.mxu0
        %v868 = vadd.f32 0.0, %v867
        %v869 = vpop.f32.mrf.mxu0
        %v870 = vpop.f32.mrf.mxu0
        %v871 = vadd.f32 0.0, %v870
        %v872 = vpop.f32.mrf.mxu0
        %873 = vdwg.mxu0
        %v882 = vunpack.c.l.b16 %v786
        %v883 = vunpack.c.l.b16 %v787
        %v884 = vunpack.c.l.b16 %v788
        %v885 = vunpack.c.l.b16 %v789
        %v886 = vunpack.c.l.b16 %v790
        %v887 = vunpack.c.l.b16 %v791
        %v888 = vunpack.c.l.b16 %v792
        %v889 = vunpack.c.l.b16 %v793
        %v890 = vpack.c.b16 %v883, %v882
        %v891 = vpack.c.b16 %v885, %v884
        %v892 = vpack.c.b16 %v887, %v886
        %v893 = vpack.c.b16 %v889, %v888
        %v899 = vsel %vm325, %v784, 0
        %901 = vmatprep.subr.bf16.mxu0 0
        %902 = vmatpush1.bf16.msra.mxu0 0
        %903 = vmatprep.subr.bf16.mxu0 0
        %904 = vmatpush1.bf16.msra.mxu0 0
        %905 = vmatprep.subr.bf16.mxu0 0
        %906 = vmatpush1.bf16.msra.mxu0 0
        %907 = vmatprep.subr.bf16.mxu0 0
        %908 = vmatpush1.bf16.msra.mxu0 0
        %909 = vmatprep.subr.bf16.mxu0 0
        %910 = vmatpush1.bf16.msra.mxu0 %v893
        %911 = vmatprep.subr.bf16.mxu0 0
        %912 = vmatpush1.bf16.msra.mxu0 %v892
        %913 = vmatprep.subr.bf16.mxu0 0
        %914 = vmatpush1.bf16.msra.mxu0 %v891
        %915 = vmatprep.subr.bf16.mxu0 0
        %916 = vmatpush1.bf16.msra.mxu0 %v890
        %917 = vmatprep.subr.bf16.mxu0 0
        %918 = vmatpush2.bf16.msra.mxu0 0
        %919 = vmatprep.subr.bf16.mxu0 0
        %920 = vmatpush2.bf16.msra.mxu0 0
        %921 = vmatprep.subr.bf16.mxu0 0
        %922 = vmatpush2.bf16.msra.mxu0 0
        %923 = vmatprep.subr.bf16.mxu0 0
        %924 = vmatpush2.bf16.msra.mxu0 0
        %925 = vmatprep.subr.bf16.mxu0 0
        %926 = vmatpush2.bf16.msra.mxu0 0
        %927 = vmatprep.subr.bf16.mxu0 0
        %928 = vmatpush2.bf16.msra.mxu0 0
        %929 = vmatprep.subr.bf16.mxu0 0
        %930 = vmatpush2.bf16.msra.mxu0 0
        %931 = vmatprep.subr.bf16.mxu0 0
        %932 = vmatpush2.bf16.msra.mxu0 0
        %933 = vmatprep.mubr.bf16.mxu0 0
        %934 = vmatmul.mubr.bf16.gmra.mxu0 %v899
        %v935 = vpop.f32.mrf.mxu0
        %v936 = vadd.f32 %v868, %v935
        %v937 = vpop.f32.mrf.mxu0
        %v938 = vpop.f32.mrf.mxu0
        %v939 = vadd.f32 %v871, %v938
        %v940 = vpop.f32.mrf.mxu0
        %941 = vdwg.mxu0
        %v942 = vld [vmem:[#allocation2 + $0x2] sm:$0xff]
        %v943 = vld [vmem:[#allocation2 + $0xa] sm:$0xff]
        %v944 = vpack.c.bf16 %v943, %v942
        %s945 = scalar_lea.vmem [#allocation9], 224
        %v946 = vld [vmem:[%s945] sm:$0xf]
        %v947 = vld [vmem:[%s945 + $0x4] sm:$0xf]
        %v948 = vld [vmem:[%s945 + $0x8] sm:$0xf]
        %v949 = vld [vmem:[%s945 + $0xc] sm:$0xf]
        %v950 = vld [vmem:[%s945 + $0x10] sm:$0xf]
        %v951 = vld [vmem:[%s945 + $0x14] sm:$0xf]
        %v952 = vld [vmem:[%s945 + $0x18] sm:$0xf]
        %v953 = vld [vmem:[%s945 + $0x1c] sm:$0xf]
        %v962 = vunpack.c.l.b16 %v946
        %v963 = vunpack.c.l.b16 %v947
        %v964 = vunpack.c.l.b16 %v948
        %v965 = vunpack.c.l.b16 %v949
        %v966 = vunpack.c.l.b16 %v950
        %v967 = vunpack.c.l.b16 %v951
        %v968 = vunpack.c.l.b16 %v952
        %v969 = vunpack.c.l.b16 %v953
        %v970 = vpack.c.b16 %v963, %v962
        %v971 = vpack.c.b16 %v965, %v964
        %v972 = vpack.c.b16 %v967, %v966
        %v973 = vpack.c.b16 %v969, %v968
        %v979 = vsel %vm325, %v944, 0
        %981 = vmatprep.subr.bf16.mxu0 0
        %982 = vmatpush1.bf16.msra.mxu0 0
        %983 = vmatprep.subr.bf16.mxu0 0
        %984 = vmatpush1.bf16.msra.mxu0 0
        %985 = vmatprep.subr.bf16.mxu0 0
        %986 = vmatpush1.bf16.msra.mxu0 0
        %987 = vmatprep.subr.bf16.mxu0 0
        %988 = vmatpush1.bf16.msra.mxu0 0
        %989 = vmatprep.subr.bf16.mxu0 0
        %990 = vmatpush1.bf16.msra.mxu0 %v973
        %991 = vmatprep.subr.bf16.mxu0 0
        %992 = vmatpush1.bf16.msra.mxu0 %v972
        %993 = vmatprep.subr.bf16.mxu0 0
        %994 = vmatpush1.bf16.msra.mxu0 %v971
        %995 = vmatprep.subr.bf16.mxu0 0
        %996 = vmatpush1.bf16.msra.mxu0 %v970
        %997 = vmatprep.subr.bf16.mxu0 0
        %998 = vmatpush2.bf16.msra.mxu0 0
        %999 = vmatprep.subr.bf16.mxu0 0
        %1000 = vmatpush2.bf16.msra.mxu0 0
        %1001 = vmatprep.subr.bf16.mxu0 0
        %1002 = vmatpush2.bf16.msra.mxu0 0
        %1003 = vmatprep.subr.bf16.mxu0 0
        %1004 = vmatpush2.bf16.msra.mxu0 0
        %1005 = vmatprep.subr.bf16.mxu0 0
        %1006 = vmatpush2.bf16.msra.mxu0 0
        %1007 = vmatprep.subr.bf16.mxu0 0
        %1008 = vmatpush2.bf16.msra.mxu0 0
        %1009 = vmatprep.subr.bf16.mxu0 0
        %1010 = vmatpush2.bf16.msra.mxu0 0
        %1011 = vmatprep.subr.bf16.mxu0 0
        %1012 = vmatpush2.bf16.msra.mxu0 0
        %1013 = vmatprep.mubr.bf16.mxu0 0
        %1014 = vmatmul.mubr.bf16.gmra.mxu0 %v979
        %v1015 = vpop.f32.mrf.mxu0
        %v1016 = vadd.f32 0.0, %v1015
        %v1017 = vpop.f32.mrf.mxu0
        %v1018 = vpop.f32.mrf.mxu0
        %v1019 = vadd.f32 0.0, %v1018
        %v1020 = vpop.f32.mrf.mxu0
        %1021 = vdwg.mxu0
        %v1022 = vadd.f32 %v936, %v1016
        %v1023 = vadd.f32 %v939, %v1019
        %v1024 = vld [vmem:[#allocation2 + $0x3] sm:$0xff]
        %v1025 = vld [vmem:[#allocation2 + $0xb] sm:$0xff]
        %v1026 = vpack.c.bf16 %v1025, %v1024
        %s1027 = scalar_lea.vmem [#allocation9], 256
        %v1028 = vld [vmem:[%s1027] sm:$0xf]
        %v1029 = vld [vmem:[%s1027 + $0x4] sm:$0xf]
        %v1030 = vld [vmem:[%s1027 + $0x8] sm:$0xf]
        %v1031 = vld [vmem:[%s1027 + $0xc] sm:$0xf]
        %v1032 = vld [vmem:[%s1027 + $0x10] sm:$0xf]
        %v1033 = vld [vmem:[%s1027 + $0x14] sm:$0xf]
        %v1034 = vld [vmem:[%s1027 + $0x18] sm:$0xf]
        %v1035 = vld [vmem:[%s1027 + $0x1c] sm:$0xf]
        %v1044 = vunpack.c.l.b16 %v1028
        %v1045 = vunpack.c.l.b16 %v1029
        %v1046 = vunpack.c.l.b16 %v1030
        %v1047 = vunpack.c.l.b16 %v1031
        %v1048 = vunpack.c.l.b16 %v1032
        %v1049 = vunpack.c.l.b16 %v1033
        %v1050 = vunpack.c.l.b16 %v1034
        %v1051 = vunpack.c.l.b16 %v1035
        %v1052 = vpack.c.b16 %v1045, %v1044
        %v1053 = vpack.c.b16 %v1047, %v1046
        %v1054 = vpack.c.b16 %v1049, %v1048
        %v1055 = vpack.c.b16 %v1051, %v1050
        %v1061 = vsel %vm325, %v1026, 0
        %1063 = vmatprep.subr.bf16.mxu0 0
        %1064 = vmatpush1.bf16.msra.mxu0 0
        %1065 = vmatprep.subr.bf16.mxu0 0
        %1066 = vmatpush1.bf16.msra.mxu0 0
        %1067 = vmatprep.subr.bf16.mxu0 0
        %1068 = vmatpush1.bf16.msra.mxu0 0
        %1069 = vmatprep.subr.bf16.mxu0 0
        %1070 = vmatpush1.bf16.msra.mxu0 0
        %1071 = vmatprep.subr.bf16.mxu0 0
        %1072 = vmatpush1.bf16.msra.mxu0 %v1055
        %1073 = vmatprep.subr.bf16.mxu0 0
        %1074 = vmatpush1.bf16.msra.mxu0 %v1054
        %1075 = vmatprep.subr.bf16.mxu0 0
        %1076 = vmatpush1.bf16.msra.mxu0 %v1053
        %1077 = vmatprep.subr.bf16.mxu0 0
        %1078 = vmatpush1.bf16.msra.mxu0 %v1052
        %1079 = vmatprep.subr.bf16.mxu0 0
        %1080 = vmatpush2.bf16.msra.mxu0 0
        %1081 = vmatprep.subr.bf16.mxu0 0
        %1082 = vmatpush2.bf16.msra.mxu0 0
        %1083 = vmatprep.subr.bf16.mxu0 0
        %1084 = vmatpush2.bf16.msra.mxu0 0
        %1085 = vmatprep.subr.bf16.mxu0 0
        %1086 = vmatpush2.bf16.msra.mxu0 0
        %1087 = vmatprep.subr.bf16.mxu0 0
        %1088 = vmatpush2.bf16.msra.mxu0 0
        %1089 = vmatprep.subr.bf16.mxu0 0
        %1090 = vmatpush2.bf16.msra.mxu0 0
        %1091 = vmatprep.subr.bf16.mxu0 0
        %1092 = vmatpush2.bf16.msra.mxu0 0
        %1093 = vmatprep.subr.bf16.mxu0 0
        %1094 = vmatpush2.bf16.msra.mxu0 0
        %1095 = vmatprep.mubr.bf16.mxu0 0
        %1096 = vmatmul.mubr.bf16.gmra.mxu0 %v1061
        %v1097 = vpop.f32.mrf.mxu0
        %v1098 = vadd.f32 0.0, %v1097
        %v1099 = vpop.f32.mrf.mxu0
        %v1100 = vpop.f32.mrf.mxu0
        %v1101 = vadd.f32 0.0, %v1100
        %v1102 = vpop.f32.mrf.mxu0
        %1103 = vdwg.mxu0
        %v1104 = vadd.f32 %v1022, %v1098
        %v1105 = vadd.f32 %v1023, %v1101
        %v1106 = vld [vmem:[#allocation2 + $0x4] sm:$0xff]
        %v1107 = vld [vmem:[#allocation2 + $0xc] sm:$0xff]
        %v1108 = vpack.c.bf16 %v1107, %v1106
        %s1109 = scalar_lea.vmem [#allocation9], 288
        %v1110 = vld [vmem:[%s1109] sm:$0xf]
        %v1111 = vld [vmem:[%s1109 + $0x4] sm:$0xf]
        %v1112 = vld [vmem:[%s1109 + $0x8] sm:$0xf]
        %v1113 = vld [vmem:[%s1109 + $0xc] sm:$0xf]
        %v1114 = vld [vmem:[%s1109 + $0x10] sm:$0xf]
        %v1115 = vld [vmem:[%s1109 + $0x14] sm:$0xf]
        %v1116 = vld [vmem:[%s1109 + $0x18] sm:$0xf]
        %v1117 = vld [vmem:[%s1109 + $0x1c] sm:$0xf]
        %v1126 = vunpack.c.l.b16 %v1110
        %v1127 = vunpack.c.l.b16 %v1111
        %v1128 = vunpack.c.l.b16 %v1112
        %v1129 = vunpack.c.l.b16 %v1113
        %v1130 = vunpack.c.l.b16 %v1114
        %v1131 = vunpack.c.l.b16 %v1115
        %v1132 = vunpack.c.l.b16 %v1116
        %v1133 = vunpack.c.l.b16 %v1117
        %v1134 = vpack.c.b16 %v1127, %v1126
        %v1135 = vpack.c.b16 %v1129, %v1128
        %v1136 = vpack.c.b16 %v1131, %v1130
        %v1137 = vpack.c.b16 %v1133, %v1132
        %v1143 = vsel %vm325, %v1108, 0
        %1145 = vmatprep.subr.bf16.mxu0 0
        %1146 = vmatpush1.bf16.msra.mxu0 0
        %1147 = vmatprep.subr.bf16.mxu0 0
        %1148 = vmatpush1.bf16.msra.mxu0 0
        %1149 = vmatprep.subr.bf16.mxu0 0
        %1150 = vmatpush1.bf16.msra.mxu0 0
        %1151 = vmatprep.subr.bf16.mxu0 0
        %1152 = vmatpush1.bf16.msra.mxu0 0
        %1153 = vmatprep.subr.bf16.mxu0 0
        %1154 = vmatpush1.bf16.msra.mxu0 %v1137
        %1155 = vmatprep.subr.bf16.mxu0 0
        %1156 = vmatpush1.bf16.msra.mxu0 %v1136
        %1157 = vmatprep.subr.bf16.mxu0 0
        %1158 = vmatpush1.bf16.msra.mxu0 %v1135
        %1159 = vmatprep.subr.bf16.mxu0 0
        %1160 = vmatpush1.bf16.msra.mxu0 %v1134
        %1161 = vmatprep.subr.bf16.mxu0 0
        %1162 = vmatpush2.bf16.msra.mxu0 0
        %1163 = vmatprep.subr.bf16.mxu0 0
        %1164 = vmatpush2.bf16.msra.mxu0 0
        %1165 = vmatprep.subr.bf16.mxu0 0
        %1166 = vmatpush2.bf16.msra.mxu0 0
        %1167 = vmatprep.subr.bf16.mxu0 0
        %1168 = vmatpush2.bf16.msra.mxu0 0
        %1169 = vmatprep.subr.bf16.mxu0 0
        %1170 = vmatpush2.bf16.msra.mxu0 0
        %1171 = vmatprep.subr.bf16.mxu0 0
        %1172 = vmatpush2.bf16.msra.mxu0 0
        %1173 = vmatprep.subr.bf16.mxu0 0
        %1174 = vmatpush2.bf16.msra.mxu0 0
        %1175 = vmatprep.subr.bf16.mxu0 0
        %1176 = vmatpush2.bf16.msra.mxu0 0
        %1177 = vmatprep.mubr.bf16.mxu0 0
        %1178 = vmatmul.mubr.bf16.gmra.mxu0 %v1143
        %v1179 = vpop.f32.mrf.mxu0
        %v1180 = vadd.f32 0.0, %v1179
        %v1181 = vpop.f32.mrf.mxu0
        %v1182 = vpop.f32.mrf.mxu0
        %v1183 = vadd.f32 0.0, %v1182
        %v1184 = vpop.f32.mrf.mxu0
        %1185 = vdwg.mxu0
        %v1186 = vadd.f32 %v1104, %v1180
        %v1187 = vadd.f32 %v1105, %v1183
        %v1188 = vld [vmem:[#allocation12 + $0x1] sm:$0x1]
        %v1189 = vlaneseq
        %v1190 = vshrl.u32 %v1189, 7
        %v1191 = vsub.s32 0, %v1190
        %v1192 = vrot.slane %v1188, %v1191
        %v1193 = vadd.f32 %v1186, %v1192
        %v1194 = vadd.f32 %v1187, %v1192
        %v1195 = vmax.f32 %v1193, 0.0
        %v1196 = vmax.f32 %v1194, 0.0
        %1197 = vst.msk [vmem:[#allocation2 + $0x2] sm:$0xff] %vm325, %v1195
        %1198 = vst.msk [vmem:[#allocation2 + $0xa] sm:$0xff] %vm325, %v1196
        %v1199 = vld [vmem:[#allocation2] sm:$0xff]
        %v1200 = vld [vmem:[#allocation2 + $0x8] sm:$0xff]
        %v1201 = vpack.c.bf16 %v1200, %v1199
        %s1202 = scalar_lea.vmem [#allocation9], 320
        %v1203 = vld [vmem:[%s1202] sm:$0xf]
        %v1204 = vld [vmem:[%s1202 + $0x4] sm:$0xf]
        %v1205 = vld [vmem:[%s1202 + $0x8] sm:$0xf]
        %v1206 = vld [vmem:[%s1202 + $0xc] sm:$0xf]
        %v1207 = vld [vmem:[%s1202 + $0x10] sm:$0xf]
        %v1208 = vld [vmem:[%s1202 + $0x14] sm:$0xf]
        %v1209 = vld [vmem:[%s1202 + $0x18] sm:$0xf]
        %v1210 = vld [vmem:[%s1202 + $0x1c] sm:$0xf]
        %v1211 = vld [vmem:[#allocation2 + $0x1] sm:$0xff]
        %v1212 = vld [vmem:[#allocation2 + $0x9] sm:$0xff]
        %v1213 = vpack.c.bf16 %v1212, %v1211
        %s1214 = scalar_lea.vmem [#allocation9], 352
        %v1215 = vld [vmem:[%s1214] sm:$0xf]
        %v1216 = vld [vmem:[%s1214 + $0x4] sm:$0xf]
        %v1217 = vld [vmem:[%s1214 + $0x8] sm:$0xf]
        %v1218 = vld [vmem:[%s1214 + $0xc] sm:$0xf]
        %v1219 = vld [vmem:[%s1214 + $0x10] sm:$0xf]
        %v1220 = vld [vmem:[%s1214 + $0x14] sm:$0xf]
        %v1221 = vld [vmem:[%s1214 + $0x18] sm:$0xf]
        %v1222 = vld [vmem:[%s1214 + $0x1c] sm:$0xf]
        %v1231 = vunpack.c.l.b16 %v1215
        %v1232 = vunpack.c.l.b16 %v1216
        %v1233 = vunpack.c.l.b16 %v1217
        %v1234 = vunpack.c.l.b16 %v1218
        %v1235 = vunpack.c.l.b16 %v1219
        %v1236 = vunpack.c.l.b16 %v1220
        %v1237 = vunpack.c.l.b16 %v1221
        %v1238 = vunpack.c.l.b16 %v1222
        %v1239 = vpack.c.b16 %v1232, %v1231
        %v1240 = vpack.c.b16 %v1234, %v1233
        %v1241 = vpack.c.b16 %v1236, %v1235
        %v1242 = vpack.c.b16 %v1238, %v1237
        %v1248 = vsel %vm325, %v1213, 0
        %1250 = vmatprep.subr.bf16.mxu0 0
        %1251 = vmatpush1.bf16.msra.mxu0 0
        %1252 = vmatprep.subr.bf16.mxu0 0
        %1253 = vmatpush1.bf16.msra.mxu0 0
        %1254 = vmatprep.subr.bf16.mxu0 0
        %1255 = vmatpush1.bf16.msra.mxu0 0
        %1256 = vmatprep.subr.bf16.mxu0 0
        %1257 = vmatpush1.bf16.msra.mxu0 0
        %1258 = vmatprep.subr.bf16.mxu0 0
        %1259 = vmatpush1.bf16.msra.mxu0 %v1242
        %1260 = vmatprep.subr.bf16.mxu0 0
        %1261 = vmatpush1.bf16.msra.mxu0 %v1241
        %1262 = vmatprep.subr.bf16.mxu0 0
        %1263 = vmatpush1.bf16.msra.mxu0 %v1240
        %1264 = vmatprep.subr.bf16.mxu0 0
        %1265 = vmatpush1.bf16.msra.mxu0 %v1239
        %1266 = vmatprep.subr.bf16.mxu0 0
        %1267 = vmatpush2.bf16.msra.mxu0 0
        %1268 = vmatprep.subr.bf16.mxu0 0
        %1269 = vmatpush2.bf16.msra.mxu0 0
        %1270 = vmatprep.subr.bf16.mxu0 0
        %1271 = vmatpush2.bf16.msra.mxu0 0
        %1272 = vmatprep.subr.bf16.mxu0 0
        %1273 = vmatpush2.bf16.msra.mxu0 0
        %1274 = vmatprep.subr.bf16.mxu0 0
        %1275 = vmatpush2.bf16.msra.mxu0 0
        %1276 = vmatprep.subr.bf16.mxu0 0
        %1277 = vmatpush2.bf16.msra.mxu0 0
        %1278 = vmatprep.subr.bf16.mxu0 0
        %1279 = vmatpush2.bf16.msra.mxu0 0
        %1280 = vmatprep.subr.bf16.mxu0 0
        %1281 = vmatpush2.bf16.msra.mxu0 0
        %1282 = vmatprep.mubr.bf16.mxu0 0
        %1283 = vmatmul.mubr.bf16.gmra.mxu0 %v1248
        %v1284 = vpop.f32.mrf.mxu0
        %v1285 = vadd.f32 0.0, %v1284
        %v1286 = vpop.f32.mrf.mxu0
        %v1287 = vpop.f32.mrf.mxu0
        %v1288 = vadd.f32 0.0, %v1287
        %v1289 = vpop.f32.mrf.mxu0
        %1290 = vdwg.mxu0
        %v1299 = vunpack.c.l.b16 %v1203
        %v1300 = vunpack.c.l.b16 %v1204
        %v1301 = vunpack.c.l.b16 %v1205
        %v1302 = vunpack.c.l.b16 %v1206
        %v1303 = vunpack.c.l.b16 %v1207
        %v1304 = vunpack.c.l.b16 %v1208
        %v1305 = vunpack.c.l.b16 %v1209
        %v1306 = vunpack.c.l.b16 %v1210
        %v1307 = vpack.c.b16 %v1300, %v1299
        %v1308 = vpack.c.b16 %v1302, %v1301
        %v1309 = vpack.c.b16 %v1304, %v1303
        %v1310 = vpack.c.b16 %v1306, %v1305
        %v1316 = vsel %vm325, %v1201, 0
        %1318 = vmatprep.subr.bf16.mxu0 0
        %1319 = vmatpush1.bf16.msra.mxu0 0
        %1320 = vmatprep.subr.bf16.mxu0 0
        %1321 = vmatpush1.bf16.msra.mxu0 0
        %1322 = vmatprep.subr.bf16.mxu0 0
        %1323 = vmatpush1.bf16.msra.mxu0 0
        %1324 = vmatprep.subr.bf16.mxu0 0
        %1325 = vmatpush1.bf16.msra.mxu0 0
        %1326 = vmatprep.subr.bf16.mxu0 0
        %1327 = vmatpush1.bf16.msra.mxu0 %v1310
        %1328 = vmatprep.subr.bf16.mxu0 0
        %1329 = vmatpush1.bf16.msra.mxu0 %v1309
        %1330 = vmatprep.subr.bf16.mxu0 0
        %1331 = vmatpush1.bf16.msra.mxu0 %v1308
        %1332 = vmatprep.subr.bf16.mxu0 0
        %1333 = vmatpush1.bf16.msra.mxu0 %v1307
        %1334 = vmatprep.subr.bf16.mxu0 0
        %1335 = vmatpush2.bf16.msra.mxu0 0
        %1336 = vmatprep.subr.bf16.mxu0 0
        %1337 = vmatpush2.bf16.msra.mxu0 0
        %1338 = vmatprep.subr.bf16.mxu0 0
        %1339 = vmatpush2.bf16.msra.mxu0 0
        %1340 = vmatprep.subr.bf16.mxu0 0
        %1341 = vmatpush2.bf16.msra.mxu0 0
        %1342 = vmatprep.subr.bf16.mxu0 0
        %1343 = vmatpush2.bf16.msra.mxu0 0
        %1344 = vmatprep.subr.bf16.mxu0 0
        %1345 = vmatpush2.bf16.msra.mxu0 0
        %1346 = vmatprep.subr.bf16.mxu0 0
        %1347 = vmatpush2.bf16.msra.mxu0 0
        %1348 = vmatprep.subr.bf16.mxu0 0
        %1349 = vmatpush2.bf16.msra.mxu0 0
        %1350 = vmatprep.mubr.bf16.mxu0 0
        %1351 = vmatmul.mubr.bf16.gmra.mxu0 %v1316
        %v1352 = vpop.f32.mrf.mxu0
        %v1353 = vadd.f32 %v1285, %v1352
        %v1354 = vpop.f32.mrf.mxu0
        %v1355 = vpop.f32.mrf.mxu0
        %v1356 = vadd.f32 %v1288, %v1355
        %v1357 = vpop.f32.mrf.mxu0
        %1358 = vdwg.mxu0
        %v1359 = vld [vmem:[#allocation2 + $0x2] sm:$0xff]
        %v1360 = vld [vmem:[#allocation2 + $0xa] sm:$0xff]
        %v1361 = vpack.c.bf16 %v1360, %v1359
        %s1362 = scalar_lea.vmem [#allocation9], 384
        %v1363 = vld [vmem:[%s1362] sm:$0xf]
        %v1364 = vld [vmem:[%s1362 + $0x4] sm:$0xf]
        %v1365 = vld [vmem:[%s1362 + $0x8] sm:$0xf]
        %v1366 = vld [vmem:[%s1362 + $0xc] sm:$0xf]
        %v1367 = vld [vmem:[%s1362 + $0x10] sm:$0xf]
        %v1368 = vld [vmem:[%s1362 + $0x14] sm:$0xf]
        %v1369 = vld [vmem:[%s1362 + $0x18] sm:$0xf]
        %v1370 = vld [vmem:[%s1362 + $0x1c] sm:$0xf]
        %v1379 = vunpack.c.l.b16 %v1363
        %v1380 = vunpack.c.l.b16 %v1364
        %v1381 = vunpack.c.l.b16 %v1365
        %v1382 = vunpack.c.l.b16 %v1366
        %v1383 = vunpack.c.l.b16 %v1367
        %v1384 = vunpack.c.l.b16 %v1368
        %v1385 = vunpack.c.l.b16 %v1369
        %v1386 = vunpack.c.l.b16 %v1370
        %v1387 = vpack.c.b16 %v1380, %v1379
        %v1388 = vpack.c.b16 %v1382, %v1381
        %v1389 = vpack.c.b16 %v1384, %v1383
        %v1390 = vpack.c.b16 %v1386, %v1385
        %v1396 = vsel %vm325, %v1361, 0
        %1398 = vmatprep.subr.bf16.mxu0 0
        %1399 = vmatpush1.bf16.msra.mxu0 0
        %1400 = vmatprep.subr.bf16.mxu0 0
        %1401 = vmatpush1.bf16.msra.mxu0 0
        %1402 = vmatprep.subr.bf16.mxu0 0
        %1403 = vmatpush1.bf16.msra.mxu0 0
        %1404 = vmatprep.subr.bf16.mxu0 0
        %1405 = vmatpush1.bf16.msra.mxu0 0
        %1406 = vmatprep.subr.bf16.mxu0 0
        %1407 = vmatpush1.bf16.msra.mxu0 %v1390
        %1408 = vmatprep.subr.bf16.mxu0 0
        %1409 = vmatpush1.bf16.msra.mxu0 %v1389
        %1410 = vmatprep.subr.bf16.mxu0 0
        %1411 = vmatpush1.bf16.msra.mxu0 %v1388
        %1412 = vmatprep.subr.bf16.mxu0 0
        %1413 = vmatpush1.bf16.msra.mxu0 %v1387
        %1414 = vmatprep.subr.bf16.mxu0 0
        %1415 = vmatpush2.bf16.msra.mxu0 0
        %1416 = vmatprep.subr.bf16.mxu0 0
        %1417 = vmatpush2.bf16.msra.mxu0 0
        %1418 = vmatprep.subr.bf16.mxu0 0
        %1419 = vmatpush2.bf16.msra.mxu0 0
        %1420 = vmatprep.subr.bf16.mxu0 0
        %1421 = vmatpush2.bf16.msra.mxu0 0
        %1422 = vmatprep.subr.bf16.mxu0 0
        %1423 = vmatpush2.bf16.msra.mxu0 0
        %1424 = vmatprep.subr.bf16.mxu0 0
        %1425 = vmatpush2.bf16.msra.mxu0 0
        %1426 = vmatprep.subr.bf16.mxu0 0
        %1427 = vmatpush2.bf16.msra.mxu0 0
        %1428 = vmatprep.subr.bf16.mxu0 0
        %1429 = vmatpush2.bf16.msra.mxu0 0
        %1430 = vmatprep.mubr.bf16.mxu0 0
        %1431 = vmatmul.mubr.bf16.gmra.mxu0 %v1396
        %v1432 = vpop.f32.mrf.mxu0
        %v1433 = vadd.f32 0.0, %v1432
        %v1434 = vpop.f32.mrf.mxu0
        %v1435 = vpop.f32.mrf.mxu0
        %v1436 = vadd.f32 0.0, %v1435
        %v1437 = vpop.f32.mrf.mxu0
        %1438 = vdwg.mxu0
        %v1439 = vadd.f32 %v1353, %v1433
        %v1440 = vadd.f32 %v1356, %v1436
        %v1441 = vld [vmem:[#allocation2 + $0x3] sm:$0xff]
        %v1442 = vld [vmem:[#allocation2 + $0xb] sm:$0xff]
        %v1443 = vpack.c.bf16 %v1442, %v1441
        %s1444 = scalar_lea.vmem [#allocation9], 416
        %v1445 = vld [vmem:[%s1444] sm:$0xf]
        %v1446 = vld [vmem:[%s1444 + $0x4] sm:$0xf]
        %v1447 = vld [vmem:[%s1444 + $0x8] sm:$0xf]
        %v1448 = vld [vmem:[%s1444 + $0xc] sm:$0xf]
        %v1449 = vld [vmem:[%s1444 + $0x10] sm:$0xf]
        %v1450 = vld [vmem:[%s1444 + $0x14] sm:$0xf]
        %v1451 = vld [vmem:[%s1444 + $0x18] sm:$0xf]
        %v1452 = vld [vmem:[%s1444 + $0x1c] sm:$0xf]
        %v1461 = vunpack.c.l.b16 %v1445
        %v1462 = vunpack.c.l.b16 %v1446
        %v1463 = vunpack.c.l.b16 %v1447
        %v1464 = vunpack.c.l.b16 %v1448
        %v1465 = vunpack.c.l.b16 %v1449
        %v1466 = vunpack.c.l.b16 %v1450
        %v1467 = vunpack.c.l.b16 %v1451
        %v1468 = vunpack.c.l.b16 %v1452
        %v1469 = vpack.c.b16 %v1462, %v1461
        %v1470 = vpack.c.b16 %v1464, %v1463
        %v1471 = vpack.c.b16 %v1466, %v1465
        %v1472 = vpack.c.b16 %v1468, %v1467
        %v1478 = vsel %vm325, %v1443, 0
        %1480 = vmatprep.subr.bf16.mxu0 0
        %1481 = vmatpush1.bf16.msra.mxu0 0
        %1482 = vmatprep.subr.bf16.mxu0 0
        %1483 = vmatpush1.bf16.msra.mxu0 0
        %1484 = vmatprep.subr.bf16.mxu0 0
        %1485 = vmatpush1.bf16.msra.mxu0 0
        %1486 = vmatprep.subr.bf16.mxu0 0
        %1487 = vmatpush1.bf16.msra.mxu0 0
        %1488 = vmatprep.subr.bf16.mxu0 0
        %1489 = vmatpush1.bf16.msra.mxu0 %v1472
        %1490 = vmatprep.subr.bf16.mxu0 0
        %1491 = vmatpush1.bf16.msra.mxu0 %v1471
        %1492 = vmatprep.subr.bf16.mxu0 0
        %1493 = vmatpush1.bf16.msra.mxu0 %v1470
        %1494 = vmatprep.subr.bf16.mxu0 0
        %1495 = vmatpush1.bf16.msra.mxu0 %v1469
        %1496 = vmatprep.subr.bf16.mxu0 0
        %1497 = vmatpush2.bf16.msra.mxu0 0
        %1498 = vmatprep.subr.bf16.mxu0 0
        %1499 = vmatpush2.bf16.msra.mxu0 0
        %1500 = vmatprep.subr.bf16.mxu0 0
        %1501 = vmatpush2.bf16.msra.mxu0 0
        %1502 = vmatprep.subr.bf16.mxu0 0
        %1503 = vmatpush2.bf16.msra.mxu0 0
        %1504 = vmatprep.subr.bf16.mxu0 0
        %1505 = vmatpush2.bf16.msra.mxu0 0
        %1506 = vmatprep.subr.bf16.mxu0 0
        %1507 = vmatpush2.bf16.msra.mxu0 0
        %1508 = vmatprep.subr.bf16.mxu0 0
        %1509 = vmatpush2.bf16.msra.mxu0 0
        %1510 = vmatprep.subr.bf16.mxu0 0
        %1511 = vmatpush2.bf16.msra.mxu0 0
        %1512 = vmatprep.mubr.bf16.mxu0 0
        %1513 = vmatmul.mubr.bf16.gmra.mxu0 %v1478
        %v1514 = vpop.f32.mrf.mxu0
        %v1515 = vadd.f32 0.0, %v1514
        %v1516 = vpop.f32.mrf.mxu0
        %v1517 = vpop.f32.mrf.mxu0
        %v1518 = vadd.f32 0.0, %v1517
        %v1519 = vpop.f32.mrf.mxu0
        %1520 = vdwg.mxu0
        %v1521 = vadd.f32 %v1439, %v1515
        %v1522 = vadd.f32 %v1440, %v1518
        %v1523 = vld [vmem:[#allocation2 + $0x4] sm:$0xff]
        %v1524 = vld [vmem:[#allocation2 + $0xc] sm:$0xff]
        %v1525 = vpack.c.bf16 %v1524, %v1523
        %s1526 = scalar_lea.vmem [#allocation9], 448
        %v1527 = vld [vmem:[%s1526] sm:$0xf]
        %v1528 = vld [vmem:[%s1526 + $0x4] sm:$0xf]
        %v1529 = vld [vmem:[%s1526 + $0x8] sm:$0xf]
        %v1530 = vld [vmem:[%s1526 + $0xc] sm:$0xf]
        %v1531 = vld [vmem:[%s1526 + $0x10] sm:$0xf]
        %v1532 = vld [vmem:[%s1526 + $0x14] sm:$0xf]
        %v1533 = vld [vmem:[%s1526 + $0x18] sm:$0xf]
        %v1534 = vld [vmem:[%s1526 + $0x1c] sm:$0xf]
        %v1543 = vunpack.c.l.b16 %v1527
        %v1544 = vunpack.c.l.b16 %v1528
        %v1545 = vunpack.c.l.b16 %v1529
        %v1546 = vunpack.c.l.b16 %v1530
        %v1547 = vunpack.c.l.b16 %v1531
        %v1548 = vunpack.c.l.b16 %v1532
        %v1549 = vunpack.c.l.b16 %v1533
        %v1550 = vunpack.c.l.b16 %v1534
        %v1551 = vpack.c.b16 %v1544, %v1543
        %v1552 = vpack.c.b16 %v1546, %v1545
        %v1553 = vpack.c.b16 %v1548, %v1547
        %v1554 = vpack.c.b16 %v1550, %v1549
        %v1560 = vsel %vm325, %v1525, 0
        %1562 = vmatprep.subr.bf16.mxu0 0
        %1563 = vmatpush1.bf16.msra.mxu0 0
        %1564 = vmatprep.subr.bf16.mxu0 0
        %1565 = vmatpush1.bf16.msra.mxu0 0
        %1566 = vmatprep.subr.bf16.mxu0 0
        %1567 = vmatpush1.bf16.msra.mxu0 0
        %1568 = vmatprep.subr.bf16.mxu0 0
        %1569 = vmatpush1.bf16.msra.mxu0 0
        %1570 = vmatprep.subr.bf16.mxu0 0
        %1571 = vmatpush1.bf16.msra.mxu0 %v1554
        %1572 = vmatprep.subr.bf16.mxu0 0
        %1573 = vmatpush1.bf16.msra.mxu0 %v1553
        %1574 = vmatprep.subr.bf16.mxu0 0
        %1575 = vmatpush1.bf16.msra.mxu0 %v1552
        %1576 = vmatprep.subr.bf16.mxu0 0
        %1577 = vmatpush1.bf16.msra.mxu0 %v1551
        %1578 = vmatprep.subr.bf16.mxu0 0
        %1579 = vmatpush2.bf16.msra.mxu0 0
        %1580 = vmatprep.subr.bf16.mxu0 0
        %1581 = vmatpush2.bf16.msra.mxu0 0
        %1582 = vmatprep.subr.bf16.mxu0 0
        %1583 = vmatpush2.bf16.msra.mxu0 0
        %1584 = vmatprep.subr.bf16.mxu0 0
        %1585 = vmatpush2.bf16.msra.mxu0 0
        %1586 = vmatprep.subr.bf16.mxu0 0
        %1587 = vmatpush2.bf16.msra.mxu0 0
        %1588 = vmatprep.subr.bf16.mxu0 0
        %1589 = vmatpush2.bf16.msra.mxu0 0
        %1590 = vmatprep.subr.bf16.mxu0 0
        %1591 = vmatpush2.bf16.msra.mxu0 0
        %1592 = vmatprep.subr.bf16.mxu0 0
        %1593 = vmatpush2.bf16.msra.mxu0 0
        %1594 = vmatprep.mubr.bf16.mxu0 0
        %1595 = vmatmul.mubr.bf16.gmra.mxu0 %v1560
        %v1596 = vpop.f32.mrf.mxu0
        %v1597 = vadd.f32 0.0, %v1596
        %v1598 = vpop.f32.mrf.mxu0
        %v1599 = vpop.f32.mrf.mxu0
        %v1600 = vadd.f32 0.0, %v1599
        %v1601 = vpop.f32.mrf.mxu0
        %1602 = vdwg.mxu0
        %v1603 = vadd.f32 %v1521, %v1597
        %v1604 = vadd.f32 %v1522, %v1600
        %v1605 = vld [vmem:[#allocation12 + $0x2] sm:$0x1]
        %v1606 = vlaneseq
        %v1607 = vshrl.u32 %v1606, 7
        %v1608 = vsub.s32 0, %v1607
        %v1609 = vrot.slane %v1605, %v1608
        %v1610 = vadd.f32 %v1603, %v1609
        %v1611 = vadd.f32 %v1604, %v1609
        %v1612 = vmax.f32 %v1610, 0.0
        %v1613 = vmax.f32 %v1611, 0.0
        %v1614 = vmul.f32 %v764, %v1612
        %v1615 = vmul.f32 %v765, %v1613
        %1616 = vst.msk [vmem:[#allocation3 + $0x1] sm:$0xff] %vm325, %v1614
        %1617 = vst.msk [vmem:[#allocation3 + $0x9] sm:$0xff] %vm325, %v1615
        %v1618 = vld [vmem:[#allocation3] sm:$0xff]
        %v1619 = vld [vmem:[#allocation3 + $0x8] sm:$0xff]
        %v1620 = vpack.c.bf16 %v1619, %v1618
        %v1621 = vld [vmem:[#allocation10] sm:$0xf]
        %v1622 = vld [vmem:[#allocation10 + $0x4] sm:$0xf]
        %v1623 = vld [vmem:[#allocation10 + $0x8] sm:$0xf]
        %v1624 = vld [vmem:[#allocation10 + $0xc] sm:$0xf]
        %v1625 = vld [vmem:[#allocation10 + $0x10] sm:$0xf]
        %v1626 = vld [vmem:[#allocation10 + $0x14] sm:$0xf]
        %v1627 = vld [vmem:[#allocation10 + $0x18] sm:$0xf]
        %v1628 = vld [vmem:[#allocation10 + $0x1c] sm:$0xf]
        %v1629 = vld [vmem:[#allocation3 + $0x1] sm:$0xff]
        %v1630 = vld [vmem:[#allocation3 + $0x9] sm:$0xff]
        %v1631 = vpack.c.bf16 %v1630, %v1629
        %s1632 = scalar_lea.vmem [#allocation10], 32
        %v1633 = vld [vmem:[%s1632] sm:$0xf]
        %v1634 = vld [vmem:[%s1632 + $0x4] sm:$0xf]
        %v1635 = vld [vmem:[%s1632 + $0x8] sm:$0xf]
        %v1636 = vld [vmem:[%s1632 + $0xc] sm:$0xf]
        %v1637 = vld [vmem:[%s1632 + $0x10] sm:$0xf]
        %v1638 = vld [vmem:[%s1632 + $0x14] sm:$0xf]
        %v1639 = vld [vmem:[%s1632 + $0x18] sm:$0xf]
        %v1640 = vld [vmem:[%s1632 + $0x1c] sm:$0xf]
        %v1649 = vunpack.c.l.b16 %v1633
        %v1650 = vunpack.c.l.b16 %v1634
        %v1651 = vunpack.c.l.b16 %v1635
        %v1652 = vunpack.c.l.b16 %v1636
        %v1653 = vunpack.c.l.b16 %v1637
        %v1654 = vunpack.c.l.b16 %v1638
        %v1655 = vunpack.c.l.b16 %v1639
        %v1656 = vunpack.c.l.b16 %v1640
        %v1657 = vpack.c.b16 %v1650, %v1649
        %v1658 = vpack.c.b16 %v1652, %v1651
        %v1659 = vpack.c.b16 %v1654, %v1653
        %v1660 = vpack.c.b16 %v1656, %v1655
        %v1666 = vsel %vm325, %v1631, 0
        %1668 = vmatprep.subr.bf16.mxu0 0
        %1669 = vmatpush1.bf16.msra.mxu0 0
        %1670 = vmatprep.subr.bf16.mxu0 0
        %1671 = vmatpush1.bf16.msra.mxu0 0
        %1672 = vmatprep.subr.bf16.mxu0 0
        %1673 = vmatpush1.bf16.msra.mxu0 0
        %1674 = vmatprep.subr.bf16.mxu0 0
        %1675 = vmatpush1.bf16.msra.mxu0 0
        %1676 = vmatprep.subr.bf16.mxu0 0
        %1677 = vmatpush1.bf16.msra.mxu0 %v1660
        %1678 = vmatprep.subr.bf16.mxu0 0
        %1679 = vmatpush1.bf16.msra.mxu0 %v1659
        %1680 = vmatprep.subr.bf16.mxu0 0
        %1681 = vmatpush1.bf16.msra.mxu0 %v1658
        %1682 = vmatprep.subr.bf16.mxu0 0
        %1683 = vmatpush1.bf16.msra.mxu0 %v1657
        %1684 = vmatprep.subr.bf16.mxu0 0
        %1685 = vmatpush2.bf16.msra.mxu0 0
        %1686 = vmatprep.subr.bf16.mxu0 0
        %1687 = vmatpush2.bf16.msra.mxu0 0
        %1688 = vmatprep.subr.bf16.mxu0 0
        %1689 = vmatpush2.bf16.msra.mxu0 0
        %1690 = vmatprep.subr.bf16.mxu0 0
        %1691 = vmatpush2.bf16.msra.mxu0 0
        %1692 = vmatprep.subr.bf16.mxu0 0
        %1693 = vmatpush2.bf16.msra.mxu0 0
        %1694 = vmatprep.subr.bf16.mxu0 0
        %1695 = vmatpush2.bf16.msra.mxu0 0
        %1696 = vmatprep.subr.bf16.mxu0 0
        %1697 = vmatpush2.bf16.msra.mxu0 0
        %1698 = vmatprep.subr.bf16.mxu0 0
        %1699 = vmatpush2.bf16.msra.mxu0 0
        %1700 = vmatprep.mubr.bf16.mxu0 0
        %1701 = vmatmul.mubr.bf16.gmra.mxu0 %v1666
        %v1702 = vpop.f32.mrf.mxu0
        %v1703 = vadd.f32 0.0, %v1702
        %v1704 = vpop.f32.mrf.mxu0
        %v1705 = vpop.f32.mrf.mxu0
        %v1706 = vadd.f32 0.0, %v1705
        %v1707 = vpop.f32.mrf.mxu0
        %1708 = vdwg.mxu0
        %v1717 = vunpack.c.l.b16 %v1621
        %v1718 = vunpack.c.l.b16 %v1622
        %v1719 = vunpack.c.l.b16 %v1623
        %v1720 = vunpack.c.l.b16 %v1624
        %v1721 = vunpack.c.l.b16 %v1625
        %v1722 = vunpack.c.l.b16 %v1626
        %v1723 = vunpack.c.l.b16 %v1627
        %v1724 = vunpack.c.l.b16 %v1628
        %v1725 = vpack.c.b16 %v1718, %v1717
        %v1726 = vpack.c.b16 %v1720, %v1719
        %v1727 = vpack.c.b16 %v1722, %v1721
        %v1728 = vpack.c.b16 %v1724, %v1723
        %v1734 = vsel %vm325, %v1620, 0
        %1736 = vmatprep.subr.bf16.mxu0 0
        %1737 = vmatpush1.bf16.msra.mxu0 0
        %1738 = vmatprep.subr.bf16.mxu0 0
        %1739 = vmatpush1.bf16.msra.mxu0 0
        %1740 = vmatprep.subr.bf16.mxu0 0
        %1741 = vmatpush1.bf16.msra.mxu0 0
        %1742 = vmatprep.subr.bf16.mxu0 0
        %1743 = vmatpush1.bf16.msra.mxu0 0
        %1744 = vmatprep.subr.bf16.mxu0 0
        %1745 = vmatpush1.bf16.msra.mxu0 %v1728
        %1746 = vmatprep.subr.bf16.mxu0 0
        %1747 = vmatpush1.bf16.msra.mxu0 %v1727
        %1748 = vmatprep.subr.bf16.mxu0 0
        %1749 = vmatpush1.bf16.msra.mxu0 %v1726
        %1750 = vmatprep.subr.bf16.mxu0 0
        %1751 = vmatpush1.bf16.msra.mxu0 %v1725
        %1752 = vmatprep.subr.bf16.mxu0 0
        %1753 = vmatpush2.bf16.msra.mxu0 0
        %1754 = vmatprep.subr.bf16.mxu0 0
        %1755 = vmatpush2.bf16.msra.mxu0 0
        %1756 = vmatprep.subr.bf16.mxu0 0
        %1757 = vmatpush2.bf16.msra.mxu0 0
        %1758 = vmatprep.subr.bf16.mxu0 0
        %1759 = vmatpush2.bf16.msra.mxu0 0
        %1760 = vmatprep.subr.bf16.mxu0 0
        %1761 = vmatpush2.bf16.msra.mxu0 0
        %1762 = vmatprep.subr.bf16.mxu0 0
        %1763 = vmatpush2.bf16.msra.mxu0 0
        %1764 = vmatprep.subr.bf16.mxu0 0
        %1765 = vmatpush2.bf16.msra.mxu0 0
        %1766 = vmatprep.subr.bf16.mxu0 0
        %1767 = vmatpush2.bf16.msra.mxu0 0
        %1768 = vmatprep.mubr.bf16.mxu0 0
        %1769 = vmatmul.mubr.bf16.gmra.mxu0 %v1734
        %v1770 = vpop.f32.mrf.mxu0
        %v1771 = vadd.f32 %v1703, %v1770
        %v1772 = vpop.f32.mrf.mxu0
        %v1773 = vpop.f32.mrf.mxu0
        %v1774 = vadd.f32 %v1706, %v1773
        %v1775 = vpop.f32.mrf.mxu0
        %1776 = vdwg.mxu0
        %v1777 = vld [vmem:[#allocation3 + $0x2] sm:$0xff]
        %v1778 = vld [vmem:[#allocation3 + $0xa] sm:$0xff]
        %v1779 = vpack.c.bf16 %v1778, %v1777
        %s1780 = scalar_lea.vmem [#allocation10], 64
        %v1781 = vld [vmem:[%s1780] sm:$0xf]
        %v1782 = vld [vmem:[%s1780 + $0x4] sm:$0xf]
        %v1783 = vld [vmem:[%s1780 + $0x8] sm:$0xf]
        %v1784 = vld [vmem:[%s1780 + $0xc] sm:$0xf]
        %v1785 = vld [vmem:[%s1780 + $0x10] sm:$0xf]
        %v1786 = vld [vmem:[%s1780 + $0x14] sm:$0xf]
        %v1787 = vld [vmem:[%s1780 + $0x18] sm:$0xf]
        %v1788 = vld [vmem:[%s1780 + $0x1c] sm:$0xf]
        %v1797 = vunpack.c.l.b16 %v1781
        %v1798 = vunpack.c.l.b16 %v1782
        %v1799 = vunpack.c.l.b16 %v1783
        %v1800 = vunpack.c.l.b16 %v1784
        %v1801 = vunpack.c.l.b16 %v1785
        %v1802 = vunpack.c.l.b16 %v1786
        %v1803 = vunpack.c.l.b16 %v1787
        %v1804 = vunpack.c.l.b16 %v1788
        %v1805 = vpack.c.b16 %v1798, %v1797
        %v1806 = vpack.c.b16 %v1800, %v1799
        %v1807 = vpack.c.b16 %v1802, %v1801
        %v1808 = vpack.c.b16 %v1804, %v1803
        %v1814 = vsel %vm325, %v1779, 0
        %1816 = vmatprep.subr.bf16.mxu0 0
        %1817 = vmatpush1.bf16.msra.mxu0 0
        %1818 = vmatprep.subr.bf16.mxu0 0
        %1819 = vmatpush1.bf16.msra.mxu0 0
        %1820 = vmatprep.subr.bf16.mxu0 0
        %1821 = vmatpush1.bf16.msra.mxu0 0
        %1822 = vmatprep.subr.bf16.mxu0 0
        %1823 = vmatpush1.bf16.msra.mxu0 0
        %1824 = vmatprep.subr.bf16.mxu0 0
        %1825 = vmatpush1.bf16.msra.mxu0 %v1808
        %1826 = vmatprep.subr.bf16.mxu0 0
        %1827 = vmatpush1.bf16.msra.mxu0 %v1807
        %1828 = vmatprep.subr.bf16.mxu0 0
        %1829 = vmatpush1.bf16.msra.mxu0 %v1806
        %1830 = vmatprep.subr.bf16.mxu0 0
        %1831 = vmatpush1.bf16.msra.mxu0 %v1805
        %1832 = vmatprep.subr.bf16.mxu0 0
        %1833 = vmatpush2.bf16.msra.mxu0 0
        %1834 = vmatprep.subr.bf16.mxu0 0
        %1835 = vmatpush2.bf16.msra.mxu0 0
        %1836 = vmatprep.subr.bf16.mxu0 0
        %1837 = vmatpush2.bf16.msra.mxu0 0
        %1838 = vmatprep.subr.bf16.mxu0 0
        %1839 = vmatpush2.bf16.msra.mxu0 0
        %1840 = vmatprep.subr.bf16.mxu0 0
        %1841 = vmatpush2.bf16.msra.mxu0 0
        %1842 = vmatprep.subr.bf16.mxu0 0
        %1843 = vmatpush2.bf16.msra.mxu0 0
        %1844 = vmatprep.subr.bf16.mxu0 0
        %1845 = vmatpush2.bf16.msra.mxu0 0
        %1846 = vmatprep.subr.bf16.mxu0 0
        %1847 = vmatpush2.bf16.msra.mxu0 0
        %1848 = vmatprep.mubr.bf16.mxu0 0
        %1849 = vmatmul.mubr.bf16.gmra.mxu0 %v1814
        %v1850 = vpop.f32.mrf.mxu0
        %v1851 = vadd.f32 0.0, %v1850
        %v1852 = vpop.f32.mrf.mxu0
        %v1853 = vpop.f32.mrf.mxu0
        %v1854 = vadd.f32 0.0, %v1853
        %v1855 = vpop.f32.mrf.mxu0
        %1856 = vdwg.mxu0
        %v1857 = vadd.f32 %v1771, %v1851
        %v1858 = vadd.f32 %v1774, %v1854
        %v1859 = vld [vmem:[#allocation12 + $0x3] sm:$0x1]
        %v1860 = vlaneseq
        %v1861 = vshrl.u32 %v1860, 7
        %v1862 = vsub.s32 0, %v1861
        %v1863 = vrot.slane %v1859, %v1862
        %v1864 = vadd.f32 %v1857, %v1863
        %v1865 = vadd.f32 %v1858, %v1863
        %v1866 = vmax.f32 %v1864, 0.0
        %v1867 = vmax.f32 %v1865, 0.0
        %1868 = vst.msk [vmem:[#allocation3 + $0x1] sm:$0xff] %vm325, %v764
        %1869 = vst.msk [vmem:[#allocation3 + $0x9] sm:$0xff] %vm325, %v765
        %v1870 = vld [vmem:[#allocation3] sm:$0xff]
        %v1871 = vld [vmem:[#allocation3 + $0x8] sm:$0xff]
        %v1872 = vpack.c.bf16 %v1871, %v1870
        %s1873 = scalar_lea.vmem [#allocation10], 96
        %v1874 = vld [vmem:[%s1873] sm:$0xf]
        %v1875 = vld [vmem:[%s1873 + $0x4] sm:$0xf]
        %v1876 = vld [vmem:[%s1873 + $0x8] sm:$0xf]
        %v1877 = vld [vmem:[%s1873 + $0xc] sm:$0xf]
        %v1878 = vld [vmem:[%s1873 + $0x10] sm:$0xf]
        %v1879 = vld [vmem:[%s1873 + $0x14] sm:$0xf]
        %v1880 = vld [vmem:[%s1873 + $0x18] sm:$0xf]
        %v1881 = vld [vmem:[%s1873 + $0x1c] sm:$0xf]
        %v1882 = vld [vmem:[#allocation3 + $0x1] sm:$0xff]
        %v1883 = vld [vmem:[#allocation3 + $0x9] sm:$0xff]
        %v1884 = vpack.c.bf16 %v1883, %v1882
        %s1885 = scalar_lea.vmem [#allocation10], 128
        %v1886 = vld [vmem:[%s1885] sm:$0xf]
        %v1887 = vld [vmem:[%s1885 + $0x4] sm:$0xf]
        %v1888 = vld [vmem:[%s1885 + $0x8] sm:$0xf]
        %v1889 = vld [vmem:[%s1885 + $0xc] sm:$0xf]
        %v1890 = vld [vmem:[%s1885 + $0x10] sm:$0xf]
        %v1891 = vld [vmem:[%s1885 + $0x14] sm:$0xf]
        %v1892 = vld [vmem:[%s1885 + $0x18] sm:$0xf]
        %v1893 = vld [vmem:[%s1885 + $0x1c] sm:$0xf]
        %v1902 = vunpack.c.l.b16 %v1886
        %v1903 = vunpack.c.l.b16 %v1887
        %v1904 = vunpack.c.l.b16 %v1888
        %v1905 = vunpack.c.l.b16 %v1889
        %v1906 = vunpack.c.l.b16 %v1890
        %v1907 = vunpack.c.l.b16 %v1891
        %v1908 = vunpack.c.l.b16 %v1892
        %v1909 = vunpack.c.l.b16 %v1893
        %v1910 = vpack.c.b16 %v1903, %v1902
        %v1911 = vpack.c.b16 %v1905, %v1904
        %v1912 = vpack.c.b16 %v1907, %v1906
        %v1913 = vpack.c.b16 %v1909, %v1908
        %v1919 = vsel %vm325, %v1884, 0
        %1921 = vmatprep.subr.bf16.mxu0 0
        %1922 = vmatpush1.bf16.msra.mxu0 0
        %1923 = vmatprep.subr.bf16.mxu0 0
        %1924 = vmatpush1.bf16.msra.mxu0 0
        %1925 = vmatprep.subr.bf16.mxu0 0
        %1926 = vmatpush1.bf16.msra.mxu0 0
        %1927 = vmatprep.subr.bf16.mxu0 0
        %1928 = vmatpush1.bf16.msra.mxu0 0
        %1929 = vmatprep.subr.bf16.mxu0 0
        %1930 = vmatpush1.bf16.msra.mxu0 %v1913
        %1931 = vmatprep.subr.bf16.mxu0 0
        %1932 = vmatpush1.bf16.msra.mxu0 %v1912
        %1933 = vmatprep.subr.bf16.mxu0 0
        %1934 = vmatpush1.bf16.msra.mxu0 %v1911
        %1935 = vmatprep.subr.bf16.mxu0 0
        %1936 = vmatpush1.bf16.msra.mxu0 %v1910
        %1937 = vmatprep.subr.bf16.mxu0 0
        %1938 = vmatpush2.bf16.msra.mxu0 0
        %1939 = vmatprep.subr.bf16.mxu0 0
        %1940 = vmatpush2.bf16.msra.mxu0 0
        %1941 = vmatprep.subr.bf16.mxu0 0
        %1942 = vmatpush2.bf16.msra.mxu0 0
        %1943 = vmatprep.subr.bf16.mxu0 0
        %1944 = vmatpush2.bf16.msra.mxu0 0
        %1945 = vmatprep.subr.bf16.mxu0 0
        %1946 = vmatpush2.bf16.msra.mxu0 0
        %1947 = vmatprep.subr.bf16.mxu0 0
        %1948 = vmatpush2.bf16.msra.mxu0 0
        %1949 = vmatprep.subr.bf16.mxu0 0
        %1950 = vmatpush2.bf16.msra.mxu0 0
        %1951 = vmatprep.subr.bf16.mxu0 0
        %1952 = vmatpush2.bf16.msra.mxu0 0
        %1953 = vmatprep.mubr.bf16.mxu0 0
        %1954 = vmatmul.mubr.bf16.gmra.mxu0 %v1919
        %v1955 = vpop.f32.mrf.mxu0
        %v1956 = vadd.f32 0.0, %v1955
        %v1957 = vpop.f32.mrf.mxu0
        %v1958 = vpop.f32.mrf.mxu0
        %v1959 = vadd.f32 0.0, %v1958
        %v1960 = vpop.f32.mrf.mxu0
        %1961 = vdwg.mxu0
        %v1970 = vunpack.c.l.b16 %v1874
        %v1971 = vunpack.c.l.b16 %v1875
        %v1972 = vunpack.c.l.b16 %v1876
        %v1973 = vunpack.c.l.b16 %v1877
        %v1974 = vunpack.c.l.b16 %v1878
        %v1975 = vunpack.c.l.b16 %v1879
        %v1976 = vunpack.c.l.b16 %v1880
        %v1977 = vunpack.c.l.b16 %v1881
        %v1978 = vpack.c.b16 %v1971, %v1970
        %v1979 = vpack.c.b16 %v1973, %v1972
        %v1980 = vpack.c.b16 %v1975, %v1974
        %v1981 = vpack.c.b16 %v1977, %v1976
        %v1987 = vsel %vm325, %v1872, 0
        %1989 = vmatprep.subr.bf16.mxu0 0
        %1990 = vmatpush1.bf16.msra.mxu0 0
        %1991 = vmatprep.subr.bf16.mxu0 0
        %1992 = vmatpush1.bf16.msra.mxu0 0
        %1993 = vmatprep.subr.bf16.mxu0 0
        %1994 = vmatpush1.bf16.msra.mxu0 0
        %1995 = vmatprep.subr.bf16.mxu0 0
        %1996 = vmatpush1.bf16.msra.mxu0 0
        %1997 = vmatprep.subr.bf16.mxu0 0
        %1998 = vmatpush1.bf16.msra.mxu0 %v1981
        %1999 = vmatprep.subr.bf16.mxu0 0
        %2000 = vmatpush1.bf16.msra.mxu0 %v1980
        %2001 = vmatprep.subr.bf16.mxu0 0
        %2002 = vmatpush1.bf16.msra.mxu0 %v1979
        %2003 = vmatprep.subr.bf16.mxu0 0
        %2004 = vmatpush1.bf16.msra.mxu0 %v1978
        %2005 = vmatprep.subr.bf16.mxu0 0
        %2006 = vmatpush2.bf16.msra.mxu0 0
        %2007 = vmatprep.subr.bf16.mxu0 0
        %2008 = vmatpush2.bf16.msra.mxu0 0
        %2009 = vmatprep.subr.bf16.mxu0 0
        %2010 = vmatpush2.bf16.msra.mxu0 0
        %2011 = vmatprep.subr.bf16.mxu0 0
        %2012 = vmatpush2.bf16.msra.mxu0 0
        %2013 = vmatprep.subr.bf16.mxu0 0
        %2014 = vmatpush2.bf16.msra.mxu0 0
        %2015 = vmatprep.subr.bf16.mxu0 0
        %2016 = vmatpush2.bf16.msra.mxu0 0
        %2017 = vmatprep.subr.bf16.mxu0 0
        %2018 = vmatpush2.bf16.msra.mxu0 0
        %2019 = vmatprep.subr.bf16.mxu0 0
        %2020 = vmatpush2.bf16.msra.mxu0 0
        %2021 = vmatprep.mubr.bf16.mxu0 0
        %2022 = vmatmul.mubr.bf16.gmra.mxu0 %v1987
        %v2023 = vpop.f32.mrf.mxu0
        %v2024 = vadd.f32 %v1956, %v2023
        %v2025 = vpop.f32.mrf.mxu0
        %v2026 = vpop.f32.mrf.mxu0
        %v2027 = vadd.f32 %v1959, %v2026
        %v2028 = vpop.f32.mrf.mxu0
        %2029 = vdwg.mxu0
        %v2030 = vld [vmem:[#allocation3 + $0x2] sm:$0xff]
        %v2031 = vld [vmem:[#allocation3 + $0xa] sm:$0xff]
        %v2032 = vpack.c.bf16 %v2031, %v2030
        %s2033 = scalar_lea.vmem [#allocation10], 160
        %v2034 = vld [vmem:[%s2033] sm:$0xf]
        %v2035 = vld [vmem:[%s2033 + $0x4] sm:$0xf]
        %v2036 = vld [vmem:[%s2033 + $0x8] sm:$0xf]
        %v2037 = vld [vmem:[%s2033 + $0xc] sm:$0xf]
        %v2038 = vld [vmem:[%s2033 + $0x10] sm:$0xf]
        %v2039 = vld [vmem:[%s2033 + $0x14] sm:$0xf]
        %v2040 = vld [vmem:[%s2033 + $0x18] sm:$0xf]
        %v2041 = vld [vmem:[%s2033 + $0x1c] sm:$0xf]
        %v2050 = vunpack.c.l.b16 %v2034
        %v2051 = vunpack.c.l.b16 %v2035
        %v2052 = vunpack.c.l.b16 %v2036
        %v2053 = vunpack.c.l.b16 %v2037
        %v2054 = vunpack.c.l.b16 %v2038
        %v2055 = vunpack.c.l.b16 %v2039
        %v2056 = vunpack.c.l.b16 %v2040
        %v2057 = vunpack.c.l.b16 %v2041
        %v2058 = vpack.c.b16 %v2051, %v2050
        %v2059 = vpack.c.b16 %v2053, %v2052
        %v2060 = vpack.c.b16 %v2055, %v2054
        %v2061 = vpack.c.b16 %v2057, %v2056
        %v2067 = vsel %vm325, %v2032, 0
        %2069 = vmatprep.subr.bf16.mxu0 0
        %2070 = vmatpush1.bf16.msra.mxu0 0
        %2071 = vmatprep.subr.bf16.mxu0 0
        %2072 = vmatpush1.bf16.msra.mxu0 0
        %2073 = vmatprep.subr.bf16.mxu0 0
        %2074 = vmatpush1.bf16.msra.mxu0 0
        %2075 = vmatprep.subr.bf16.mxu0 0
        %2076 = vmatpush1.bf16.msra.mxu0 0
        %2077 = vmatprep.subr.bf16.mxu0 0
        %2078 = vmatpush1.bf16.msra.mxu0 %v2061
        %2079 = vmatprep.subr.bf16.mxu0 0
        %2080 = vmatpush1.bf16.msra.mxu0 %v2060
        %2081 = vmatprep.subr.bf16.mxu0 0
        %2082 = vmatpush1.bf16.msra.mxu0 %v2059
        %2083 = vmatprep.subr.bf16.mxu0 0
        %2084 = vmatpush1.bf16.msra.mxu0 %v2058
        %2085 = vmatprep.subr.bf16.mxu0 0
        %2086 = vmatpush2.bf16.msra.mxu0 0
        %2087 = vmatprep.subr.bf16.mxu0 0
        %2088 = vmatpush2.bf16.msra.mxu0 0
        %2089 = vmatprep.subr.bf16.mxu0 0
        %2090 = vmatpush2.bf16.msra.mxu0 0
        %2091 = vmatprep.subr.bf16.mxu0 0
        %2092 = vmatpush2.bf16.msra.mxu0 0
        %2093 = vmatprep.subr.bf16.mxu0 0
        %2094 = vmatpush2.bf16.msra.mxu0 0
        %2095 = vmatprep.subr.bf16.mxu0 0
        %2096 = vmatpush2.bf16.msra.mxu0 0
        %2097 = vmatprep.subr.bf16.mxu0 0
        %2098 = vmatpush2.bf16.msra.mxu0 0
        %2099 = vmatprep.subr.bf16.mxu0 0
        %2100 = vmatpush2.bf16.msra.mxu0 0
        %2101 = vmatprep.mubr.bf16.mxu0 0
        %2102 = vmatmul.mubr.bf16.gmra.mxu0 %v2067
        %v2103 = vpop.f32.mrf.mxu0
        %v2104 = vadd.f32 0.0, %v2103
        %v2105 = vpop.f32.mrf.mxu0
        %v2106 = vpop.f32.mrf.mxu0
        %v2107 = vadd.f32 0.0, %v2106
        %v2108 = vpop.f32.mrf.mxu0
        %2109 = vdwg.mxu0
        %v2110 = vadd.f32 %v2024, %v2104
        %v2111 = vadd.f32 %v2027, %v2107
        %2112 = vst.msk [vmem:[#allocation3 + $0x1] sm:$0xff] %vm325, %v1612
        %2113 = vst.msk [vmem:[#allocation3 + $0x9] sm:$0xff] %vm325, %v1613
        %v2114 = vld [vmem:[#allocation3] sm:$0xff]
        %v2115 = vld [vmem:[#allocation3 + $0x8] sm:$0xff]
        %v2116 = vpack.c.bf16 %v2115, %v2114
        %s2117 = scalar_lea.vmem [#allocation10], 192
        %v2118 = vld [vmem:[%s2117] sm:$0xf]
        %v2119 = vld [vmem:[%s2117 + $0x4] sm:$0xf]
        %v2120 = vld [vmem:[%s2117 + $0x8] sm:$0xf]
        %v2121 = vld [vmem:[%s2117 + $0xc] sm:$0xf]
        %v2122 = vld [vmem:[%s2117 + $0x10] sm:$0xf]
        %v2123 = vld [vmem:[%s2117 + $0x14] sm:$0xf]
        %v2124 = vld [vmem:[%s2117 + $0x18] sm:$0xf]
        %v2125 = vld [vmem:[%s2117 + $0x1c] sm:$0xf]
        %v2126 = vld [vmem:[#allocation3 + $0x1] sm:$0xff]
        %v2127 = vld [vmem:[#allocation3 + $0x9] sm:$0xff]
        %v2128 = vpack.c.bf16 %v2127, %v2126
        %s2129 = scalar_lea.vmem [#allocation10], 224
        %v2130 = vld [vmem:[%s2129] sm:$0xf]
        %v2131 = vld [vmem:[%s2129 + $0x4] sm:$0xf]
        %v2132 = vld [vmem:[%s2129 + $0x8] sm:$0xf]
        %v2133 = vld [vmem:[%s2129 + $0xc] sm:$0xf]
        %v2134 = vld [vmem:[%s2129 + $0x10] sm:$0xf]
        %v2135 = vld [vmem:[%s2129 + $0x14] sm:$0xf]
        %v2136 = vld [vmem:[%s2129 + $0x18] sm:$0xf]
        %v2137 = vld [vmem:[%s2129 + $0x1c] sm:$0xf]
        %v2146 = vunpack.c.l.b16 %v2130
        %v2147 = vunpack.c.l.b16 %v2131
        %v2148 = vunpack.c.l.b16 %v2132
        %v2149 = vunpack.c.l.b16 %v2133
        %v2150 = vunpack.c.l.b16 %v2134
        %v2151 = vunpack.c.l.b16 %v2135
        %v2152 = vunpack.c.l.b16 %v2136
        %v2153 = vunpack.c.l.b16 %v2137
        %v2154 = vpack.c.b16 %v2147, %v2146
        %v2155 = vpack.c.b16 %v2149, %v2148
        %v2156 = vpack.c.b16 %v2151, %v2150
        %v2157 = vpack.c.b16 %v2153, %v2152
        %v2163 = vsel %vm325, %v2128, 0
        %2165 = vmatprep.subr.bf16.mxu0 0
        %2166 = vmatpush1.bf16.msra.mxu0 0
        %2167 = vmatprep.subr.bf16.mxu0 0
        %2168 = vmatpush1.bf16.msra.mxu0 0
        %2169 = vmatprep.subr.bf16.mxu0 0
        %2170 = vmatpush1.bf16.msra.mxu0 0
        %2171 = vmatprep.subr.bf16.mxu0 0
        %2172 = vmatpush1.bf16.msra.mxu0 0
        %2173 = vmatprep.subr.bf16.mxu0 0
        %2174 = vmatpush1.bf16.msra.mxu0 %v2157
        %2175 = vmatprep.subr.bf16.mxu0 0
        %2176 = vmatpush1.bf16.msra.mxu0 %v2156
        %2177 = vmatprep.subr.bf16.mxu0 0
        %2178 = vmatpush1.bf16.msra.mxu0 %v2155
        %2179 = vmatprep.subr.bf16.mxu0 0
        %2180 = vmatpush1.bf16.msra.mxu0 %v2154
        %2181 = vmatprep.subr.bf16.mxu0 0
        %2182 = vmatpush2.bf16.msra.mxu0 0
        %2183 = vmatprep.subr.bf16.mxu0 0
        %2184 = vmatpush2.bf16.msra.mxu0 0
        %2185 = vmatprep.subr.bf16.mxu0 0
        %2186 = vmatpush2.bf16.msra.mxu0 0
        %2187 = vmatprep.subr.bf16.mxu0 0
        %2188 = vmatpush2.bf16.msra.mxu0 0
        %2189 = vmatprep.subr.bf16.mxu0 0
        %2190 = vmatpush2.bf16.msra.mxu0 0
        %2191 = vmatprep.subr.bf16.mxu0 0
        %2192 = vmatpush2.bf16.msra.mxu0 0
        %2193 = vmatprep.subr.bf16.mxu0 0
        %2194 = vmatpush2.bf16.msra.mxu0 0
        %2195 = vmatprep.subr.bf16.mxu0 0
        %2196 = vmatpush2.bf16.msra.mxu0 0
        %2197 = vmatprep.mubr.bf16.mxu0 0
        %2198 = vmatmul.mubr.bf16.gmra.mxu0 %v2163
        %v2199 = vpop.f32.mrf.mxu0
        %v2200 = vadd.f32 0.0, %v2199
        %v2201 = vpop.f32.mrf.mxu0
        %v2202 = vpop.f32.mrf.mxu0
        %v2203 = vadd.f32 0.0, %v2202
        %v2204 = vpop.f32.mrf.mxu0
        %2205 = vdwg.mxu0
        %v2214 = vunpack.c.l.b16 %v2118
        %v2215 = vunpack.c.l.b16 %v2119
        %v2216 = vunpack.c.l.b16 %v2120
        %v2217 = vunpack.c.l.b16 %v2121
        %v2218 = vunpack.c.l.b16 %v2122
        %v2219 = vunpack.c.l.b16 %v2123
        %v2220 = vunpack.c.l.b16 %v2124
        %v2221 = vunpack.c.l.b16 %v2125
        %v2222 = vpack.c.b16 %v2215, %v2214
        %v2223 = vpack.c.b16 %v2217, %v2216
        %v2224 = vpack.c.b16 %v2219, %v2218
        %v2225 = vpack.c.b16 %v2221, %v2220
        %v2231 = vsel %vm325, %v2116, 0
        %2233 = vmatprep.subr.bf16.mxu0 0
        %2234 = vmatpush1.bf16.msra.mxu0 0
        %2235 = vmatprep.subr.bf16.mxu0 0
        %2236 = vmatpush1.bf16.msra.mxu0 0
        %2237 = vmatprep.subr.bf16.mxu0 0
        %2238 = vmatpush1.bf16.msra.mxu0 0
        %2239 = vmatprep.subr.bf16.mxu0 0
        %2240 = vmatpush1.bf16.msra.mxu0 0
        %2241 = vmatprep.subr.bf16.mxu0 0
        %2242 = vmatpush1.bf16.msra.mxu0 %v2225
        %2243 = vmatprep.subr.bf16.mxu0 0
        %2244 = vmatpush1.bf16.msra.mxu0 %v2224
        %2245 = vmatprep.subr.bf16.mxu0 0
        %2246 = vmatpush1.bf16.msra.mxu0 %v2223
        %2247 = vmatprep.subr.bf16.mxu0 0
        %2248 = vmatpush1.bf16.msra.mxu0 %v2222
        %2249 = vmatprep.subr.bf16.mxu0 0
        %2250 = vmatpush2.bf16.msra.mxu0 0
        %2251 = vmatprep.subr.bf16.mxu0 0
        %2252 = vmatpush2.bf16.msra.mxu0 0
        %2253 = vmatprep.subr.bf16.mxu0 0
        %2254 = vmatpush2.bf16.msra.mxu0 0
        %2255 = vmatprep.subr.bf16.mxu0 0
        %2256 = vmatpush2.bf16.msra.mxu0 0
        %2257 = vmatprep.subr.bf16.mxu0 0
        %2258 = vmatpush2.bf16.msra.mxu0 0
        %2259 = vmatprep.subr.bf16.mxu0 0
        %2260 = vmatpush2.bf16.msra.mxu0 0
        %2261 = vmatprep.subr.bf16.mxu0 0
        %2262 = vmatpush2.bf16.msra.mxu0 0
        %2263 = vmatprep.subr.bf16.mxu0 0
        %2264 = vmatpush2.bf16.msra.mxu0 0
        %2265 = vmatprep.mubr.bf16.mxu0 0
        %2266 = vmatmul.mubr.bf16.gmra.mxu0 %v2231
        %v2267 = vpop.f32.mrf.mxu0
        %v2268 = vadd.f32 %v2200, %v2267
        %v2269 = vpop.f32.mrf.mxu0
        %v2270 = vpop.f32.mrf.mxu0
        %v2271 = vadd.f32 %v2203, %v2270
        %v2272 = vpop.f32.mrf.mxu0
        %2273 = vdwg.mxu0
        %v2274 = vld [vmem:[#allocation3 + $0x2] sm:$0xff]
        %v2275 = vld [vmem:[#allocation3 + $0xa] sm:$0xff]
        %v2276 = vpack.c.bf16 %v2275, %v2274
        %s2277 = scalar_lea.vmem [#allocation10], 256
        %v2278 = vld [vmem:[%s2277] sm:$0xf]
        %v2279 = vld [vmem:[%s2277 + $0x4] sm:$0xf]
        %v2280 = vld [vmem:[%s2277 + $0x8] sm:$0xf]
        %v2281 = vld [vmem:[%s2277 + $0xc] sm:$0xf]
        %v2282 = vld [vmem:[%s2277 + $0x10] sm:$0xf]
        %v2283 = vld [vmem:[%s2277 + $0x14] sm:$0xf]
        %v2284 = vld [vmem:[%s2277 + $0x18] sm:$0xf]
        %v2285 = vld [vmem:[%s2277 + $0x1c] sm:$0xf]
        %v2294 = vunpack.c.l.b16 %v2278
        %v2295 = vunpack.c.l.b16 %v2279
        %v2296 = vunpack.c.l.b16 %v2280
        %v2297 = vunpack.c.l.b16 %v2281
        %v2298 = vunpack.c.l.b16 %v2282
        %v2299 = vunpack.c.l.b16 %v2283
        %v2300 = vunpack.c.l.b16 %v2284
        %v2301 = vunpack.c.l.b16 %v2285
        %v2302 = vpack.c.b16 %v2295, %v2294
        %v2303 = vpack.c.b16 %v2297, %v2296
        %v2304 = vpack.c.b16 %v2299, %v2298
        %v2305 = vpack.c.b16 %v2301, %v2300
        %v2311 = vsel %vm325, %v2276, 0
        %2313 = vmatprep.subr.bf16.mxu0 0
        %2314 = vmatpush1.bf16.msra.mxu0 0
        %2315 = vmatprep.subr.bf16.mxu0 0
        %2316 = vmatpush1.bf16.msra.mxu0 0
        %2317 = vmatprep.subr.bf16.mxu0 0
        %2318 = vmatpush1.bf16.msra.mxu0 0
        %2319 = vmatprep.subr.bf16.mxu0 0
        %2320 = vmatpush1.bf16.msra.mxu0 0
        %2321 = vmatprep.subr.bf16.mxu0 0
        %2322 = vmatpush1.bf16.msra.mxu0 %v2305
        %2323 = vmatprep.subr.bf16.mxu0 0
        %2324 = vmatpush1.bf16.msra.mxu0 %v2304
        %2325 = vmatprep.subr.bf16.mxu0 0
        %2326 = vmatpush1.bf16.msra.mxu0 %v2303
        %2327 = vmatprep.subr.bf16.mxu0 0
        %2328 = vmatpush1.bf16.msra.mxu0 %v2302
        %2329 = vmatprep.subr.bf16.mxu0 0
        %2330 = vmatpush2.bf16.msra.mxu0 0
        %2331 = vmatprep.subr.bf16.mxu0 0
        %2332 = vmatpush2.bf16.msra.mxu0 0
        %2333 = vmatprep.subr.bf16.mxu0 0
        %2334 = vmatpush2.bf16.msra.mxu0 0
        %2335 = vmatprep.subr.bf16.mxu0 0
        %2336 = vmatpush2.bf16.msra.mxu0 0
        %2337 = vmatprep.subr.bf16.mxu0 0
        %2338 = vmatpush2.bf16.msra.mxu0 0
        %2339 = vmatprep.subr.bf16.mxu0 0
        %2340 = vmatpush2.bf16.msra.mxu0 0
        %2341 = vmatprep.subr.bf16.mxu0 0
        %2342 = vmatpush2.bf16.msra.mxu0 0
        %2343 = vmatprep.subr.bf16.mxu0 0
        %2344 = vmatpush2.bf16.msra.mxu0 0
        %2345 = vmatprep.mubr.bf16.mxu0 0
        %2346 = vmatmul.mubr.bf16.gmra.mxu0 %v2311
        %v2347 = vpop.f32.mrf.mxu0
        %v2348 = vadd.f32 0.0, %v2347
        %v2349 = vpop.f32.mrf.mxu0
        %v2350 = vpop.f32.mrf.mxu0
        %v2351 = vadd.f32 0.0, %v2350
        %v2352 = vpop.f32.mrf.mxu0
        %2353 = vdwg.mxu0
        %v2354 = vadd.f32 %v2268, %v2348
        %v2355 = vadd.f32 %v2271, %v2351
        %v2356 = vadd.f32 %v2110, %v2354
        %v2357 = vadd.f32 %v2111, %v2355
        %v2358 = vld [vmem:[#allocation12 + $0x4] sm:$0x1]
        %v2359 = vlaneseq
        %v2360 = vshrl.u32 %v2359, 7
        %v2361 = vsub.s32 0, %v2360
        %v2362 = vrot.slane %v2358, %v2361
        %v2363 = vadd.f32 %v2356, %v2362
        %v2364 = vadd.f32 %v2357, %v2362
        %v2365 = vmax.f32 %v2363, 0.0
        %v2366 = vmax.f32 %v2364, 0.0
        %2367 = vst.msk [vmem:[#allocation3 + $0x1] sm:$0xff] %vm325, %v1866
        %2368 = vst.msk [vmem:[#allocation3 + $0x9] sm:$0xff] %vm325, %v1867
        %v2369 = vld [vmem:[#allocation3] sm:$0xff]
        %v2370 = vld [vmem:[#allocation3 + $0x8] sm:$0xff]
        %v2371 = vpack.c.bf16 %v2370, %v2369
        %s2372 = scalar_lea.vmem [#allocation10], 288
        %v2373 = vld [vmem:[%s2372] sm:$0xf]
        %v2374 = vld [vmem:[%s2372 + $0x4] sm:$0xf]
        %v2375 = vld [vmem:[%s2372 + $0x8] sm:$0xf]
        %v2376 = vld [vmem:[%s2372 + $0xc] sm:$0xf]
        %v2377 = vld [vmem:[%s2372 + $0x10] sm:$0xf]
        %v2378 = vld [vmem:[%s2372 + $0x14] sm:$0xf]
        %v2379 = vld [vmem:[%s2372 + $0x18] sm:$0xf]
        %v2380 = vld [vmem:[%s2372 + $0x1c] sm:$0xf]
        %v2381 = vld [vmem:[#allocation3 + $0x1] sm:$0xff]
        %v2382 = vld [vmem:[#allocation3 + $0x9] sm:$0xff]
        %v2383 = vpack.c.bf16 %v2382, %v2381
        %s2384 = scalar_lea.vmem [#allocation10], 320
        %v2385 = vld [vmem:[%s2384] sm:$0xf]
        %v2386 = vld [vmem:[%s2384 + $0x4] sm:$0xf]
        %v2387 = vld [vmem:[%s2384 + $0x8] sm:$0xf]
        %v2388 = vld [vmem:[%s2384 + $0xc] sm:$0xf]
        %v2389 = vld [vmem:[%s2384 + $0x10] sm:$0xf]
        %v2390 = vld [vmem:[%s2384 + $0x14] sm:$0xf]
        %v2391 = vld [vmem:[%s2384 + $0x18] sm:$0xf]
        %v2392 = vld [vmem:[%s2384 + $0x1c] sm:$0xf]
        %v2401 = vunpack.c.l.b16 %v2385
        %v2402 = vunpack.c.l.b16 %v2386
        %v2403 = vunpack.c.l.b16 %v2387
        %v2404 = vunpack.c.l.b16 %v2388
        %v2405 = vunpack.c.l.b16 %v2389
        %v2406 = vunpack.c.l.b16 %v2390
        %v2407 = vunpack.c.l.b16 %v2391
        %v2408 = vunpack.c.l.b16 %v2392
        %v2409 = vpack.c.b16 %v2402, %v2401
        %v2410 = vpack.c.b16 %v2404, %v2403
        %v2411 = vpack.c.b16 %v2406, %v2405
        %v2412 = vpack.c.b16 %v2408, %v2407
        %v2418 = vsel %vm325, %v2383, 0
        %2420 = vmatprep.subr.bf16.mxu0 0
        %2421 = vmatpush1.bf16.msra.mxu0 0
        %2422 = vmatprep.subr.bf16.mxu0 0
        %2423 = vmatpush1.bf16.msra.mxu0 0
        %2424 = vmatprep.subr.bf16.mxu0 0
        %2425 = vmatpush1.bf16.msra.mxu0 0
        %2426 = vmatprep.subr.bf16.mxu0 0
        %2427 = vmatpush1.bf16.msra.mxu0 0
        %2428 = vmatprep.subr.bf16.mxu0 0
        %2429 = vmatpush1.bf16.msra.mxu0 %v2412
        %2430 = vmatprep.subr.bf16.mxu0 0
        %2431 = vmatpush1.bf16.msra.mxu0 %v2411
        %2432 = vmatprep.subr.bf16.mxu0 0
        %2433 = vmatpush1.bf16.msra.mxu0 %v2410
        %2434 = vmatprep.subr.bf16.mxu0 0
        %2435 = vmatpush1.bf16.msra.mxu0 %v2409
        %2436 = vmatprep.subr.bf16.mxu0 0
        %2437 = vmatpush2.bf16.msra.mxu0 0
        %2438 = vmatprep.subr.bf16.mxu0 0
        %2439 = vmatpush2.bf16.msra.mxu0 0
        %2440 = vmatprep.subr.bf16.mxu0 0
        %2441 = vmatpush2.bf16.msra.mxu0 0
        %2442 = vmatprep.subr.bf16.mxu0 0
        %2443 = vmatpush2.bf16.msra.mxu0 0
        %2444 = vmatprep.subr.bf16.mxu0 0
        %2445 = vmatpush2.bf16.msra.mxu0 0
        %2446 = vmatprep.subr.bf16.mxu0 0
        %2447 = vmatpush2.bf16.msra.mxu0 0
        %2448 = vmatprep.subr.bf16.mxu0 0
        %2449 = vmatpush2.bf16.msra.mxu0 0
        %2450 = vmatprep.subr.bf16.mxu0 0
        %2451 = vmatpush2.bf16.msra.mxu0 0
        %2452 = vmatprep.mubr.bf16.mxu0 0
        %2453 = vmatmul.mubr.bf16.gmra.mxu0 %v2418
        %v2454 = vpop.f32.mrf.mxu0
        %v2455 = vadd.f32 0.0, %v2454
        %v2456 = vpop.f32.mrf.mxu0
        %v2457 = vpop.f32.mrf.mxu0
        %v2458 = vadd.f32 0.0, %v2457
        %v2459 = vpop.f32.mrf.mxu0
        %2460 = vdwg.mxu0
        %v2469 = vunpack.c.l.b16 %v2373
        %v2470 = vunpack.c.l.b16 %v2374
        %v2471 = vunpack.c.l.b16 %v2375
        %v2472 = vunpack.c.l.b16 %v2376
        %v2473 = vunpack.c.l.b16 %v2377
        %v2474 = vunpack.c.l.b16 %v2378
        %v2475 = vunpack.c.l.b16 %v2379
        %v2476 = vunpack.c.l.b16 %v2380
        %v2477 = vpack.c.b16 %v2470, %v2469
        %v2478 = vpack.c.b16 %v2472, %v2471
        %v2479 = vpack.c.b16 %v2474, %v2473
        %v2480 = vpack.c.b16 %v2476, %v2475
        %v2486 = vsel %vm325, %v2371, 0
        %2488 = vmatprep.subr.bf16.mxu0 0
        %2489 = vmatpush1.bf16.msra.mxu0 0
        %2490 = vmatprep.subr.bf16.mxu0 0
        %2491 = vmatpush1.bf16.msra.mxu0 0
        %2492 = vmatprep.subr.bf16.mxu0 0
        %2493 = vmatpush1.bf16.msra.mxu0 0
        %2494 = vmatprep.subr.bf16.mxu0 0
        %2495 = vmatpush1.bf16.msra.mxu0 0
        %2496 = vmatprep.subr.bf16.mxu0 0
        %2497 = vmatpush1.bf16.msra.mxu0 %v2480
        %2498 = vmatprep.subr.bf16.mxu0 0
        %2499 = vmatpush1.bf16.msra.mxu0 %v2479
        %2500 = vmatprep.subr.bf16.mxu0 0
        %2501 = vmatpush1.bf16.msra.mxu0 %v2478
        %2502 = vmatprep.subr.bf16.mxu0 0
        %2503 = vmatpush1.bf16.msra.mxu0 %v2477
        %2504 = vmatprep.subr.bf16.mxu0 0
        %2505 = vmatpush2.bf16.msra.mxu0 0
        %2506 = vmatprep.subr.bf16.mxu0 0
        %2507 = vmatpush2.bf16.msra.mxu0 0
        %2508 = vmatprep.subr.bf16.mxu0 0
        %2509 = vmatpush2.bf16.msra.mxu0 0
        %2510 = vmatprep.subr.bf16.mxu0 0
        %2511 = vmatpush2.bf16.msra.mxu0 0
        %2512 = vmatprep.subr.bf16.mxu0 0
        %2513 = vmatpush2.bf16.msra.mxu0 0
        %2514 = vmatprep.subr.bf16.mxu0 0
        %2515 = vmatpush2.bf16.msra.mxu0 0
        %2516 = vmatprep.subr.bf16.mxu0 0
        %2517 = vmatpush2.bf16.msra.mxu0 0
        %2518 = vmatprep.subr.bf16.mxu0 0
        %2519 = vmatpush2.bf16.msra.mxu0 0
        %2520 = vmatprep.mubr.bf16.mxu0 0
        %2521 = vmatmul.mubr.bf16.gmra.mxu0 %v2486
        %v2522 = vpop.f32.mrf.mxu0
        %v2523 = vadd.f32 %v2455, %v2522
        %v2524 = vpop.f32.mrf.mxu0
        %v2525 = vpop.f32.mrf.mxu0
        %v2526 = vadd.f32 %v2458, %v2525
        %v2527 = vpop.f32.mrf.mxu0
        %2528 = vdwg.mxu0
        %v2529 = vld [vmem:[#allocation3 + $0x2] sm:$0xff]
        %v2530 = vld [vmem:[#allocation3 + $0xa] sm:$0xff]
        %v2531 = vpack.c.bf16 %v2530, %v2529
        %s2532 = scalar_lea.vmem [#allocation10], 352
        %v2533 = vld [vmem:[%s2532] sm:$0xf]
        %v2534 = vld [vmem:[%s2532 + $0x4] sm:$0xf]
        %v2535 = vld [vmem:[%s2532 + $0x8] sm:$0xf]
        %v2536 = vld [vmem:[%s2532 + $0xc] sm:$0xf]
        %v2537 = vld [vmem:[%s2532 + $0x10] sm:$0xf]
        %v2538 = vld [vmem:[%s2532 + $0x14] sm:$0xf]
        %v2539 = vld [vmem:[%s2532 + $0x18] sm:$0xf]
        %v2540 = vld [vmem:[%s2532 + $0x1c] sm:$0xf]
        %v2549 = vunpack.c.l.b16 %v2533
        %v2550 = vunpack.c.l.b16 %v2534
        %v2551 = vunpack.c.l.b16 %v2535
        %v2552 = vunpack.c.l.b16 %v2536
        %v2553 = vunpack.c.l.b16 %v2537
        %v2554 = vunpack.c.l.b16 %v2538
        %v2555 = vunpack.c.l.b16 %v2539
        %v2556 = vunpack.c.l.b16 %v2540
        %v2557 = vpack.c.b16 %v2550, %v2549
        %v2558 = vpack.c.b16 %v2552, %v2551
        %v2559 = vpack.c.b16 %v2554, %v2553
        %v2560 = vpack.c.b16 %v2556, %v2555
        %v2566 = vsel %vm325, %v2531, 0
        %2568 = vmatprep.subr.bf16.mxu0 0
        %2569 = vmatpush1.bf16.msra.mxu0 0
        %2570 = vmatprep.subr.bf16.mxu0 0
        %2571 = vmatpush1.bf16.msra.mxu0 0
        %2572 = vmatprep.subr.bf16.mxu0 0
        %2573 = vmatpush1.bf16.msra.mxu0 0
        %2574 = vmatprep.subr.bf16.mxu0 0
        %2575 = vmatpush1.bf16.msra.mxu0 0
        %2576 = vmatprep.subr.bf16.mxu0 0
        %2577 = vmatpush1.bf16.msra.mxu0 %v2560
        %2578 = vmatprep.subr.bf16.mxu0 0
        %2579 = vmatpush1.bf16.msra.mxu0 %v2559
        %2580 = vmatprep.subr.bf16.mxu0 0
        %2581 = vmatpush1.bf16.msra.mxu0 %v2558
        %2582 = vmatprep.subr.bf16.mxu0 0
        %2583 = vmatpush1.bf16.msra.mxu0 %v2557
        %2584 = vmatprep.subr.bf16.mxu0 0
        %2585 = vmatpush2.bf16.msra.mxu0 0
        %2586 = vmatprep.subr.bf16.mxu0 0
        %2587 = vmatpush2.bf16.msra.mxu0 0
        %2588 = vmatprep.subr.bf16.mxu0 0
        %2589 = vmatpush2.bf16.msra.mxu0 0
        %2590 = vmatprep.subr.bf16.mxu0 0
        %2591 = vmatpush2.bf16.msra.mxu0 0
        %2592 = vmatprep.subr.bf16.mxu0 0
        %2593 = vmatpush2.bf16.msra.mxu0 0
        %2594 = vmatprep.subr.bf16.mxu0 0
        %2595 = vmatpush2.bf16.msra.mxu0 0
        %2596 = vmatprep.subr.bf16.mxu0 0
        %2597 = vmatpush2.bf16.msra.mxu0 0
        %2598 = vmatprep.subr.bf16.mxu0 0
        %2599 = vmatpush2.bf16.msra.mxu0 0
        %2600 = vmatprep.mubr.bf16.mxu0 0
        %2601 = vmatmul.mubr.bf16.gmra.mxu0 %v2566
        %v2602 = vpop.f32.mrf.mxu0
        %v2603 = vadd.f32 0.0, %v2602
        %v2604 = vpop.f32.mrf.mxu0
        %v2605 = vpop.f32.mrf.mxu0
        %v2606 = vadd.f32 0.0, %v2605
        %v2607 = vpop.f32.mrf.mxu0
        %2608 = vdwg.mxu0
        %v2609 = vadd.f32 %v2523, %v2603
        %v2610 = vadd.f32 %v2526, %v2606
        %2611 = vst.msk [vmem:[#allocation3 + $0x1] sm:$0xff] %vm325, %v2365
        %2612 = vst.msk [vmem:[#allocation3 + $0x9] sm:$0xff] %vm325, %v2366
        %v2613 = vld [vmem:[#allocation3] sm:$0xff]
        %v2614 = vld [vmem:[#allocation3 + $0x8] sm:$0xff]
        %v2615 = vpack.c.bf16 %v2614, %v2613
        %s2616 = scalar_lea.vmem [#allocation10], 384
        %v2617 = vld [vmem:[%s2616] sm:$0xf]
        %v2618 = vld [vmem:[%s2616 + $0x4] sm:$0xf]
        %v2619 = vld [vmem:[%s2616 + $0x8] sm:$0xf]
        %v2620 = vld [vmem:[%s2616 + $0xc] sm:$0xf]
        %v2621 = vld [vmem:[%s2616 + $0x10] sm:$0xf]
        %v2622 = vld [vmem:[%s2616 + $0x14] sm:$0xf]
        %v2623 = vld [vmem:[%s2616 + $0x18] sm:$0xf]
        %v2624 = vld [vmem:[%s2616 + $0x1c] sm:$0xf]
        %v2625 = vld [vmem:[#allocation3 + $0x1] sm:$0xff]
        %v2626 = vld [vmem:[#allocation3 + $0x9] sm:$0xff]
        %v2627 = vpack.c.bf16 %v2626, %v2625
        %s2628 = scalar_lea.vmem [#allocation10], 416
        %v2629 = vld [vmem:[%s2628] sm:$0xf]
        %v2630 = vld [vmem:[%s2628 + $0x4] sm:$0xf]
        %v2631 = vld [vmem:[%s2628 + $0x8] sm:$0xf]
        %v2632 = vld [vmem:[%s2628 + $0xc] sm:$0xf]
        %v2633 = vld [vmem:[%s2628 + $0x10] sm:$0xf]
        %v2634 = vld [vmem:[%s2628 + $0x14] sm:$0xf]
        %v2635 = vld [vmem:[%s2628 + $0x18] sm:$0xf]
        %v2636 = vld [vmem:[%s2628 + $0x1c] sm:$0xf]
        %v2645 = vunpack.c.l.b16 %v2629
        %v2646 = vunpack.c.l.b16 %v2630
        %v2647 = vunpack.c.l.b16 %v2631
        %v2648 = vunpack.c.l.b16 %v2632
        %v2649 = vunpack.c.l.b16 %v2633
        %v2650 = vunpack.c.l.b16 %v2634
        %v2651 = vunpack.c.l.b16 %v2635
        %v2652 = vunpack.c.l.b16 %v2636
        %v2653 = vpack.c.b16 %v2646, %v2645
        %v2654 = vpack.c.b16 %v2648, %v2647
        %v2655 = vpack.c.b16 %v2650, %v2649
        %v2656 = vpack.c.b16 %v2652, %v2651
        %v2662 = vsel %vm325, %v2627, 0
        %2664 = vmatprep.subr.bf16.mxu0 0
        %2665 = vmatpush1.bf16.msra.mxu0 0
        %2666 = vmatprep.subr.bf16.mxu0 0
        %2667 = vmatpush1.bf16.msra.mxu0 0
        %2668 = vmatprep.subr.bf16.mxu0 0
        %2669 = vmatpush1.bf16.msra.mxu0 0
        %2670 = vmatprep.subr.bf16.mxu0 0
        %2671 = vmatpush1.bf16.msra.mxu0 0
        %2672 = vmatprep.subr.bf16.mxu0 0
        %2673 = vmatpush1.bf16.msra.mxu0 %v2656
        %2674 = vmatprep.subr.bf16.mxu0 0
        %2675 = vmatpush1.bf16.msra.mxu0 %v2655
        %2676 = vmatprep.subr.bf16.mxu0 0
        %2677 = vmatpush1.bf16.msra.mxu0 %v2654
        %2678 = vmatprep.subr.bf16.mxu0 0
        %2679 = vmatpush1.bf16.msra.mxu0 %v2653
        %2680 = vmatprep.subr.bf16.mxu0 0
        %2681 = vmatpush2.bf16.msra.mxu0 0
        %2682 = vmatprep.subr.bf16.mxu0 0
        %2683 = vmatpush2.bf16.msra.mxu0 0
        %2684 = vmatprep.subr.bf16.mxu0 0
        %2685 = vmatpush2.bf16.msra.mxu0 0
        %2686 = vmatprep.subr.bf16.mxu0 0
        %2687 = vmatpush2.bf16.msra.mxu0 0
        %2688 = vmatprep.subr.bf16.mxu0 0
        %2689 = vmatpush2.bf16.msra.mxu0 0
        %2690 = vmatprep.subr.bf16.mxu0 0
        %2691 = vmatpush2.bf16.msra.mxu0 0
        %2692 = vmatprep.subr.bf16.mxu0 0
        %2693 = vmatpush2.bf16.msra.mxu0 0
        %2694 = vmatprep.subr.bf16.mxu0 0
        %2695 = vmatpush2.bf16.msra.mxu0 0
        %2696 = vmatprep.mubr.bf16.mxu0 0
        %2697 = vmatmul.mubr.bf16.gmra.mxu0 %v2662
        %v2698 = vpop.f32.mrf.mxu0
        %v2699 = vadd.f32 0.0, %v2698
        %v2700 = vpop.f32.mrf.mxu0
        %v2701 = vpop.f32.mrf.mxu0
        %v2702 = vadd.f32 0.0, %v2701
        %v2703 = vpop.f32.mrf.mxu0
        %2704 = vdwg.mxu0
        %v2713 = vunpack.c.l.b16 %v2617
        %v2714 = vunpack.c.l.b16 %v2618
        %v2715 = vunpack.c.l.b16 %v2619
        %v2716 = vunpack.c.l.b16 %v2620
        %v2717 = vunpack.c.l.b16 %v2621
        %v2718 = vunpack.c.l.b16 %v2622
        %v2719 = vunpack.c.l.b16 %v2623
        %v2720 = vunpack.c.l.b16 %v2624
        %v2721 = vpack.c.b16 %v2714, %v2713
        %v2722 = vpack.c.b16 %v2716, %v2715
        %v2723 = vpack.c.b16 %v2718, %v2717
        %v2724 = vpack.c.b16 %v2720, %v2719
        %v2730 = vsel %vm325, %v2615, 0
        %2732 = vmatprep.subr.bf16.mxu0 0
        %2733 = vmatpush1.bf16.msra.mxu0 0
        %2734 = vmatprep.subr.bf16.mxu0 0
        %2735 = vmatpush1.bf16.msra.mxu0 0
        %2736 = vmatprep.subr.bf16.mxu0 0
        %2737 = vmatpush1.bf16.msra.mxu0 0
        %2738 = vmatprep.subr.bf16.mxu0 0
        %2739 = vmatpush1.bf16.msra.mxu0 0
        %2740 = vmatprep.subr.bf16.mxu0 0
        %2741 = vmatpush1.bf16.msra.mxu0 %v2724
        %2742 = vmatprep.subr.bf16.mxu0 0
        %2743 = vmatpush1.bf16.msra.mxu0 %v2723
        %2744 = vmatprep.subr.bf16.mxu0 0
        %2745 = vmatpush1.bf16.msra.mxu0 %v2722
        %2746 = vmatprep.subr.bf16.mxu0 0
        %2747 = vmatpush1.bf16.msra.mxu0 %v2721
        %2748 = vmatprep.subr.bf16.mxu0 0
        %2749 = vmatpush2.bf16.msra.mxu0 0
        %2750 = vmatprep.subr.bf16.mxu0 0
        %2751 = vmatpush2.bf16.msra.mxu0 0
        %2752 = vmatprep.subr.bf16.mxu0 0
        %2753 = vmatpush2.bf16.msra.mxu0 0
        %2754 = vmatprep.subr.bf16.mxu0 0
        %2755 = vmatpush2.bf16.msra.mxu0 0
        %2756 = vmatprep.subr.bf16.mxu0 0
        %2757 = vmatpush2.bf16.msra.mxu0 0
        %2758 = vmatprep.subr.bf16.mxu0 0
        %2759 = vmatpush2.bf16.msra.mxu0 0
        %2760 = vmatprep.subr.bf16.mxu0 0
        %2761 = vmatpush2.bf16.msra.mxu0 0
        %2762 = vmatprep.subr.bf16.mxu0 0
        %2763 = vmatpush2.bf16.msra.mxu0 0
        %2764 = vmatprep.mubr.bf16.mxu0 0
        %2765 = vmatmul.mubr.bf16.gmra.mxu0 %v2730
        %v2766 = vpop.f32.mrf.mxu0
        %v2767 = vadd.f32 %v2699, %v2766
        %v2768 = vpop.f32.mrf.mxu0
        %v2769 = vpop.f32.mrf.mxu0
        %v2770 = vadd.f32 %v2702, %v2769
        %v2771 = vpop.f32.mrf.mxu0
        %2772 = vdwg.mxu0
        %v2773 = vld [vmem:[#allocation3 + $0x2] sm:$0xff]
        %v2774 = vld [vmem:[#allocation3 + $0xa] sm:$0xff]
        %v2775 = vpack.c.bf16 %v2774, %v2773
        %s2776 = scalar_lea.vmem [#allocation10], 448
        %v2777 = vld [vmem:[%s2776] sm:$0xf]
        %v2778 = vld [vmem:[%s2776 + $0x4] sm:$0xf]
        %v2779 = vld [vmem:[%s2776 + $0x8] sm:$0xf]
        %v2780 = vld [vmem:[%s2776 + $0xc] sm:$0xf]
        %v2781 = vld [vmem:[%s2776 + $0x10] sm:$0xf]
        %v2782 = vld [vmem:[%s2776 + $0x14] sm:$0xf]
        %v2783 = vld [vmem:[%s2776 + $0x18] sm:$0xf]
        %v2784 = vld [vmem:[%s2776 + $0x1c] sm:$0xf]
        %v2793 = vunpack.c.l.b16 %v2777
        %v2794 = vunpack.c.l.b16 %v2778
        %v2795 = vunpack.c.l.b16 %v2779
        %v2796 = vunpack.c.l.b16 %v2780
        %v2797 = vunpack.c.l.b16 %v2781
        %v2798 = vunpack.c.l.b16 %v2782
        %v2799 = vunpack.c.l.b16 %v2783
        %v2800 = vunpack.c.l.b16 %v2784
        %v2801 = vpack.c.b16 %v2794, %v2793
        %v2802 = vpack.c.b16 %v2796, %v2795
        %v2803 = vpack.c.b16 %v2798, %v2797
        %v2804 = vpack.c.b16 %v2800, %v2799
        %v2810 = vsel %vm325, %v2775, 0
        %2812 = vmatprep.subr.bf16.mxu0 0
        %2813 = vmatpush1.bf16.msra.mxu0 0
        %2814 = vmatprep.subr.bf16.mxu0 0
        %2815 = vmatpush1.bf16.msra.mxu0 0
        %2816 = vmatprep.subr.bf16.mxu0 0
        %2817 = vmatpush1.bf16.msra.mxu0 0
        %2818 = vmatprep.subr.bf16.mxu0 0
        %2819 = vmatpush1.bf16.msra.mxu0 0
        %2820 = vmatprep.subr.bf16.mxu0 0
        %2821 = vmatpush1.bf16.msra.mxu0 %v2804
        %2822 = vmatprep.subr.bf16.mxu0 0
        %2823 = vmatpush1.bf16.msra.mxu0 %v2803
        %2824 = vmatprep.subr.bf16.mxu0 0
        %2825 = vmatpush1.bf16.msra.mxu0 %v2802
        %2826 = vmatprep.subr.bf16.mxu0 0
        %2827 = vmatpush1.bf16.msra.mxu0 %v2801
        %2828 = vmatprep.subr.bf16.mxu0 0
        %2829 = vmatpush2.bf16.msra.mxu0 0
        %2830 = vmatprep.subr.bf16.mxu0 0
        %2831 = vmatpush2.bf16.msra.mxu0 0
        %2832 = vmatprep.subr.bf16.mxu0 0
        %2833 = vmatpush2.bf16.msra.mxu0 0
        %2834 = vmatprep.subr.bf16.mxu0 0
        %2835 = vmatpush2.bf16.msra.mxu0 0
        %2836 = vmatprep.subr.bf16.mxu0 0
        %2837 = vmatpush2.bf16.msra.mxu0 0
        %2838 = vmatprep.subr.bf16.mxu0 0
        %2839 = vmatpush2.bf16.msra.mxu0 0
        %2840 = vmatprep.subr.bf16.mxu0 0
        %2841 = vmatpush2.bf16.msra.mxu0 0
        %2842 = vmatprep.subr.bf16.mxu0 0
        %2843 = vmatpush2.bf16.msra.mxu0 0
        %2844 = vmatprep.mubr.bf16.mxu0 0
        %2845 = vmatmul.mubr.bf16.gmra.mxu0 %v2810
        %v2846 = vpop.f32.mrf.mxu0
        %v2847 = vadd.f32 0.0, %v2846
        %v2848 = vpop.f32.mrf.mxu0
        %v2849 = vpop.f32.mrf.mxu0
        %v2850 = vadd.f32 0.0, %v2849
        %v2851 = vpop.f32.mrf.mxu0
        %2852 = vdwg.mxu0
        %v2853 = vadd.f32 %v2767, %v2847
        %v2854 = vadd.f32 %v2770, %v2850
        %v2855 = vadd.f32 %v2609, %v2853
        %v2856 = vadd.f32 %v2610, %v2854
        %v2857 = vld [vmem:[#allocation12 + $0x5] sm:$0x1]
        %v2858 = vlaneseq
        %v2859 = vshrl.u32 %v2858, 7
        %v2860 = vsub.s32 0, %v2859
        %v2861 = vrot.slane %v2857, %v2860
        %v2862 = vadd.f32 %v2855, %v2861
        %v2863 = vadd.f32 %v2856, %v2861
        %2864 = vst.msk [vmem:[%s323] sm:$0xff] %vm325, %v2862
        %2865 = vst.msk [vmem:[%s323 + $0x8] sm:$0xff] %vm325, %v2863
        %s2866 = sand.u32 %s149, 1
        %s2867 = scalar_lea.sflag [#allocation6], %s2866
        %s2868 = sand.u32 %s149, 1
        %s2869 = smul.addr %s2868, 16
        %s2870 = scalar_lea.vmem [#allocation13], %s2869
        // Predicated region
        $region61: #{tpu_custom_call.1} parent=39 // pred_check
          %p2871 = pneg %p159
        $region62: #{tpu_custom_call.1} parent=39 // pred_check_branch
          %2873 = sbr.rel (%p2871) target = $region64
        $region63: #{tpu_custom_call.1} parent=39 // pred_region
          %s2875 = ssub.s32 256, 256
          %2876 = vsyncadd %s2867, %s2875
          %s2877 = smul.addr %s26, 2
          %s2878 = smul.addr %s2877, 128
          %s2879 = scalar_lea.hbm %s5, %s2878
          %s2880 = sshll.u32 %s2870, 4
          %s2881 = int_to_ptr.vmem [resolvable:$true] %s2880
          %2886 = dma.vmem_to_hbm [thread:$0]  %s2881, 256, %s2879, %s2867, 128, 128, 8
        $region64: #{tpu_custom_call.1} parent=39 // pred_fallthru
          _
      $region40: #{tpu_custom_call.1} parent=5 // pred_fallthru
        _
      %p2887 = scmp.le.s32.totalorder 2, %s21
      // Predicated region
      $region65: #{tpu_custom_call.1} parent=5 // pred_check
        %p2888 = pneg %p2887
      $region66: #{tpu_custom_call.1} parent=5 // pred_check_branch
        %2890 = sbr.rel (%p2888) target = $region68
      $region67: #{tpu_custom_call.1} parent=5 // pred_region
        %s2891 = ssub.s32 %s21, 2
        // Predicated region
        $region69: #{tpu_custom_call.1} parent=67 // pred_check
          %p2892 = pneg %p165
        $region70: #{tpu_custom_call.1} parent=67 // pred_check_branch
          %2894 = sbr.rel (%p2892) target = $region72
        $region71: #{tpu_custom_call.1} parent=67 // pred_region
          %s2895 = sand.u32 %s150, 1
          %s2896 = scalar_lea.sflag [#allocation6], %s2895
          %s2897 = sand.u32 %s150, 1
          %s2898 = smul.addr %s2897, 16
          %s2899 = scalar_lea.vmem [#allocation13], %s2898
          %2900 = dma.done %s2896, 256
        $region72: #{tpu_custom_call.1} parent=67 // pred_fallthru
          _
      $region68: #{tpu_custom_call.1} parent=5 // pred_fallthru
        _
    $region6: #{tpu_custom_call.1} parent=1 // loop_footer
      %s25 = sadd.s32 1, %s21
    $region7: #{tpu_custom_call.1} parent=1 // loop_footer_branch
      %20 = sbr.rel target = $region3
    $region8: #{tpu_custom_call.1} parent=1 // loop_exit
      _
    %2901 = vsyncpa [#allocation5], 1
    %s2902 = scalar_lea.sflag [#allocation5], 1
    %2903 = vsyncpa %s2902, 1
    %2904 = vsyncpa [#allocation8], 1
    %s2905 = scalar_lea.sflag [#allocation8], 1
    %2906 = vsyncpa %s2905, 1
    %2907 = vsyncpa [#allocation11], 1
    %2908 = vsyncpa [#allocation6], 1
    %s2909 = scalar_lea.sflag [#allocation6], 1
    %2910 = vsyncpa %s2909, 1

</llo_original>
